<compile_context>
chip_gen: v5e
topology: v5e:2x2
jax: 0.10.0
libtpu: 0.0.40
codegen_flags: <defaults>
</compile_context>

<pallas_src>
import jax
import jax.numpy as jnp
from jax import lax
from jax.experimental import pallas as pl
from jax.experimental.pallas import tpu as pltpu

NEG_SLOPE = 0.01      # nn.LeakyReLU() default
BN_EPS = 1e-5


def _leaky(v):
    return jnp.where(v >= 0, v, NEG_SLOPE * v)


def _round_up(v, m):
    return (v + m - 1) // m * m


# --------------------------------------------------------------------------
# Pallas kernel: full Bottleneck forward for NB batch elements per grid step.
# --------------------------------------------------------------------------
def bottleneck_kernel(xe_ref, xo_ref,            # (NB,C1p,LE) / (NB,C1p,LO) bf16
                      wbig_ref, bcat_ref,        # (3C1p, 9C1p) bf16, (3C1p,1) f32
                      wf1_ref, bf1_ref,          # (INTp, 3C1p), (INTp,1)   f32
                      wf2_ref, bf2_ref,          # (3C1p, INTp), (3C1p,1)   f32
                      wc2_ref, bc2_ref,          # (C2p, 15C1p) bf16, (C2p,1) f32
                      wcv_ref, bcv_ref,          # (C2p, C1p)   bf16, (C2p,1) f32
                      o_ref,                     # (NB, C2p, Lo) f32
                      x9_ref, cat_ref, x2_ref):  # VMEM scratch (bf16)
    NB, C1p, LE = xe_ref.shape
    LO = xo_ref.shape[-1]
    L = LE + LO - 8                  # true (unpadded) signal length
    Le = (L + 1) // 2                # number of even time positions (== Lo)
    Lodd = L // 2                    # number of odd time positions
    Lo = o_ref.shape[-1]
    C3p = wbig_ref.shape[0]
    Lp4 = L + 4                      # per-element segment length in cat scratch

    def mm(a, b):
        return jnp.dot(a, b, preferred_element_type=jnp.float32)

    # ---- im2col for the fused "same" convs (k=5/7/9).  Output lanes per
    # element are stored de-interleaved: [even t | odd t].  Tap j holds
    # x_pad[t + j]; with de-interleaved inputs every tap is a contiguous slice.
    for b in range(NB):
        ce = b * L                   # even-half column offset
        co = b * L + Le              # odd-half column offset
        for j in range(9):
            m, r = j // 2, j * C1p
            if j % 2 == 0:
                x9_ref[r:r + C1p, ce:ce + Le] = xe_ref[b, :, m:m + Le]
                x9_ref[r:r + C1p, co:co + Lodd] = xo_ref[b, :, m:m + Lodd]
            else:
                x9_ref[r:r + C1p, ce:ce + Le] = xo_ref[b, :, m:m + Le]
                x9_ref[r:r + C1p, co:co + Lodd] = xe_ref[b, :, m + 1:m + 1 + Lodd]

    # conv1 | conv2 | conv3 (+BN+LeakyReLU) as a single MXU matmul.
    x_cat = _leaky(mm(wbig_ref[...], x9_ref[...]) + bcat_ref[...])  # (C3p, NB*L)

    # ---- ConvAttention (SE): adaptive_avg_pool1d(1) + fc1 + fc2 + sigmoid.
    pooled = jnp.concatenate(
        [jnp.sum(x_cat[:, b * L:(b + 1) * L], axis=1, keepdims=True)
         for b in range(NB)], axis=1) * (1.0 / L)                   # (C3p, NB)
    y = _leaky(mm(wf1_ref[...], pooled) + bf1_ref[...])
    y = _leaky(mm(wf2_ref[...], y) + bf2_ref[...])
    scale = 1.0 / (1.0 + jnp.exp(-y))                               # exact sigmoid

    # ---- SE-scaled concat -> cat scratch, split even/odd with zero pads:
    # per element: [0 | even (Le) | 0 0 | odd (Lodd) | 0]   (length L + 4).
    # Every column is written each step, so no stale data is ever read.
    zpad1 = jnp.zeros((C3p, 1), cat_ref.dtype)
    zpad2 = jnp.zeros((C3p, 2), cat_ref.dtype)
    for b in range(NB):
        seg = b * Lp4
        xs = (scale[:, b:b + 1] * x_cat[:, b * L:(b + 1) * L]).astype(cat_ref.dtype)
        cat_ref[:, seg:seg + 1] = zpad1
        cat_ref[:, seg + 1:seg + 1 + Le] = xs[:, :Le]
        cat_ref[:, seg + Le + 1:seg + Le + 3] = zpad2
        cat_ref[:, seg + Le + 3:seg + Le + 3 + Lodd] = xs[:, Le:Le + Lodd]
        cat_ref[:, seg + L + 3:seg + L + 4] = zpad1

    # ---- im2col for conv_2 (k=5, stride 2, pad 2): every tap is a contiguous
    # slice of the even / odd halves.  Shortcut-cv input (x[:, ::2]) is packed
    # into the trailing rows of the same scratch.
    OC = Le + 2                      # odd-half (incl. pads) offset inside a segment
    for b in range(NB):
        seg = b * Lp4
        cb = b * Lo
        for ki, off in enumerate((0, OC, 1, OC + 1, 2)):
            x2_ref[ki * C3p:(ki + 1) * C3p, cb:cb + Lo] = \
                cat_ref[:, seg + off:seg + off + Lo]
        x2_ref[5 * C3p:5 * C3p + C1p, cb:cb + Lo] = xe_ref[b, :, 2:2 + Lo]

    incep = _leaky(mm(wc2_ref[...], x2_ref[0:5 * C3p, :]) + bc2_ref[...])
    cv = jnp.maximum(mm(wcv_ref[...], x2_ref[5 * C3p:5 * C3p + C1p, :])
                     + bcv_ref[...], 0.0)
    res = incep + cv                                                # (C2p, NB*Lo)

    for b in range(NB):
        o_ref[b] = res[:, b * Lo:(b + 1) * Lo]


# --------------------------------------------------------------------------
# Glue: parameter init, BN folding, weight packing, pallas_call wrapper.
# --------------------------------------------------------------------------
def init_params(key, c1, c2):
    keys = iter(jax.random.split(key, 40))

    def conv_w(co, ci, k):
        return 0.3 * jax.random.normal(next(keys), (co, ci, k), jnp.float32)

    def bn(c):
        return (1.0 + 0.1 * jax.random.normal(next(keys), (c,), jnp.float32),  # gamma
                0.1 * jax.random.normal(next(keys), (c,), jnp.float32),        # beta
                0.1 * jax.random.normal(next(keys), (c,), jnp.float32),        # running_mean
                0.5 + jax.random.uniform(next(keys), (c,), jnp.float32))       # running_var

    c3 = 3 * c1
    inter = max(c3 // 4, 16)
    return dict(
        conv1_w=conv_w(c1, c1, 5), conv1_bn=bn(c1),
        conv2_w=conv_w(c1, c1, 7), conv2_bn=bn(c1),
        conv3_w=conv_w(c1, c1, 9), conv3_bn=bn(c1),
        fc1_w=conv_w(inter, c3, 1), fc1_bn=bn(inter),
        fc2_w=conv_w(c3, inter, 1), fc2_bn=bn(c3),
        conv_2_w=conv_w(c2, c3, 5), conv_2_bn=bn(c2),
        cv_w=conv_w(c2, c1, 1),
        cv_b=0.1 * jax.random.normal(next(keys), (c2,), jnp.float32),
        cv_bn=bn(c2),
    )
    # TODO(synk): nn.Linear(510, 1) and nn.Dropout(0.3) exist in __init__ but are
    # never used in forward(), so they are intentionally not materialized.


def fold_conv_bn(w, bn_params, conv_bias=None):
    gamma, beta, mean, var = bn_params
    scale = gamma / jnp.sqrt(var + BN_EPS)        # (Co,)
    w_f = w * scale[:, None, None]                # (Co, Ci, K)
    b = beta - scale * mean
    if conv_bias is not None:
        b = b + scale * conv_bias
    return w_f, b                                 # bias (Co,)


def bottleneck_forward(x, params, target_lanes=256):
    N, c1, L = x.shape
    c2 = params['conv_2_w'].shape[0]
    inter = params['fc1_w'].shape[0]
    Lo = (L - 1) // 2 + 1            # conv_2 & cv output length (== #even positions)
    LE = (L + 8 + 1) // 2            # even lanes of the 4-padded signal
    LOd = (L + 8) // 2               # odd lanes of the 4-padded signal

    # Channel padding: sublane / MXU friendly sizes.
    C1p = _round_up(c1, 16)
    C2p = _round_up(c2, 8)
    C3p = 3 * C1p
    INTp = _round_up(inter, 8)

    # ---- Fold eval-mode BN into conv weights.
    w1, b1 = fold_conv_bn(params['conv1_w'], params['conv1_bn'])
    w2, b2 = fold_conv_bn(params['conv2_w'], params['conv2_bn'])
    w3, b3 = fold_conv_bn(params['conv3_w'], params['conv3_bn'])
    wf1, bf1 = fold_conv_bn(params['fc1_w'], params['fc1_bn'])
    wf2, bf2 = fold_conv_bn(params['fc2_w'], params['fc2_bn'])
    wc2, bc2 = fold_conv_bn(params['conv_2_w'], params['conv_2_bn'])
    wcv, bcv = fold_conv_bn(params['cv_w'], params['cv_bn'], conv_bias=params['cv_b'])

    # ---- Fused conv1/conv2/conv3 weight (3C1p, 9C1p).  im2col tap j holds
    # x_pad[t + j]; a "same" conv with kernel k uses taps j = ki + (9 - k)//2.
    # Real channels live in the first c1 rows/cols of each padded block.
    wbig = jnp.zeros((C3p, 9 * C1p), jnp.float32)
    bcat = jnp.zeros((C3p, 1), jnp.float32)
    for br, (w, bb, k) in enumerate(((w1, b1, 5), (w2, b2, 7), (w3, b3, 9))):
        off = (9 - k) // 2
        for ki in range(k):
            wbig = wbig.at[br * C1p:br * C1p + c1,
                           (ki + off) * C1p:(ki + off) * C1p + c1].set(w[:, :, ki])
        bcat = bcat.at[br * C1p:br * C1p + c1, 0].set(bb)

    # ---- SE (ConvAttention) weights remapped to the padded channel layout.
    wf1m = jnp.zeros((INTp, C3p), jnp.float32)
    bf1m = jnp.zeros((INTp, 1), jnp.float32).at[:inter, 0].set(bf1)
    wf2m = jnp.zeros((C3p, INTp), jnp.float32)
    bf2m = jnp.zeros((C3p, 1), jnp.float32)
    for br in range(3):
        wf1m = wf1m.at[:inter, br * C1p:br * C1p + c1].set(
            wf1[:, br * c1:(br + 1) * c1, 0])
        wf2m = wf2m.at[br * C1p:br * C1p + c1, :inter].set(
            wf2[br * c1:(br + 1) * c1, :, 0])
        bf2m = bf2m.at[br * C1p:br * C1p + c1, 0].set(bf2[br * c1:(br + 1) * c1])

    # ---- conv_2 taps flattened to (C2p, 5*3C1p); tap ki multiplies x_cat[2t+ki-2].
    wc2m = jnp.zeros((C2p, 5 * C3p), jnp.float32)
    bc2m = jnp.zeros((C2p, 1), jnp.float32).at[:c2, 0].set(bc2)
    for ki in range(5):
        for br in range(3):
            wc2m = wc2m.at[:c2, ki * C3p + br * C1p:ki * C3p + br * C1p + c1].set(
                wc2[:, br * c1:(br + 1) * c1, ki])

    wcvm = jnp.zeros((C2p, C1p), jnp.float32).at[:c2, :c1].set(wcv[:, :, 0])
    bcvm = jnp.zeros((C2p, 1), jnp.float32).at[:c2, 0].set(bcv)

    # ---- batch grouping: target lane-dense matmuls, cap by a VMEM budget.
    def vmem_bytes(nb):
        scratch = (9 * C1p * nb * L + C3p * nb * (L + 4)
                   + (5 * C3p + C1p) * nb * Lo) * 2
        io = 2 * nb * C1p * (LE + LOd) * 2 + 2 * nb * C2p * Lo * 4
        weights = 2 * ((C3p * 9 * C1p + C2p * 5 * C3p + C2p * C1p) * 2
                       + (2 * INTp * C3p + 2 * C3p + INTp + 2 * C2p) * 4)
        temps = (2 * C3p * nb * L + 3 * C2p * nb * Lo) * 4
        return scratch + io + weights + temps

    NB = max(1, min(N, -(-target_lanes // Lo)))
    while NB > 1 and vmem_bytes(NB) > 40 * 2**20:   # stay well under v7x's 64 MiB
        NB -= 1
    NG = -(-N // NB)
    Np = NG * NB

    # ---- inputs: pad batch & channels, pad time by 4 each side, de-interleave.
    xp = jnp.pad(x, ((0, Np - N), (0, C1p - c1), (4, 4)))
    xE = xp[:, :, 0::2].astype(jnp.bfloat16)        # (Np, C1p, LE)
    xO = xp[:, :, 1::2].astype(jnp.bfloat16)        # (Np, C1p, LOd)

    consts = (wbig.astype(jnp.bfloat16), bcat,
              wf1m, bf1m, wf2m, bf2m,
              wc2m.astype(jnp.bfloat16), bc2m,
              wcvm.astype(jnp.bfloat16), bcvm)

    def cspec(a):
        return pl.BlockSpec(a.shape, lambda g: (0, 0))

    vmem_limit = int(min(64 * 2**20, max(32 * 2**20, 2 * vmem_bytes(NB))))

    out = pl.pallas_call(
        bottleneck_kernel,
        out_shape=jax.ShapeDtypeStruct((Np, C2p, Lo), jnp.float32),
        grid=(NG,),
        in_specs=[pl.BlockSpec((NB, C1p, LE), lambda g: (g, 0, 0)),
                  pl.BlockSpec((NB, C1p, LOd), lambda g: (g, 0, 0))]
                 + [cspec(a) for a in consts],
        out_specs=pl.BlockSpec((NB, C2p, Lo), lambda g: (g, 0, 0)),
        scratch_shapes=[pltpu.VMEM((9 * C1p, NB * L), jnp.bfloat16),
                        pltpu.VMEM((C3p, NB * (L + 4)), jnp.bfloat16),
                        pltpu.VMEM((5 * C3p + C1p, NB * Lo), jnp.bfloat16)],
        compiler_params=pltpu.CompilerParams(
            dimension_semantics=("parallel",),
            vmem_limit_bytes=vmem_limit),
    )(xE, xO, *consts)

    return out[:N, :c2]


# --------------------------------------------------------------------------
# Pure-JAX f32 reference (mirrors the PyTorch forward, eval-mode BN).
# --------------------------------------------------------------------------
def reference_forward(x, p):
    PH = lax.Precision.HIGHEST

    def conv1d(x, w, s, pad, bias=None):
        y = lax.conv_general_dilated(x, w, (s,), [(pad, pad)],
                                     dimension_numbers=('NCH', 'OIH', 'NCH'),
                                     precision=PH)
        if bias is not None:
            y = y + bias[None, :, None]
        return y

    def bn(x, bnp):
        g, b, m, v = bnp
        return (x - m[None, :, None]) * (g / jnp.sqrt(v + BN_EPS))[None, :, None] \
            + b[None, :, None]

    def conv_block(x, w, bnp, s, pad):
        return _leaky(bn(conv1d(x, w, s, pad), bnp))

    x1 = conv_block(x, p['conv1_w'], p['conv1_bn'], 1, 2)
    x2 = conv_block(x, p['conv2_w'], p['conv2_bn'], 1, 3)
    x3 = conv_block(x, p['conv3_w'], p['conv3_bn'], 1, 4)
    x_2 = jnp.concatenate([x1, x2, x3], axis=1)
    y = jnp.mean(x_2, axis=-1, keepdims=True)                  # adaptive_avg_pool1d
    y = conv_block(y, p['fc1_w'], p['fc1_bn'], 1, 0)
    y = conv_block(y, p['fc2_w'], p['fc2_bn'], 1, 0)
    y = 1.0 / (1.0 + jnp.exp(-y))
    x_2 = y * x_2
    incep = conv_block(x_2, p['conv_2_w'], p['conv_2_bn'], 2, 2)
    cv = jnp.maximum(bn(conv1d(x, p['cv_w'], 2, 0, bias=p['cv_b']), p['cv_bn']), 0.0)
    return incep + cv


if __name__ == "__main__":
    key = jax.random.PRNGKey(0)
    kx, kp = jax.random.split(key)

    N, c1, c2, L = 4, 4, 8, 16
    x = jax.random.normal(kx, (N, c1, L), jnp.float32)
    params = init_params(kp, c1, c2)

    fwd = jax.jit(bottleneck_forward)
    out = jax.block_until_ready(fwd(x, params))

    ref = reference_forward(x, params)
    assert out.shape == ref.shape == (N, c2, (L - 1) // 2 + 1)
    err = float(jnp.max(jnp.abs(out - ref)))
    # bf16 MXU operands with f32 accumulation (exact sigmoid): tolerance is well
    # above f32 round-off but far below any structural-error signal (~0.3+).
    assert err < 1e-1, f"max abs err {err}"
    print("KERNEL_OK")
</pallas_src>

<mosaic_0001>
module attributes {stable_mosaic.version = 11 : i64} {
  func.func @bottleneck_kernel(%arg0: i32, %arg1: memref<4x16x12xbf16, #tpu.memory_space<vmem>>, %arg2: memref<4x16x12xbf16, #tpu.memory_space<vmem>>, %arg3: memref<48x144xbf16, #tpu.memory_space<vmem>>, %arg4: memref<48x1xf32, #tpu.memory_space<vmem>>, %arg5: memref<16x48xf32, #tpu.memory_space<vmem>>, %arg6: memref<16x1xf32, #tpu.memory_space<vmem>>, %arg7: memref<48x16xf32, #tpu.memory_space<vmem>>, %arg8: memref<48x1xf32, #tpu.memory_space<vmem>>, %arg9: memref<8x240xbf16, #tpu.memory_space<vmem>>, %arg10: memref<8x1xf32, #tpu.memory_space<vmem>>, %arg11: memref<8x16xbf16, #tpu.memory_space<vmem>>, %arg12: memref<8x1xf32, #tpu.memory_space<vmem>>, %arg13: memref<4x8x8xf32, #tpu.memory_space<vmem>>, %arg14: memref<144x64xbf16, #tpu.memory_space<vmem>>, %arg15: memref<48x80xbf16, #tpu.memory_space<vmem>>, %arg16: memref<256x32xbf16, #tpu.memory_space<vmem>>) attributes {dimension_semantics = [#tpu.dimension_semantics<parallel>], iteration_bounds = array<i64: 1>, scalar_prefetch = 0 : i64, scratch_operands = 3 : i64, tpu.core_type = #tpu.core_type<tc>, window_params = [{transform_indices = @transform_0, window_bounds = array<i64: 4, 16, 12>}, {transform_indices = @transform_1, window_bounds = array<i64: 4, 16, 12>}, {pipeline_mode = #tpu.pipeline_mode<synchronous>, transform_indices = @transform_2, window_bounds = array<i64: 48, 144>}, {pipeline_mode = #tpu.pipeline_mode<synchronous>, transform_indices = @transform_3, window_bounds = array<i64: 48, 1>}, {pipeline_mode = #tpu.pipeline_mode<synchronous>, transform_indices = @transform_4, window_bounds = array<i64: 16, 48>}, {pipeline_mode = #tpu.pipeline_mode<synchronous>, transform_indices = @transform_5, window_bounds = array<i64: 16, 1>}, {pipeline_mode = #tpu.pipeline_mode<synchronous>, transform_indices = @transform_6, window_bounds = array<i64: 48, 16>}, {pipeline_mode = #tpu.pipeline_mode<synchronous>, transform_indices = @transform_7, window_bounds = array<i64: 48, 1>}, {pipeline_mode = #tpu.pipeline_mode<synchronous>, transform_indices = @transform_8, window_bounds = array<i64: 8, 240>}, {pipeline_mode = #tpu.pipeline_mode<synchronous>, transform_indices = @transform_9, window_bounds = array<i64: 8, 1>}, {pipeline_mode = #tpu.pipeline_mode<synchronous>, transform_indices = @transform_10, window_bounds = array<i64: 8, 16>}, {pipeline_mode = #tpu.pipeline_mode<synchronous>, transform_indices = @transform_11, window_bounds = array<i64: 8, 1>}, {transform_indices = @transform_12, window_bounds = array<i64: 4, 8, 8>}]} {
    %c0 = arith.constant 0 : index
    %c0_0 = arith.constant 0 : index
    %c0_1 = arith.constant 0 : index
    %0 = vector.load %arg1[%c0, %c0_0, %c0_1] : memref<4x16x12xbf16, #tpu.memory_space<vmem>>, vector<1x16x8xbf16>
    %1 = vector.shape_cast %0 : vector<1x16x8xbf16> to vector<16x8xbf16>
    %c0_2 = arith.constant 0 : index
    %c0_3 = arith.constant 0 : index
    %2 = vector.load %arg14[%c0_2, %c0_3] : memref<144x64xbf16, #tpu.memory_space<vmem>>, vector<16x8xbf16>
    tpu.vector_store %arg14[%c0_2, %c0_3], %1 {strides = array<i32>} : memref<144x64xbf16, #tpu.memory_space<vmem>>, vector<16x8xbf16>,
    %c0_4 = arith.constant 0 : index
    %c0_5 = arith.constant 0 : index
    %c0_6 = arith.constant 0 : index
    %3 = vector.load %arg2[%c0_4, %c0_5, %c0_6] : memref<4x16x12xbf16, #tpu.memory_space<vmem>>, vector<1x16x8xbf16>
    %4 = vector.shape_cast %3 : vector<1x16x8xbf16> to vector<16x8xbf16>
    %c0_7 = arith.constant 0 : index
    %c8 = arith.constant 8 : index
    %5 = vector.load %arg14[%c0_7, %c8] : memref<144x64xbf16, #tpu.memory_space<vmem>>, vector<16x8xbf16>
    tpu.vector_store %arg14[%c0_7, %c8], %4 {strides = array<i32>} : memref<144x64xbf16, #tpu.memory_space<vmem>>, vector<16x8xbf16>,
    %c0_8 = arith.constant 0 : index
    %c0_9 = arith.constant 0 : index
    %c0_10 = arith.constant 0 : index
    %6 = vector.load %arg2[%c0_8, %c0_9, %c0_10] : memref<4x16x12xbf16, #tpu.memory_space<vmem>>, vector<1x16x8xbf16>
    %7 = vector.shape_cast %6 : vector<1x16x8xbf16> to vector<16x8xbf16>
    %c16 = arith.constant 16 : index
    %c0_11 = arith.constant 0 : index
    %8 = vector.load %arg14[%c16, %c0_11] : memref<144x64xbf16, #tpu.memory_space<vmem>>, vector<16x8xbf16>
    tpu.vector_store %arg14[%c16, %c0_11], %7 {strides = array<i32>} : memref<144x64xbf16, #tpu.memory_space<vmem>>, vector<16x8xbf16>,
    %c0_12 = arith.constant 0 : index
    %c0_13 = arith.constant 0 : index
    %c1 = arith.constant 1 : index
    %9 = vector.load %arg1[%c0_12, %c0_13, %c1] : memref<4x16x12xbf16, #tpu.memory_space<vmem>>, vector<1x16x8xbf16>
    %10 = vector.shape_cast %9 : vector<1x16x8xbf16> to vector<16x8xbf16>
    %c16_14 = arith.constant 16 : index
    %c8_15 = arith.constant 8 : index
    %11 = vector.load %arg14[%c16_14, %c8_15] : memref<144x64xbf16, #tpu.memory_space<vmem>>, vector<16x8xbf16>
    tpu.vector_store %arg14[%c16_14, %c8_15], %10 {strides = array<i32>} : memref<144x64xbf16, #tpu.memory_space<vmem>>, vector<16x8xbf16>,
    %c0_16 = arith.constant 0 : index
    %c0_17 = arith.constant 0 : index
    %c1_18 = arith.constant 1 : index
    %12 = vector.load %arg1[%c0_16, %c0_17, %c1_18] : memref<4x16x12xbf16, #tpu.memory_space<vmem>>, vector<1x16x8xbf16>
    %13 = vector.shape_cast %12 : vector<1x16x8xbf16> to vector<16x8xbf16>
    %c32 = arith.constant 32 : index
    %c0_19 = arith.constant 0 : index
    %14 = vector.load %arg14[%c32, %c0_19] : memref<144x64xbf16, #tpu.memory_space<vmem>>, vector<16x8xbf16>
    tpu.vector_store %arg14[%c32, %c0_19], %13 {strides = array<i32>} : memref<144x64xbf16, #tpu.memory_space<vmem>>, vector<16x8xbf16>,
    %c0_20 = arith.constant 0 : index
    %c0_21 = arith.constant 0 : index
    %c1_22 = arith.constant 1 : index
    %15 = vector.load %arg2[%c0_20, %c0_21, %c1_22] : memref<4x16x12xbf16, #tpu.memory_space<vmem>>, vector<1x16x8xbf16>
    %16 = vector.shape_cast %15 : vector<1x16x8xbf16> to vector<16x8xbf16>
    %c32_23 = arith.constant 32 : index
    %c8_24 = arith.constant 8 : index
    %17 = vector.load %arg14[%c32_23, %c8_24] : memref<144x64xbf16, #tpu.memory_space<vmem>>, vector<16x8xbf16>
    tpu.vector_store %arg14[%c32_23, %c8_24], %16 {strides = array<i32>} : memref<144x64xbf16, #tpu.memory_space<vmem>>, vector<16x8xbf16>,
    %c0_25 = arith.constant 0 : index
    %c0_26 = arith.constant 0 : index
    %c1_27 = arith.constant 1 : index
    %18 = vector.load %arg2[%c0_25, %c0_26, %c1_27] : memref<4x16x12xbf16, #tpu.memory_space<vmem>>, vector<1x16x8xbf16>
    %19 = vector.shape_cast %18 : vector<1x16x8xbf16> to vector<16x8xbf16>
    %c48 = arith.constant 48 : index
    %c0_28 = arith.constant 0 : index
    %20 = vector.load %arg14[%c48, %c0_28] : memref<144x64xbf16, #tpu.memory_space<vmem>>, vector<16x8xbf16>
    tpu.vector_store %arg14[%c48, %c0_28], %19 {strides = array<i32>} : memref<144x64xbf16, #tpu.memory_space<vmem>>, vector<16x8xbf16>,
    %c0_29 = arith.constant 0 : index
    %c0_30 = arith.constant 0 : index
    %c2 = arith.constant 2 : index
    %21 = vector.load %arg1[%c0_29, %c0_30, %c2] : memref<4x16x12xbf16, #tpu.memory_space<vmem>>, vector<1x16x8xbf16>
    %22 = vector.shape_cast %21 : vector<1x16x8xbf16> to vector<16x8xbf16>
    %c48_31 = arith.constant 48 : index
    %c8_32 = arith.constant 8 : index
    %23 = vector.load %arg14[%c48_31, %c8_32] : memref<144x64xbf16, #tpu.memory_space<vmem>>, vector<16x8xbf16>
    tpu.vector_store %arg14[%c48_31, %c8_32], %22 {strides = array<i32>} : memref<144x64xbf16, #tpu.memory_space<vmem>>, vector<16x8xbf16>,
    %c0_33 = arith.constant 0 : index
    %c0_34 = arith.constant 0 : index
    %c2_35 = arith.constant 2 : index
    %24 = vector.load %arg1[%c0_33, %c0_34, %c2_35] : memref<4x16x12xbf16, #tpu.memory_space<vmem>>, vector<1x16x8xbf16>
    %25 = vector.shape_cast %24 : vector<1x16x8xbf16> to vector<16x8xbf16>
    %c64 = arith.constant 64 : index
    %c0_36 = arith.constant 0 : index
    %26 = vector.load %arg14[%c64, %c0_36] : memref<144x64xbf16, #tpu.memory_space<vmem>>, vector<16x8xbf16>
    tpu.vector_store %arg14[%c64, %c0_36], %25 {strides = array<i32>} : memref<144x64xbf16, #tpu.memory_space<vmem>>, vector<16x8xbf16>,
    %c0_37 = arith.constant 0 : index
    %c0_38 = arith.constant 0 : index
    %c2_39 = arith.constant 2 : index
    %27 = vector.load %arg2[%c0_37, %c0_38, %c2_39] : memref<4x16x12xbf16, #tpu.memory_space<vmem>>, vector<1x16x8xbf16>
    %28 = vector.shape_cast %27 : vector<1x16x8xbf16> to vector<16x8xbf16>
    %c64_40 = arith.constant 64 : index
    %c8_41 = arith.constant 8 : index
    %29 = vector.load %arg14[%c64_40, %c8_41] : memref<144x64xbf16, #tpu.memory_space<vmem>>, vector<16x8xbf16>
    tpu.vector_store %arg14[%c64_40, %c8_41], %28 {strides = array<i32>} : memref<144x64xbf16, #tpu.memory_space<vmem>>, vector<16x8xbf16>,
    %c0_42 = arith.constant 0 : index
    %c0_43 = arith.constant 0 : index
    %c2_44 = arith.constant 2 : index
    %30 = vector.load %arg2[%c0_42, %c0_43, %c2_44] : memref<4x16x12xbf16, #tpu.memory_space<vmem>>, vector<1x16x8xbf16>
    %31 = vector.shape_cast %30 : vector<1x16x8xbf16> to vector<16x8xbf16>
    %c80 = arith.constant 80 : index
    %c0_45 = arith.constant 0 : index
    %32 = vector.load %arg14[%c80, %c0_45] : memref<144x64xbf16, #tpu.memory_space<vmem>>, vector<16x8xbf16>
    tpu.vector_store %arg14[%c80, %c0_45], %31 {strides = array<i32>} : memref<144x64xbf16, #tpu.memory_space<vmem>>, vector<16x8xbf16>,
    %c0_46 = arith.constant 0 : index
    %c0_47 = arith.constant 0 : index
    %c3 = arith.constant 3 : index
    %33 = vector.load %arg1[%c0_46, %c0_47, %c3] : memref<4x16x12xbf16, #tpu.memory_space<vmem>>, vector<1x16x8xbf16>
    %34 = vector.shape_cast %33 : vector<1x16x8xbf16> to vector<16x8xbf16>
    %c80_48 = arith.constant 80 : index
    %c8_49 = arith.constant 8 : index
    %35 = vector.load %arg14[%c80_48, %c8_49] : memref<144x64xbf16, #tpu.memory_space<vmem>>, vector<16x8xbf16>
    tpu.vector_store %arg14[%c80_48, %c8_49], %34 {strides = array<i32>} : memref<144x64xbf16, #tpu.memory_space<vmem>>, vector<16x8xbf16>,
    %c0_50 = arith.constant 0 : index
    %c0_51 = arith.constant 0 : index
    %c3_52 = arith.constant 3 : index
    %36 = vector.load %arg1[%c0_50, %c0_51, %c3_52] : memref<4x16x12xbf16, #tpu.memory_space<vmem>>, vector<1x16x8xbf16>
    %37 = vector.shape_cast %36 : vector<1x16x8xbf16> to vector<16x8xbf16>
    %c96 = arith.constant 96 : index
    %c0_53 = arith.constant 0 : index
    %38 = vector.load %arg14[%c96, %c0_53] : memref<144x64xbf16, #tpu.memory_space<vmem>>, vector<16x8xbf16>
    tpu.vector_store %arg14[%c96, %c0_53], %37 {strides = array<i32>} : memref<144x64xbf16, #tpu.memory_space<vmem>>, vector<16x8xbf16>,
    %c0_54 = arith.constant 0 : index
    %c0_55 = arith.constant 0 : index
    %c3_56 = arith.constant 3 : index
    %39 = vector.load %arg2[%c0_54, %c0_55, %c3_56] : memref<4x16x12xbf16, #tpu.memory_space<vmem>>, vector<1x16x8xbf16>
    %40 = vector.shape_cast %39 : vector<1x16x8xbf16> to vector<16x8xbf16>
    %c96_57 = arith.constant 96 : index
    %c8_58 = arith.constant 8 : index
    %41 = vector.load %arg14[%c96_57, %c8_58] : memref<144x64xbf16, #tpu.memory_space<vmem>>, vector<16x8xbf16>
    tpu.vector_store %arg14[%c96_57, %c8_58], %40 {strides = array<i32>} : memref<144x64xbf16, #tpu.memory_space<vmem>>, vector<16x8xbf16>,
    %c0_59 = arith.constant 0 : index
    %c0_60 = arith.constant 0 : index
    %c3_61 = arith.constant 3 : index
    %42 = vector.load %arg2[%c0_59, %c0_60, %c3_61] : memref<4x16x12xbf16, #tpu.memory_space<vmem>>, vector<1x16x8xbf16>
    %43 = vector.shape_cast %42 : vector<1x16x8xbf16> to vector<16x8xbf16>
    %c112 = arith.constant 112 : index
    %c0_62 = arith.constant 0 : index
    %44 = vector.load %arg14[%c112, %c0_62] : memref<144x64xbf16, #tpu.memory_space<vmem>>, vector<16x8xbf16>
    tpu.vector_store %arg14[%c112, %c0_62], %43 {strides = array<i32>} : memref<144x64xbf16, #tpu.memory_space<vmem>>, vector<16x8xbf16>,
    %c0_63 = arith.constant 0 : index
    %c0_64 = arith.constant 0 : index
    %c4 = arith.constant 4 : index
    %45 = vector.load %arg1[%c0_63, %c0_64, %c4] : memref<4x16x12xbf16, #tpu.memory_space<vmem>>, vector<1x16x8xbf16>
    %46 = vector.shape_cast %45 : vector<1x16x8xbf16> to vector<16x8xbf16>
    %c112_65 = arith.constant 112 : index
    %c8_66 = arith.constant 8 : index
    %47 = vector.load %arg14[%c112_65, %c8_66] : memref<144x64xbf16, #tpu.memory_space<vmem>>, vector<16x8xbf16>
    tpu.vector_store %arg14[%c112_65, %c8_66], %46 {strides = array<i32>} : memref<144x64xbf16, #tpu.memory_space<vmem>>, vector<16x8xbf16>,
    %c0_67 = arith.constant 0 : index
    %c0_68 = arith.constant 0 : index
    %c4_69 = arith.constant 4 : index
    %48 = vector.load %arg1[%c0_67, %c0_68, %c4_69] : memref<4x16x12xbf16, #tpu.memory_space<vmem>>, vector<1x16x8xbf16>
    %49 = vector.shape_cast %48 : vector<1x16x8xbf16> to vector<16x8xbf16>
    %c128 = arith.constant 128 : index
    %c0_70 = arith.constant 0 : index
    %50 = vector.load %arg14[%c128, %c0_70] : memref<144x64xbf16, #tpu.memory_space<vmem>>, vector<16x8xbf16>
    tpu.vector_store %arg14[%c128, %c0_70], %49 {strides = array<i32>} : memref<144x64xbf16, #tpu.memory_space<vmem>>, vector<16x8xbf16>,
    %c0_71 = arith.constant 0 : index
    %c0_72 = arith.constant 0 : index
    %c4_73 = arith.constant 4 : index
    %51 = vector.load %arg2[%c0_71, %c0_72, %c4_73] : memref<4x16x12xbf16, #tpu.memory_space<vmem>>, vector<1x16x8xbf16>
    %52 = vector.shape_cast %51 : vector<1x16x8xbf16> to vector<16x8xbf16>
    %c128_74 = arith.constant 128 : index
    %c8_75 = arith.constant 8 : index
    %53 = vector.load %arg14[%c128_74, %c8_75] : memref<144x64xbf16, #tpu.memory_space<vmem>>, vector<16x8xbf16>
    tpu.vector_store %arg14[%c128_74, %c8_75], %52 {strides = array<i32>} : memref<144x64xbf16, #tpu.memory_space<vmem>>, vector<16x8xbf16>,
    %c1_76 = arith.constant 1 : index
    %c0_77 = arith.constant 0 : index
    %c0_78 = arith.constant 0 : index
    %54 = vector.load %arg1[%c1_76, %c0_77, %c0_78] : memref<4x16x12xbf16, #tpu.memory_space<vmem>>, vector<1x16x8xbf16>
    %55 = vector.shape_cast %54 : vector<1x16x8xbf16> to vector<16x8xbf16>
    %c0_79 = arith.constant 0 : index
    %c16_80 = arith.constant 16 : index
    %56 = vector.load %arg14[%c0_79, %c16_80] : memref<144x64xbf16, #tpu.memory_space<vmem>>, vector<16x8xbf16>
    tpu.vector_store %arg14[%c0_79, %c16_80], %55 {strides = array<i32>} : memref<144x64xbf16, #tpu.memory_space<vmem>>, vector<16x8xbf16>,
    %c1_81 = arith.constant 1 : index
    %c0_82 = arith.constant 0 : index
    %c0_83 = arith.constant 0 : index
    %57 = vector.load %arg2[%c1_81, %c0_82, %c0_83] : memref<4x16x12xbf16, #tpu.memory_space<vmem>>, vector<1x16x8xbf16>
    %58 = vector.shape_cast %57 : vector<1x16x8xbf16> to vector<16x8xbf16>
    %c0_84 = arith.constant 0 : index
    %c24 = arith.constant 24 : index
    %59 = vector.load %arg14[%c0_84, %c24] : memref<144x64xbf16, #tpu.memory_space<vmem>>, vector<16x8xbf16>
    tpu.vector_store %arg14[%c0_84, %c24], %58 {strides = array<i32>} : memref<144x64xbf16, #tpu.memory_space<vmem>>, vector<16x8xbf16>,
    %c1_85 = arith.constant 1 : index
    %c0_86 = arith.constant 0 : index
    %c0_87 = arith.constant 0 : index
    %60 = vector.load %arg2[%c1_85, %c0_86, %c0_87] : memref<4x16x12xbf16, #tpu.memory_space<vmem>>, vector<1x16x8xbf16>
    %61 = vector.shape_cast %60 : vector<1x16x8xbf16> to vector<16x8xbf16>
    %c16_88 = arith.constant 16 : index
    %c16_89 = arith.constant 16 : index
    %62 = vector.load %arg14[%c16_88, %c16_89] : memref<144x64xbf16, #tpu.memory_space<vmem>>, vector<16x8xbf16>
    tpu.vector_store %arg14[%c16_88, %c16_89], %61 {strides = array<i32>} : memref<144x64xbf16, #tpu.memory_space<vmem>>, vector<16x8xbf16>,
    %c1_90 = arith.constant 1 : index
    %c0_91 = arith.constant 0 : index
    %c1_92 = arith.constant 1 : index
    %63 = vector.load %arg1[%c1_90, %c0_91, %c1_92] : memref<4x16x12xbf16, #tpu.memory_space<vmem>>, vector<1x16x8xbf16>
    %64 = vector.shape_cast %63 : vector<1x16x8xbf16> to vector<16x8xbf16>
    %c16_93 = arith.constant 16 : index
    %c24_94 = arith.constant 24 : index
    %65 = vector.load %arg14[%c16_93, %c24_94] : memref<144x64xbf16, #tpu.memory_space<vmem>>, vector<16x8xbf16>
    tpu.vector_store %arg14[%c16_93, %c24_94], %64 {strides = array<i32>} : memref<144x64xbf16, #tpu.memory_space<vmem>>, vector<16x8xbf16>,
    %c1_95 = arith.constant 1 : index
    %c0_96 = arith.constant 0 : index
    %c1_97 = arith.constant 1 : index
    %66 = vector.load %arg1[%c1_95, %c0_96, %c1_97] : memref<4x16x12xbf16, #tpu.memory_space<vmem>>, vector<1x16x8xbf16>
    %67 = vector.shape_cast %66 : vector<1x16x8xbf16> to vector<16x8xbf16>
    %c32_98 = arith.constant 32 : index
    %c16_99 = arith.constant 16 : index
    %68 = vector.load %arg14[%c32_98, %c16_99] : memref<144x64xbf16, #tpu.memory_space<vmem>>, vector<16x8xbf16>
    tpu.vector_store %arg14[%c32_98, %c16_99], %67 {strides = array<i32>} : memref<144x64xbf16, #tpu.memory_space<vmem>>, vector<16x8xbf16>,
    %c1_100 = arith.constant 1 : index
    %c0_101 = arith.constant 0 : index
    %c1_102 = arith.constant 1 : index
    %69 = vector.load %arg2[%c1_100, %c0_101, %c1_102] : memref<4x16x12xbf16, #tpu.memory_space<vmem>>, vector<1x16x8xbf16>
    %70 = vector.shape_cast %69 : vector<1x16x8xbf16> to vector<16x8xbf16>
    %c32_103 = arith.constant 32 : index
    %c24_104 = arith.constant 24 : index
    %71 = vector.load %arg14[%c32_103, %c24_104] : memref<144x64xbf16, #tpu.memory_space<vmem>>, vector<16x8xbf16>
    tpu.vector_store %arg14[%c32_103, %c24_104], %70 {strides = array<i32>} : memref<144x64xbf16, #tpu.memory_space<vmem>>, vector<16x8xbf16>,
    %c1_105 = arith.constant 1 : index
    %c0_106 = arith.constant 0 : index
    %c1_107 = arith.constant 1 : index
    %72 = vector.load %arg2[%c1_105, %c0_106, %c1_107] : memref<4x16x12xbf16, #tpu.memory_space<vmem>>, vector<1x16x8xbf16>
    %73 = vector.shape_cast %72 : vector<1x16x8xbf16> to vector<16x8xbf16>
    %c48_108 = arith.constant 48 : index
    %c16_109 = arith.constant 16 : index
    %74 = vector.load %arg14[%c48_108, %c16_109] : memref<144x64xbf16, #tpu.memory_space<vmem>>, vector<16x8xbf16>
    tpu.vector_store %arg14[%c48_108, %c16_109], %73 {strides = array<i32>} : memref<144x64xbf16, #tpu.memory_space<vmem>>, vector<16x8xbf16>,
    %c1_110 = arith.constant 1 : index
    %c0_111 = arith.constant 0 : index
    %c2_112 = arith.constant 2 : index
    %75 = vector.load %arg1[%c1_110, %c0_111, %c2_112] : memref<4x16x12xbf16, #tpu.memory_space<vmem>>, vector<1x16x8xbf16>
    %76 = vector.shape_cast %75 : vector<1x16x8xbf16> to vector<16x8xbf16>
    %c48_113 = arith.constant 48 : index
    %c24_114 = arith.constant 24 : index
    %77 = vector.load %arg14[%c48_113, %c24_114] : memref<144x64xbf16, #tpu.memory_space<vmem>>, vector<16x8xbf16>
    tpu.vector_store %arg14[%c48_113, %c24_114], %76 {strides = array<i32>} : memref<144x64xbf16, #tpu.memory_space<vmem>>, vector<16x8xbf16>,
    %c1_115 = arith.constant 1 : index
    %c0_116 = arith.constant 0 : index
    %c2_117 = arith.constant 2 : index
    %78 = vector.load %arg1[%c1_115, %c0_116, %c2_117] : memref<4x16x12xbf16, #tpu.memory_space<vmem>>, vector<1x16x8xbf16>
    %79 = vector.shape_cast %78 : vector<1x16x8xbf16> to vector<16x8xbf16>
    %c64_118 = arith.constant 64 : index
    %c16_119 = arith.constant 16 : index
    %80 = vector.load %arg14[%c64_118, %c16_119] : memref<144x64xbf16, #tpu.memory_space<vmem>>, vector<16x8xbf16>
    tpu.vector_store %arg14[%c64_118, %c16_119], %79 {strides = array<i32>} : memref<144x64xbf16, #tpu.memory_space<vmem>>, vector<16x8xbf16>,
    %c1_120 = arith.constant 1 : index
    %c0_121 = arith.constant 0 : index
    %c2_122 = arith.constant 2 : index
    %81 = vector.load %arg2[%c1_120, %c0_121, %c2_122] : memref<4x16x12xbf16, #tpu.memory_space<vmem>>, vector<1x16x8xbf16>
    %82 = vector.shape_cast %81 : vector<1x16x8xbf16> to vector<16x8xbf16>
    %c64_123 = arith.constant 64 : index
    %c24_124 = arith.constant 24 : index
    %83 = vector.load %arg14[%c64_123, %c24_124] : memref<144x64xbf16, #tpu.memory_space<vmem>>, vector<16x8xbf16>
    tpu.vector_store %arg14[%c64_123, %c24_124], %82 {strides = array<i32>} : memref<144x64xbf16, #tpu.memory_space<vmem>>, vector<16x8xbf16>,
    %c1_125 = arith.constant 1 : index
    %c0_126 = arith.constant 0 : index
    %c2_127 = arith.constant 2 : index
    %84 = vector.load %arg2[%c1_125, %c0_126, %c2_127] : memref<4x16x12xbf16, #tpu.memory_space<vmem>>, vector<1x16x8xbf16>
    %85 = vector.shape_cast %84 : vector<1x16x8xbf16> to vector<16x8xbf16>
    %c80_128 = arith.constant 80 : index
    %c16_129 = arith.constant 16 : index
    %86 = vector.load %arg14[%c80_128, %c16_129] : memref<144x64xbf16, #tpu.memory_space<vmem>>, vector<16x8xbf16>
    tpu.vector_store %arg14[%c80_128, %c16_129], %85 {strides = array<i32>} : memref<144x64xbf16, #tpu.memory_space<vmem>>, vector<16x8xbf16>,
    %c1_130 = arith.constant 1 : index
    %c0_131 = arith.constant 0 : index
    %c3_132 = arith.constant 3 : index
    %87 = vector.load %arg1[%c1_130, %c0_131, %c3_132] : memref<4x16x12xbf16, #tpu.memory_space<vmem>>, vector<1x16x8xbf16>
    %88 = vector.shape_cast %87 : vector<1x16x8xbf16> to vector<16x8xbf16>
    %c80_133 = arith.constant 80 : index
    %c24_134 = arith.constant 24 : index
    %89 = vector.load %arg14[%c80_133, %c24_134] : memref<144x64xbf16, #tpu.memory_space<vmem>>, vector<16x8xbf16>
    tpu.vector_store %arg14[%c80_133, %c24_134], %88 {strides = array<i32>} : memref<144x64xbf16, #tpu.memory_space<vmem>>, vector<16x8xbf16>,
    %c1_135 = arith.constant 1 : index
    %c0_136 = arith.constant 0 : index
    %c3_137 = arith.constant 3 : index
    %90 = vector.load %arg1[%c1_135, %c0_136, %c3_137] : memref<4x16x12xbf16, #tpu.memory_space<vmem>>, vector<1x16x8xbf16>
    %91 = vector.shape_cast %90 : vector<1x16x8xbf16> to vector<16x8xbf16>
    %c96_138 = arith.constant 96 : index
    %c16_139 = arith.constant 16 : index
    %92 = vector.load %arg14[%c96_138, %c16_139] : memref<144x64xbf16, #tpu.memory_space<vmem>>, vector<16x8xbf16>
    tpu.vector_store %arg14[%c96_138, %c16_139], %91 {strides = array<i32>} : memref<144x64xbf16, #tpu.memory_space<vmem>>, vector<16x8xbf16>,
    %c1_140 = arith.constant 1 : index
    %c0_141 = arith.constant 0 : index
    %c3_142 = arith.constant 3 : index
    %93 = vector.load %arg2[%c1_140, %c0_141, %c3_142] : memref<4x16x12xbf16, #tpu.memory_space<vmem>>, vector<1x16x8xbf16>
    %94 = vector.shape_cast %93 : vector<1x16x8xbf16> to vector<16x8xbf16>
    %c96_143 = arith.constant 96 : index
    %c24_144 = arith.constant 24 : index
    %95 = vector.load %arg14[%c96_143, %c24_144] : memref<144x64xbf16, #tpu.memory_space<vmem>>, vector<16x8xbf16>
    tpu.vector_store %arg14[%c96_143, %c24_144], %94 {strides = array<i32>} : memref<144x64xbf16, #tpu.memory_space<vmem>>, vector<16x8xbf16>,
    %c1_145 = arith.constant 1 : index
    %c0_146 = arith.constant 0 : index
    %c3_147 = arith.constant 3 : index
    %96 = vector.load %arg2[%c1_145, %c0_146, %c3_147] : memref<4x16x12xbf16, #tpu.memory_space<vmem>>, vector<1x16x8xbf16>
    %97 = vector.shape_cast %96 : vector<1x16x8xbf16> to vector<16x8xbf16>
    %c112_148 = arith.constant 112 : index
    %c16_149 = arith.constant 16 : index
    %98 = vector.load %arg14[%c112_148, %c16_149] : memref<144x64xbf16, #tpu.memory_space<vmem>>, vector<16x8xbf16>
    tpu.vector_store %arg14[%c112_148, %c16_149], %97 {strides = array<i32>} : memref<144x64xbf16, #tpu.memory_space<vmem>>, vector<16x8xbf16>,
    %c1_150 = arith.constant 1 : index
    %c0_151 = arith.constant 0 : index
    %c4_152 = arith.constant 4 : index
    %99 = vector.load %arg1[%c1_150, %c0_151, %c4_152] : memref<4x16x12xbf16, #tpu.memory_space<vmem>>, vector<1x16x8xbf16>
    %100 = vector.shape_cast %99 : vector<1x16x8xbf16> to vector<16x8xbf16>
    %c112_153 = arith.constant 112 : index
    %c24_154 = arith.constant 24 : index
    %101 = vector.load %arg14[%c112_153, %c24_154] : memref<144x64xbf16, #tpu.memory_space<vmem>>, vector<16x8xbf16>
    tpu.vector_store %arg14[%c112_153, %c24_154], %100 {strides = array<i32>} : memref<144x64xbf16, #tpu.memory_space<vmem>>, vector<16x8xbf16>,
    %c1_155 = arith.constant 1 : index
    %c0_156 = arith.constant 0 : index
    %c4_157 = arith.constant 4 : index
    %102 = vector.load %arg1[%c1_155, %c0_156, %c4_157] : memref<4x16x12xbf16, #tpu.memory_space<vmem>>, vector<1x16x8xbf16>
    %103 = vector.shape_cast %102 : vector<1x16x8xbf16> to vector<16x8xbf16>
    %c128_158 = arith.constant 128 : index
    %c16_159 = arith.constant 16 : index
    %104 = vector.load %arg14[%c128_158, %c16_159] : memref<144x64xbf16, #tpu.memory_space<vmem>>, vector<16x8xbf16>
    tpu.vector_store %arg14[%c128_158, %c16_159], %103 {strides = array<i32>} : memref<144x64xbf16, #tpu.memory_space<vmem>>, vector<16x8xbf16>,
    %c1_160 = arith.constant 1 : index
    %c0_161 = arith.constant 0 : index
    %c4_162 = arith.constant 4 : index
    %105 = vector.load %arg2[%c1_160, %c0_161, %c4_162] : memref<4x16x12xbf16, #tpu.memory_space<vmem>>, vector<1x16x8xbf16>
    %106 = vector.shape_cast %105 : vector<1x16x8xbf16> to vector<16x8xbf16>
    %c128_163 = arith.constant 128 : index
    %c24_164 = arith.constant 24 : index
    %107 = vector.load %arg14[%c128_163, %c24_164] : memref<144x64xbf16, #tpu.memory_space<vmem>>, vector<16x8xbf16>
    tpu.vector_store %arg14[%c128_163, %c24_164], %106 {strides = array<i32>} : memref<144x64xbf16, #tpu.memory_space<vmem>>, vector<16x8xbf16>,
    %c2_165 = arith.constant 2 : index
    %c0_166 = arith.constant 0 : index
    %c0_167 = arith.constant 0 : index
    %108 = vector.load %arg1[%c2_165, %c0_166, %c0_167] : memref<4x16x12xbf16, #tpu.memory_space<vmem>>, vector<1x16x8xbf16>
    %109 = vector.shape_cast %108 : vector<1x16x8xbf16> to vector<16x8xbf16>
    %c0_168 = arith.constant 0 : index
    %c32_169 = arith.constant 32 : index
    %110 = vector.load %arg14[%c0_168, %c32_169] : memref<144x64xbf16, #tpu.memory_space<vmem>>, vector<16x8xbf16>
    tpu.vector_store %arg14[%c0_168, %c32_169], %109 {strides = array<i32>} : memref<144x64xbf16, #tpu.memory_space<vmem>>, vector<16x8xbf16>,
    %c2_170 = arith.constant 2 : index
    %c0_171 = arith.constant 0 : index
    %c0_172 = arith.constant 0 : index
    %111 = vector.load %arg2[%c2_170, %c0_171, %c0_172] : memref<4x16x12xbf16, #tpu.memory_space<vmem>>, vector<1x16x8xbf16>
    %112 = vector.shape_cast %111 : vector<1x16x8xbf16> to vector<16x8xbf16>
    %c0_173 = arith.constant 0 : index
    %c40 = arith.constant 40 : index
    %113 = vector.load %arg14[%c0_173, %c40] : memref<144x64xbf16, #tpu.memory_space<vmem>>, vector<16x8xbf16>
    tpu.vector_store %arg14[%c0_173, %c40], %112 {strides = array<i32>} : memref<144x64xbf16, #tpu.memory_space<vmem>>, vector<16x8xbf16>,
    %c2_174 = arith.constant 2 : index
    %c0_175 = arith.constant 0 : index
    %c0_176 = arith.constant 0 : index
    %114 = vector.load %arg2[%c2_174, %c0_175, %c0_176] : memref<4x16x12xbf16, #tpu.memory_space<vmem>>, vector<1x16x8xbf16>
    %115 = vector.shape_cast %114 : vector<1x16x8xbf16> to vector<16x8xbf16>
    %c16_177 = arith.constant 16 : index
    %c32_178 = arith.constant 32 : index
    %116 = vector.load %arg14[%c16_177, %c32_178] : memref<144x64xbf16, #tpu.memory_space<vmem>>, vector<16x8xbf16>
    tpu.vector_store %arg14[%c16_177, %c32_178], %115 {strides = array<i32>} : memref<144x64xbf16, #tpu.memory_space<vmem>>, vector<16x8xbf16>,
    %c2_179 = arith.constant 2 : index
    %c0_180 = arith.constant 0 : index
    %c1_181 = arith.constant 1 : index
    %117 = vector.load %arg1[%c2_179, %c0_180, %c1_181] : memref<4x16x12xbf16, #tpu.memory_space<vmem>>, vector<1x16x8xbf16>
    %118 = vector.shape_cast %117 : vector<1x16x8xbf16> to vector<16x8xbf16>
    %c16_182 = arith.constant 16 : index
    %c40_183 = arith.constant 40 : index
    %119 = vector.load %arg14[%c16_182, %c40_183] : memref<144x64xbf16, #tpu.memory_space<vmem>>, vector<16x8xbf16>
    tpu.vector_store %arg14[%c16_182, %c40_183], %118 {strides = array<i32>} : memref<144x64xbf16, #tpu.memory_space<vmem>>, vector<16x8xbf16>,
    %c2_184 = arith.constant 2 : index
    %c0_185 = arith.constant 0 : index
    %c1_186 = arith.constant 1 : index
    %120 = vector.load %arg1[%c2_184, %c0_185, %c1_186] : memref<4x16x12xbf16, #tpu.memory_space<vmem>>, vector<1x16x8xbf16>
    %121 = vector.shape_cast %120 : vector<1x16x8xbf16> to vector<16x8xbf16>
    %c32_187 = arith.constant 32 : index
    %c32_188 = arith.constant 32 : index
    %122 = vector.load %arg14[%c32_187, %c32_188] : memref<144x64xbf16, #tpu.memory_space<vmem>>, vector<16x8xbf16>
    tpu.vector_store %arg14[%c32_187, %c32_188], %121 {strides = array<i32>} : memref<144x64xbf16, #tpu.memory_space<vmem>>, vector<16x8xbf16>,
    %c2_189 = arith.constant 2 : index
    %c0_190 = arith.constant 0 : index
    %c1_191 = arith.constant 1 : index
    %123 = vector.load %arg2[%c2_189, %c0_190, %c1_191] : memref<4x16x12xbf16, #tpu.memory_space<vmem>>, vector<1x16x8xbf16>
    %124 = vector.shape_cast %123 : vector<1x16x8xbf16> to vector<16x8xbf16>
    %c32_192 = arith.constant 32 : index
    %c40_193 = arith.constant 40 : index
    %125 = vector.load %arg14[%c32_192, %c40_193] : memref<144x64xbf16, #tpu.memory_space<vmem>>, vector<16x8xbf16>
    tpu.vector_store %arg14[%c32_192, %c40_193], %124 {strides = array<i32>} : memref<144x64xbf16, #tpu.memory_space<vmem>>, vector<16x8xbf16>,
    %c2_194 = arith.constant 2 : index
    %c0_195 = arith.constant 0 : index
    %c1_196 = arith.constant 1 : index
    %126 = vector.load %arg2[%c2_194, %c0_195, %c1_196] : memref<4x16x12xbf16, #tpu.memory_space<vmem>>, vector<1x16x8xbf16>
    %127 = vector.shape_cast %126 : vector<1x16x8xbf16> to vector<16x8xbf16>
    %c48_197 = arith.constant 48 : index
    %c32_198 = arith.constant 32 : index
    %128 = vector.load %arg14[%c48_197, %c32_198] : memref<144x64xbf16, #tpu.memory_space<vmem>>, vector<16x8xbf16>
    tpu.vector_store %arg14[%c48_197, %c32_198], %127 {strides = array<i32>} : memref<144x64xbf16, #tpu.memory_space<vmem>>, vector<16x8xbf16>,
    %c2_199 = arith.constant 2 : index
    %c0_200 = arith.constant 0 : index
    %c2_201 = arith.constant 2 : index
    %129 = vector.load %arg1[%c2_199, %c0_200, %c2_201] : memref<4x16x12xbf16, #tpu.memory_space<vmem>>, vector<1x16x8xbf16>
    %130 = vector.shape_cast %129 : vector<1x16x8xbf16> to vector<16x8xbf16>
    %c48_202 = arith.constant 48 : index
    %c40_203 = arith.constant 40 : index
    %131 = vector.load %arg14[%c48_202, %c40_203] : memref<144x64xbf16, #tpu.memory_space<vmem>>, vector<16x8xbf16>
    tpu.vector_store %arg14[%c48_202, %c40_203], %130 {strides = array<i32>} : memref<144x64xbf16, #tpu.memory_space<vmem>>, vector<16x8xbf16>,
    %c2_204 = arith.constant 2 : index
    %c0_205 = arith.constant 0 : index
    %c2_206 = arith.constant 2 : index
    %132 = vector.load %arg1[%c2_204, %c0_205, %c2_206] : memref<4x16x12xbf16, #tpu.memory_space<vmem>>, vector<1x16x8xbf16>
    %133 = vector.shape_cast %132 : vector<1x16x8xbf16> to vector<16x8xbf16>
    %c64_207 = arith.constant 64 : index
    %c32_208 = arith.constant 32 : index
    %134 = vector.load %arg14[%c64_207, %c32_208] : memref<144x64xbf16, #tpu.memory_space<vmem>>, vector<16x8xbf16>
    tpu.vector_store %arg14[%c64_207, %c32_208], %133 {strides = array<i32>} : memref<144x64xbf16, #tpu.memory_space<vmem>>, vector<16x8xbf16>,
    %c2_209 = arith.constant 2 : index
    %c0_210 = arith.constant 0 : index
    %c2_211 = arith.constant 2 : index
    %135 = vector.load %arg2[%c2_209, %c0_210, %c2_211] : memref<4x16x12xbf16, #tpu.memory_space<vmem>>, vector<1x16x8xbf16>
    %136 = vector.shape_cast %135 : vector<1x16x8xbf16> to vector<16x8xbf16>
    %c64_212 = arith.constant 64 : index
    %c40_213 = arith.constant 40 : index
    %137 = vector.load %arg14[%c64_212, %c40_213] : memref<144x64xbf16, #tpu.memory_space<vmem>>, vector<16x8xbf16>
    tpu.vector_store %arg14[%c64_212, %c40_213], %136 {strides = array<i32>} : memref<144x64xbf16, #tpu.memory_space<vmem>>, vector<16x8xbf16>,
    %c2_214 = arith.constant 2 : index
    %c0_215 = arith.constant 0 : index
    %c2_216 = arith.constant 2 : index
    %138 = vector.load %arg2[%c2_214, %c0_215, %c2_216] : memref<4x16x12xbf16, #tpu.memory_space<vmem>>, vector<1x16x8xbf16>
    %139 = vector.shape_cast %138 : vector<1x16x8xbf16> to vector<16x8xbf16>
    %c80_217 = arith.constant 80 : index
    %c32_218 = arith.constant 32 : index
    %140 = vector.load %arg14[%c80_217, %c32_218] : memref<144x64xbf16, #tpu.memory_space<vmem>>, vector<16x8xbf16>
    tpu.vector_store %arg14[%c80_217, %c32_218], %139 {strides = array<i32>} : memref<144x64xbf16, #tpu.memory_space<vmem>>, vector<16x8xbf16>,
    %c2_219 = arith.constant 2 : index
    %c0_220 = arith.constant 0 : index
    %c3_221 = arith.constant 3 : index
    %141 = vector.load %arg1[%c2_219, %c0_220, %c3_221] : memref<4x16x12xbf16, #tpu.memory_space<vmem>>, vector<1x16x8xbf16>
    %142 = vector.shape_cast %141 : vector<1x16x8xbf16> to vector<16x8xbf16>
    %c80_222 = arith.constant 80 : index
    %c40_223 = arith.constant 40 : index
    %143 = vector.load %arg14[%c80_222, %c40_223] : memref<144x64xbf16, #tpu.memory_space<vmem>>, vector<16x8xbf16>
    tpu.vector_store %arg14[%c80_222, %c40_223], %142 {strides = array<i32>} : memref<144x64xbf16, #tpu.memory_space<vmem>>, vector<16x8xbf16>,
    %c2_224 = arith.constant 2 : index
    %c0_225 = arith.constant 0 : index
    %c3_226 = arith.constant 3 : index
    %144 = vector.load %arg1[%c2_224, %c0_225, %c3_226] : memref<4x16x12xbf16, #tpu.memory_space<vmem>>, vector<1x16x8xbf16>
    %145 = vector.shape_cast %144 : vector<1x16x8xbf16> to vector<16x8xbf16>
    %c96_227 = arith.constant 96 : index
    %c32_228 = arith.constant 32 : index
    %146 = vector.load %arg14[%c96_227, %c32_228] : memref<144x64xbf16, #tpu.memory_space<vmem>>, vector<16x8xbf16>
    tpu.vector_store %arg14[%c96_227, %c32_228], %145 {strides = array<i32>} : memref<144x64xbf16, #tpu.memory_space<vmem>>, vector<16x8xbf16>,
    %c2_229 = arith.constant 2 : index
    %c0_230 = arith.constant 0 : index
    %c3_231 = arith.constant 3 : index
    %147 = vector.load %arg2[%c2_229, %c0_230, %c3_231] : memref<4x16x12xbf16, #tpu.memory_space<vmem>>, vector<1x16x8xbf16>
    %148 = vector.shape_cast %147 : vector<1x16x8xbf16> to vector<16x8xbf16>
    %c96_232 = arith.constant 96 : index
    %c40_233 = arith.constant 40 : index
    %149 = vector.load %arg14[%c96_232, %c40_233] : memref<144x64xbf16, #tpu.memory_space<vmem>>, vector<16x8xbf16>
    tpu.vector_store %arg14[%c96_232, %c40_233], %148 {strides = array<i32>} : memref<144x64xbf16, #tpu.memory_space<vmem>>, vector<16x8xbf16>,
    %c2_234 = arith.constant 2 : index
    %c0_235 = arith.constant 0 : index
    %c3_236 = arith.constant 3 : index
    %150 = vector.load %arg2[%c2_234, %c0_235, %c3_236] : memref<4x16x12xbf16, #tpu.memory_space<vmem>>, vector<1x16x8xbf16>
    %151 = vector.shape_cast %150 : vector<1x16x8xbf16> to vector<16x8xbf16>
    %c112_237 = arith.constant 112 : index
    %c32_238 = arith.constant 32 : index
    %152 = vector.load %arg14[%c112_237, %c32_238] : memref<144x64xbf16, #tpu.memory_space<vmem>>, vector<16x8xbf16>
    tpu.vector_store %arg14[%c112_237, %c32_238], %151 {strides = array<i32>} : memref<144x64xbf16, #tpu.memory_space<vmem>>, vector<16x8xbf16>,
    %c2_239 = arith.constant 2 : index
    %c0_240 = arith.constant 0 : index
    %c4_241 = arith.constant 4 : index
    %153 = vector.load %arg1[%c2_239, %c0_240, %c4_241] : memref<4x16x12xbf16, #tpu.memory_space<vmem>>, vector<1x16x8xbf16>
    %154 = vector.shape_cast %153 : vector<1x16x8xbf16> to vector<16x8xbf16>
    %c112_242 = arith.constant 112 : index
    %c40_243 = arith.constant 40 : index
    %155 = vector.load %arg14[%c112_242, %c40_243] : memref<144x64xbf16, #tpu.memory_space<vmem>>, vector<16x8xbf16>
    tpu.vector_store %arg14[%c112_242, %c40_243], %154 {strides = array<i32>} : memref<144x64xbf16, #tpu.memory_space<vmem>>, vector<16x8xbf16>,
    %c2_244 = arith.constant 2 : index
    %c0_245 = arith.constant 0 : index
    %c4_246 = arith.constant 4 : index
    %156 = vector.load %arg1[%c2_244, %c0_245, %c4_246] : memref<4x16x12xbf16, #tpu.memory_space<vmem>>, vector<1x16x8xbf16>
    %157 = vector.shape_cast %156 : vector<1x16x8xbf16> to vector<16x8xbf16>
    %c128_247 = arith.constant 128 : index
    %c32_248 = arith.constant 32 : index
    %158 = vector.load %arg14[%c128_247, %c32_248] : memref<144x64xbf16, #tpu.memory_space<vmem>>, vector<16x8xbf16>
    tpu.vector_store %arg14[%c128_247, %c32_248], %157 {strides = array<i32>} : memref<144x64xbf16, #tpu.memory_space<vmem>>, vector<16x8xbf16>,
    %c2_249 = arith.constant 2 : index
    %c0_250 = arith.constant 0 : index
    %c4_251 = arith.constant 4 : index
    %159 = vector.load %arg2[%c2_249, %c0_250, %c4_251] : memref<4x16x12xbf16, #tpu.memory_space<vmem>>, vector<1x16x8xbf16>
    %160 = vector.shape_cast %159 : vector<1x16x8xbf16> to vector<16x8xbf16>
    %c128_252 = arith.constant 128 : index
    %c40_253 = arith.constant 40 : index
    %161 = vector.load %arg14[%c128_252, %c40_253] : memref<144x64xbf16, #tpu.memory_space<vmem>>, vector<16x8xbf16>
    tpu.vector_store %arg14[%c128_252, %c40_253], %160 {strides = array<i32>} : memref<144x64xbf16, #tpu.memory_space<vmem>>, vector<16x8xbf16>,
    %c3_254 = arith.constant 3 : index
    %c0_255 = arith.constant 0 : index
    %c0_256 = arith.constant 0 : index
    %162 = vector.load %arg1[%c3_254, %c0_255, %c0_256] : memref<4x16x12xbf16, #tpu.memory_space<vmem>>, vector<1x16x8xbf16>
    %163 = vector.shape_cast %162 : vector<1x16x8xbf16> to vector<16x8xbf16>
    %c0_257 = arith.constant 0 : index
    %c48_258 = arith.constant 48 : index
    %164 = vector.load %arg14[%c0_257, %c48_258] : memref<144x64xbf16, #tpu.memory_space<vmem>>, vector<16x8xbf16>
    tpu.vector_store %arg14[%c0_257, %c48_258], %163 {strides = array<i32>} : memref<144x64xbf16, #tpu.memory_space<vmem>>, vector<16x8xbf16>,
    %c3_259 = arith.constant 3 : index
    %c0_260 = arith.constant 0 : index
    %c0_261 = arith.constant 0 : index
    %165 = vector.load %arg2[%c3_259, %c0_260, %c0_261] : memref<4x16x12xbf16, #tpu.memory_space<vmem>>, vector<1x16x8xbf16>
    %166 = vector.shape_cast %165 : vector<1x16x8xbf16> to vector<16x8xbf16>
    %c0_262 = arith.constant 0 : index
    %c56 = arith.constant 56 : index
    %167 = vector.load %arg14[%c0_262, %c56] : memref<144x64xbf16, #tpu.memory_space<vmem>>, vector<16x8xbf16>
    tpu.vector_store %arg14[%c0_262, %c56], %166 {strides = array<i32>} : memref<144x64xbf16, #tpu.memory_space<vmem>>, vector<16x8xbf16>,
    %c3_263 = arith.constant 3 : index
    %c0_264 = arith.constant 0 : index
    %c0_265 = arith.constant 0 : index
    %168 = vector.load %arg2[%c3_263, %c0_264, %c0_265] : memref<4x16x12xbf16, #tpu.memory_space<vmem>>, vector<1x16x8xbf16>
    %169 = vector.shape_cast %168 : vector<1x16x8xbf16> to vector<16x8xbf16>
    %c16_266 = arith.constant 16 : index
    %c48_267 = arith.constant 48 : index
    %170 = vector.load %arg14[%c16_266, %c48_267] : memref<144x64xbf16, #tpu.memory_space<vmem>>, vector<16x8xbf16>
    tpu.vector_store %arg14[%c16_266, %c48_267], %169 {strides = array<i32>} : memref<144x64xbf16, #tpu.memory_space<vmem>>, vector<16x8xbf16>,
    %c3_268 = arith.constant 3 : index
    %c0_269 = arith.constant 0 : index
    %c1_270 = arith.constant 1 : index
    %171 = vector.load %arg1[%c3_268, %c0_269, %c1_270] : memref<4x16x12xbf16, #tpu.memory_space<vmem>>, vector<1x16x8xbf16>
    %172 = vector.shape_cast %171 : vector<1x16x8xbf16> to vector<16x8xbf16>
    %c16_271 = arith.constant 16 : index
    %c56_272 = arith.constant 56 : index
    %173 = vector.load %arg14[%c16_271, %c56_272] : memref<144x64xbf16, #tpu.memory_space<vmem>>, vector<16x8xbf16>
    tpu.vector_store %arg14[%c16_271, %c56_272], %172 {strides = array<i32>} : memref<144x64xbf16, #tpu.memory_space<vmem>>, vector<16x8xbf16>,
    %c3_273 = arith.constant 3 : index
    %c0_274 = arith.constant 0 : index
    %c1_275 = arith.constant 1 : index
    %174 = vector.load %arg1[%c3_273, %c0_274, %c1_275] : memref<4x16x12xbf16, #tpu.memory_space<vmem>>, vector<1x16x8xbf16>
    %175 = vector.shape_cast %174 : vector<1x16x8xbf16> to vector<16x8xbf16>
    %c32_276 = arith.constant 32 : index
    %c48_277 = arith.constant 48 : index
    %176 = vector.load %arg14[%c32_276, %c48_277] : memref<144x64xbf16, #tpu.memory_space<vmem>>, vector<16x8xbf16>
    tpu.vector_store %arg14[%c32_276, %c48_277], %175 {strides = array<i32>} : memref<144x64xbf16, #tpu.memory_space<vmem>>, vector<16x8xbf16>,
    %c3_278 = arith.constant 3 : index
    %c0_279 = arith.constant 0 : index
    %c1_280 = arith.constant 1 : index
    %177 = vector.load %arg2[%c3_278, %c0_279, %c1_280] : memref<4x16x12xbf16, #tpu.memory_space<vmem>>, vector<1x16x8xbf16>
    %178 = vector.shape_cast %177 : vector<1x16x8xbf16> to vector<16x8xbf16>
    %c32_281 = arith.constant 32 : index
    %c56_282 = arith.constant 56 : index
    %179 = vector.load %arg14[%c32_281, %c56_282] : memref<144x64xbf16, #tpu.memory_space<vmem>>, vector<16x8xbf16>
    tpu.vector_store %arg14[%c32_281, %c56_282], %178 {strides = array<i32>} : memref<144x64xbf16, #tpu.memory_space<vmem>>, vector<16x8xbf16>,
    %c3_283 = arith.constant 3 : index
    %c0_284 = arith.constant 0 : index
    %c1_285 = arith.constant 1 : index
    %180 = vector.load %arg2[%c3_283, %c0_284, %c1_285] : memref<4x16x12xbf16, #tpu.memory_space<vmem>>, vector<1x16x8xbf16>
    %181 = vector.shape_cast %180 : vector<1x16x8xbf16> to vector<16x8xbf16>
    %c48_286 = arith.constant 48 : index
    %c48_287 = arith.constant 48 : index
    %182 = vector.load %arg14[%c48_286, %c48_287] : memref<144x64xbf16, #tpu.memory_space<vmem>>, vector<16x8xbf16>
    tpu.vector_store %arg14[%c48_286, %c48_287], %181 {strides = array<i32>} : memref<144x64xbf16, #tpu.memory_space<vmem>>, vector<16x8xbf16>,
    %c3_288 = arith.constant 3 : index
    %c0_289 = arith.constant 0 : index
    %c2_290 = arith.constant 2 : index
    %183 = vector.load %arg1[%c3_288, %c0_289, %c2_290] : memref<4x16x12xbf16, #tpu.memory_space<vmem>>, vector<1x16x8xbf16>
    %184 = vector.shape_cast %183 : vector<1x16x8xbf16> to vector<16x8xbf16>
    %c48_291 = arith.constant 48 : index
    %c56_292 = arith.constant 56 : index
    %185 = vector.load %arg14[%c48_291, %c56_292] : memref<144x64xbf16, #tpu.memory_space<vmem>>, vector<16x8xbf16>
    tpu.vector_store %arg14[%c48_291, %c56_292], %184 {strides = array<i32>} : memref<144x64xbf16, #tpu.memory_space<vmem>>, vector<16x8xbf16>,
    %c3_293 = arith.constant 3 : index
    %c0_294 = arith.constant 0 : index
    %c2_295 = arith.constant 2 : index
    %186 = vector.load %arg1[%c3_293, %c0_294, %c2_295] : memref<4x16x12xbf16, #tpu.memory_space<vmem>>, vector<1x16x8xbf16>
    %187 = vector.shape_cast %186 : vector<1x16x8xbf16> to vector<16x8xbf16>
    %c64_296 = arith.constant 64 : index
    %c48_297 = arith.constant 48 : index
    %188 = vector.load %arg14[%c64_296, %c48_297] : memref<144x64xbf16, #tpu.memory_space<vmem>>, vector<16x8xbf16>
    tpu.vector_store %arg14[%c64_296, %c48_297], %187 {strides = array<i32>} : memref<144x64xbf16, #tpu.memory_space<vmem>>, vector<16x8xbf16>,
    %c3_298 = arith.constant 3 : index
    %c0_299 = arith.constant 0 : index
    %c2_300 = arith.constant 2 : index
    %189 = vector.load %arg2[%c3_298, %c0_299, %c2_300] : memref<4x16x12xbf16, #tpu.memory_space<vmem>>, vector<1x16x8xbf16>
    %190 = vector.shape_cast %189 : vector<1x16x8xbf16> to vector<16x8xbf16>
    %c64_301 = arith.constant 64 : index
    %c56_302 = arith.constant 56 : index
    %191 = vector.load %arg14[%c64_301, %c56_302] : memref<144x64xbf16, #tpu.memory_space<vmem>>, vector<16x8xbf16>
    tpu.vector_store %arg14[%c64_301, %c56_302], %190 {strides = array<i32>} : memref<144x64xbf16, #tpu.memory_space<vmem>>, vector<16x8xbf16>,
    %c3_303 = arith.constant 3 : index
    %c0_304 = arith.constant 0 : index
    %c2_305 = arith.constant 2 : index
    %192 = vector.load %arg2[%c3_303, %c0_304, %c2_305] : memref<4x16x12xbf16, #tpu.memory_space<vmem>>, vector<1x16x8xbf16>
    %193 = vector.shape_cast %192 : vector<1x16x8xbf16> to vector<16x8xbf16>
    %c80_306 = arith.constant 80 : index
    %c48_307 = arith.constant 48 : index
    %194 = vector.load %arg14[%c80_306, %c48_307] : memref<144x64xbf16, #tpu.memory_space<vmem>>, vector<16x8xbf16>
    tpu.vector_store %arg14[%c80_306, %c48_307], %193 {strides = array<i32>} : memref<144x64xbf16, #tpu.memory_space<vmem>>, vector<16x8xbf16>,
    %c3_308 = arith.constant 3 : index
    %c0_309 = arith.constant 0 : index
    %c3_310 = arith.constant 3 : index
    %195 = vector.load %arg1[%c3_308, %c0_309, %c3_310] : memref<4x16x12xbf16, #tpu.memory_space<vmem>>, vector<1x16x8xbf16>
    %196 = vector.shape_cast %195 : vector<1x16x8xbf16> to vector<16x8xbf16>
    %c80_311 = arith.constant 80 : index
    %c56_312 = arith.constant 56 : index
    %197 = vector.load %arg14[%c80_311, %c56_312] : memref<144x64xbf16, #tpu.memory_space<vmem>>, vector<16x8xbf16>
    tpu.vector_store %arg14[%c80_311, %c56_312], %196 {strides = array<i32>} : memref<144x64xbf16, #tpu.memory_space<vmem>>, vector<16x8xbf16>,
    %c3_313 = arith.constant 3 : index
    %c0_314 = arith.constant 0 : index
    %c3_315 = arith.constant 3 : index
    %198 = vector.load %arg1[%c3_313, %c0_314, %c3_315] : memref<4x16x12xbf16, #tpu.memory_space<vmem>>, vector<1x16x8xbf16>
    %199 = vector.shape_cast %198 : vector<1x16x8xbf16> to vector<16x8xbf16>
    %c96_316 = arith.constant 96 : index
    %c48_317 = arith.constant 48 : index
    %200 = vector.load %arg14[%c96_316, %c48_317] : memref<144x64xbf16, #tpu.memory_space<vmem>>, vector<16x8xbf16>
    tpu.vector_store %arg14[%c96_316, %c48_317], %199 {strides = array<i32>} : memref<144x64xbf16, #tpu.memory_space<vmem>>, vector<16x8xbf16>,
    %c3_318 = arith.constant 3 : index
    %c0_319 = arith.constant 0 : index
    %c3_320 = arith.constant 3 : index
    %201 = vector.load %arg2[%c3_318, %c0_319, %c3_320] : memref<4x16x12xbf16, #tpu.memory_space<vmem>>, vector<1x16x8xbf16>
    %202 = vector.shape_cast %201 : vector<1x16x8xbf16> to vector<16x8xbf16>
    %c96_321 = arith.constant 96 : index
    %c56_322 = arith.constant 56 : index
    %203 = vector.load %arg14[%c96_321, %c56_322] : memref<144x64xbf16, #tpu.memory_space<vmem>>, vector<16x8xbf16>
    tpu.vector_store %arg14[%c96_321, %c56_322], %202 {strides = array<i32>} : memref<144x64xbf16, #tpu.memory_space<vmem>>, vector<16x8xbf16>,
    %c3_323 = arith.constant 3 : index
    %c0_324 = arith.constant 0 : index
    %c3_325 = arith.constant 3 : index
    %204 = vector.load %arg2[%c3_323, %c0_324, %c3_325] : memref<4x16x12xbf16, #tpu.memory_space<vmem>>, vector<1x16x8xbf16>
    %205 = vector.shape_cast %204 : vector<1x16x8xbf16> to vector<16x8xbf16>
    %c112_326 = arith.constant 112 : index
    %c48_327 = arith.constant 48 : index
    %206 = vector.load %arg14[%c112_326, %c48_327] : memref<144x64xbf16, #tpu.memory_space<vmem>>, vector<16x8xbf16>
    tpu.vector_store %arg14[%c112_326, %c48_327], %205 {strides = array<i32>} : memref<144x64xbf16, #tpu.memory_space<vmem>>, vector<16x8xbf16>,
    %c3_328 = arith.constant 3 : index
    %c0_329 = arith.constant 0 : index
    %c4_330 = arith.constant 4 : index
    %207 = vector.load %arg1[%c3_328, %c0_329, %c4_330] : memref<4x16x12xbf16, #tpu.memory_space<vmem>>, vector<1x16x8xbf16>
    %208 = vector.shape_cast %207 : vector<1x16x8xbf16> to vector<16x8xbf16>
    %c112_331 = arith.constant 112 : index
    %c56_332 = arith.constant 56 : index
    %209 = vector.load %arg14[%c112_331, %c56_332] : memref<144x64xbf16, #tpu.memory_space<vmem>>, vector<16x8xbf16>
    tpu.vector_store %arg14[%c112_331, %c56_332], %208 {strides = array<i32>} : memref<144x64xbf16, #tpu.memory_space<vmem>>, vector<16x8xbf16>,
    %c3_333 = arith.constant 3 : index
    %c0_334 = arith.constant 0 : index
    %c4_335 = arith.constant 4 : index
    %210 = vector.load %arg1[%c3_333, %c0_334, %c4_335] : memref<4x16x12xbf16, #tpu.memory_space<vmem>>, vector<1x16x8xbf16>
    %211 = vector.shape_cast %210 : vector<1x16x8xbf16> to vector<16x8xbf16>
    %c128_336 = arith.constant 128 : index
    %c48_337 = arith.constant 48 : index
    %212 = vector.load %arg14[%c128_336, %c48_337] : memref<144x64xbf16, #tpu.memory_space<vmem>>, vector<16x8xbf16>
    tpu.vector_store %arg14[%c128_336, %c48_337], %211 {strides = array<i32>} : memref<144x64xbf16, #tpu.memory_space<vmem>>, vector<16x8xbf16>,
    %c3_338 = arith.constant 3 : index
    %c0_339 = arith.constant 0 : index
    %c4_340 = arith.constant 4 : index
    %213 = vector.load %arg2[%c3_338, %c0_339, %c4_340] : memref<4x16x12xbf16, #tpu.memory_space<vmem>>, vector<1x16x8xbf16>
    %214 = vector.shape_cast %213 : vector<1x16x8xbf16> to vector<16x8xbf16>
    %c128_341 = arith.constant 128 : index
    %c56_342 = arith.constant 56 : index
    %215 = vector.load %arg14[%c128_341, %c56_342] : memref<144x64xbf16, #tpu.memory_space<vmem>>, vector<16x8xbf16>
    tpu.vector_store %arg14[%c128_341, %c56_342], %214 {strides = array<i32>} : memref<144x64xbf16, #tpu.memory_space<vmem>>, vector<16x8xbf16>,
    %c0_343 = arith.constant 0 : index
    %c0_344 = arith.constant 0 : index
    %216 = vector.load %arg3[%c0_343, %c0_344] : memref<48x144xbf16, #tpu.memory_space<vmem>>, vector<48x144xbf16>
    %c0_345 = arith.constant 0 : index
    %c0_346 = arith.constant 0 : index
    %217 = vector.load %arg14[%c0_345, %c0_346] : memref<144x64xbf16, #tpu.memory_space<vmem>>, vector<144x64xbf16>
    %cst = arith.constant dense<0.000000e+00> : vector<48x64xf32>
    %218 = tpu.matmul %216, %217, %cst {dimension_numbers = #tpu.dot_dimension_numbers<[1], [0], [0], [1], [0, 0, 1, 1], [], []>} : vector<48x144xbf16>, vector<144x64xbf16>, vector<48x64xf32> -> vector<48x64xf32>
    %c0_347 = arith.constant 0 : index
    %c0_348 = arith.constant 0 : index
    %219 = vector.load %arg4[%c0_347, %c0_348] : memref<48x1xf32, #tpu.memory_space<vmem>>, vector<48x1xf32>
    %220 = vector.broadcast %219 : vector<48x1xf32> to vector<48x64xf32>
    %221 = arith.addf %218, %220 : vector<48x64xf32>
    %cst_349 = arith.constant 0.000000e+00 : f32
    %222 = vector.broadcast %cst_349 : f32 to vector<48x64xf32>
    %223 = arith.cmpf oge, %221, %222 : vector<48x64xf32>
    %cst_350 = arith.constant 0.00999999977 : f32
    %224 = vector.broadcast %cst_350 : f32 to vector<48x64xf32>
    %225 = arith.mulf %224, %221 : vector<48x64xf32>
    %226 = arith.select %223, %221, %225 : vector<48x64xi1>, vector<48x64xf32>
    %227 = vector.extract_strided_slice %226 {offsets = [0, 0], sizes = [48, 16], strides = [1, 1]} : vector<48x64xf32> to vector<48x16xf32>
    %cst_351 = arith.constant dense<0.000000e+00> : vector<48xf32>
    %228 = vector.multi_reduction <add>, %227, %cst_351 [1] : vector<48x16xf32> to vector<48xf32>
    %229 = vector.shape_cast %228 : vector<48xf32> to vector<48x1xf32>
    %230 = vector.extract_strided_slice %226 {offsets = [0, 16], sizes = [48, 16], strides = [1, 1]} : vector<48x64xf32> to vector<48x16xf32>
    %cst_352 = arith.constant dense<0.000000e+00> : vector<48xf32>
    %231 = vector.multi_reduction <add>, %230, %cst_352 [1] : vector<48x16xf32> to vector<48xf32>
    %232 = vector.shape_cast %231 : vector<48xf32> to vector<48x1xf32>
    %233 = vector.extract_strided_slice %226 {offsets = [0, 32], sizes = [48, 16], strides = [1, 1]} : vector<48x64xf32> to vector<48x16xf32>
    %cst_353 = arith.constant dense<0.000000e+00> : vector<48xf32>
    %234 = vector.multi_reduction <add>, %233, %cst_353 [1] : vector<48x16xf32> to vector<48xf32>
    %235 = vector.shape_cast %234 : vector<48xf32> to vector<48x1xf32>
    %236 = vector.extract_strided_slice %226 {offsets = [0, 48], sizes = [48, 16], strides = [1, 1]} : vector<48x64xf32> to vector<48x16xf32>
    %cst_354 = arith.constant dense<0.000000e+00> : vector<48xf32>
    %237 = vector.multi_reduction <add>, %236, %cst_354 [1] : vector<48x16xf32> to vector<48xf32>
    %238 = vector.shape_cast %237 : vector<48xf32> to vector<48x1xf32>
    %239 = tpu.concatenate %229, %232, %235, %238 in 1 : vector<48x1xf32>, vector<48x1xf32>, vector<48x1xf32>, vector<48x1xf32> -> vector<48x4xf32>
    %cst_355 = arith.constant 6.250000e-02 : f32
    %240 = vector.broadcast %cst_355 : f32 to vector<48x4xf32>
    %241 = arith.mulf %239, %240 : vector<48x4xf32>
    %c0_356 = arith.constant 0 : index
    %c0_357 = arith.constant 0 : index
    %242 = vector.load %arg5[%c0_356, %c0_357] : memref<16x48xf32, #tpu.memory_space<vmem>>, vector<16x48xf32>
    %cst_358 = arith.constant dense<0.000000e+00> : vector<16x4xf32>
    %243 = tpu.matmul %242, %241, %cst_358 {dimension_numbers = #tpu.dot_dimension_numbers<[1], [0], [0], [1], [0, 0, 1, 1], [], []>} : vector<16x48xf32>, vector<48x4xf32>, vector<16x4xf32> -> vector<16x4xf32>
    %c0_359 = arith.constant 0 : index
    %c0_360 = arith.constant 0 : index
    %244 = vector.load %arg6[%c0_359, %c0_360] : memref<16x1xf32, #tpu.memory_space<vmem>>, vector<16x1xf32>
    %245 = vector.broadcast %244 : vector<16x1xf32> to vector<16x4xf32>
    %246 = arith.addf %243, %245 : vector<16x4xf32>
    %cst_361 = arith.constant 0.000000e+00 : f32
    %247 = vector.broadcast %cst_361 : f32 to vector<16x4xf32>
    %248 = arith.cmpf oge, %246, %247 : vector<16x4xf32>
    %cst_362 = arith.constant 0.00999999977 : f32
    %249 = vector.broadcast %cst_362 : f32 to vector<16x4xf32>
    %250 = arith.mulf %249, %246 : vector<16x4xf32>
    %251 = arith.select %248, %246, %250 : vector<16x4xi1>, vector<16x4xf32>
    %c0_363 = arith.constant 0 : index
    %c0_364 = arith.constant 0 : index
    %252 = vector.load %arg7[%c0_363, %c0_364] : memref<48x16xf32, #tpu.memory_space<vmem>>, vector<48x16xf32>
    %cst_365 = arith.constant dense<0.000000e+00> : vector<48x4xf32>
    %253 = tpu.matmul %252, %251, %cst_365 {dimension_numbers = #tpu.dot_dimension_numbers<[1], [0], [0], [1], [0, 0, 1, 1], [], []>} : vector<48x16xf32>, vector<16x4xf32>, vector<48x4xf32> -> vector<48x4xf32>
    %c0_366 = arith.constant 0 : index
    %c0_367 = arith.constant 0 : index
    %254 = vector.load %arg8[%c0_366, %c0_367] : memref<48x1xf32, #tpu.memory_space<vmem>>, vector<48x1xf32>
    %255 = vector.broadcast %254 : vector<48x1xf32> to vector<48x4xf32>
    %256 = arith.addf %253, %255 : vector<48x4xf32>
    %cst_368 = arith.constant 0.000000e+00 : f32
    %257 = vector.broadcast %cst_368 : f32 to vector<48x4xf32>
    %258 = arith.cmpf oge, %256, %257 : vector<48x4xf32>
    %cst_369 = arith.constant 0.00999999977 : f32
    %259 = vector.broadcast %cst_369 : f32 to vector<48x4xf32>
    %260 = arith.mulf %259, %256 : vector<48x4xf32>
    %261 = arith.select %258, %256, %260 : vector<48x4xi1>, vector<48x4xf32>
    %cst_370 = arith.constant 0.000000e+00 : f32
    %262 = vector.broadcast %cst_370 : f32 to vector<48x4xf32>
    %263 = arith.subf %262, %261 : vector<48x4xf32>
    %264 = math.exp %263 : vector<48x4xf32>
    %cst_371 = arith.constant 1.000000e+00 : f32
    %265 = vector.broadcast %cst_371 : f32 to vector<48x4xf32>
    %266 = arith.addf %265, %264 : vector<48x4xf32>
    %cst_372 = arith.constant 1.000000e+00 : f32
    %267 = vector.broadcast %cst_372 : f32 to vector<48x4xf32>
    %268 = arith.divf %267, %266 : vector<48x4xf32>
    %cst_373 = arith.constant 0.000000e+00 : bf16
    %269 = vector.broadcast %cst_373 : bf16 to vector<48x1xbf16>
    %cst_374 = arith.constant 0.000000e+00 : bf16
    %270 = vector.broadcast %cst_374 : bf16 to vector<48x2xbf16>
    %271 = vector.extract_strided_slice %268 {offsets = [0, 0], sizes = [48, 1], strides = [1, 1]} : vector<48x4xf32> to vector<48x1xf32>
    %272 = vector.extract_strided_slice %226 {offsets = [0, 0], sizes = [48, 16], strides = [1, 1]} : vector<48x64xf32> to vector<48x16xf32>
    %273 = vector.broadcast %271 : vector<48x1xf32> to vector<48x16xf32>
    %274 = arith.mulf %273, %272 : vector<48x16xf32>
    %275 = arith.truncf %274 : vector<48x16xf32> to vector<48x16xbf16>
    %c0_375 = arith.constant 0 : index
    %c0_376 = arith.constant 0 : index
    %276 = vector.load %arg15[%c0_375, %c0_376] : memref<48x80xbf16, #tpu.memory_space<vmem>>, vector<48x1xbf16>
    tpu.vector_store %arg15[%c0_375, %c0_376], %269 {strides = array<i32>} : memref<48x80xbf16, #tpu.memory_space<vmem>>, vector<48x1xbf16>,
    %277 = vector.extract_strided_slice %275 {offsets = [0, 0], sizes = [48, 8], strides = [1, 1]} : vector<48x16xbf16> to vector<48x8xbf16>
    %c0_377 = arith.constant 0 : index
    %c1_378 = arith.constant 1 : index
    %278 = vector.load %arg15[%c0_377, %c1_378] : memref<48x80xbf16, #tpu.memory_space<vmem>>, vector<48x8xbf16>
    tpu.vector_store %arg15[%c0_377, %c1_378], %277 {strides = array<i32>} : memref<48x80xbf16, #tpu.memory_space<vmem>>, vector<48x8xbf16>,
    %c0_379 = arith.constant 0 : index
    %c9 = arith.constant 9 : index
    %279 = vector.load %arg15[%c0_379, %c9] : memref<48x80xbf16, #tpu.memory_space<vmem>>, vector<48x2xbf16>
    tpu.vector_store %arg15[%c0_379, %c9], %270 {strides = array<i32>} : memref<48x80xbf16, #tpu.memory_space<vmem>>, vector<48x2xbf16>,
    %280 = vector.extract_strided_slice %275 {offsets = [0, 8], sizes = [48, 8], strides = [1, 1]} : vector<48x16xbf16> to vector<48x8xbf16>
    %c0_380 = arith.constant 0 : index
    %c11 = arith.constant 11 : index
    %281 = vector.load %arg15[%c0_380, %c11] : memref<48x80xbf16, #tpu.memory_space<vmem>>, vector<48x8xbf16>
    tpu.vector_store %arg15[%c0_380, %c11], %280 {strides = array<i32>} : memref<48x80xbf16, #tpu.memory_space<vmem>>, vector<48x8xbf16>,
    %c0_381 = arith.constant 0 : index
    %c19 = arith.constant 19 : index
    %282 = vector.load %arg15[%c0_381, %c19] : memref<48x80xbf16, #tpu.memory_space<vmem>>, vector<48x1xbf16>
    tpu.vector_store %arg15[%c0_381, %c19], %269 {strides = array<i32>} : memref<48x80xbf16, #tpu.memory_space<vmem>>, vector<48x1xbf16>,
    %283 = vector.extract_strided_slice %268 {offsets = [0, 1], sizes = [48, 1], strides = [1, 1]} : vector<48x4xf32> to vector<48x1xf32>
    %284 = vector.extract_strided_slice %226 {offsets = [0, 16], sizes = [48, 16], strides = [1, 1]} : vector<48x64xf32> to vector<48x16xf32>
    %285 = vector.broadcast %283 : vector<48x1xf32> to vector<48x16xf32>
    %286 = arith.mulf %285, %284 : vector<48x16xf32>
    %287 = arith.truncf %286 : vector<48x16xf32> to vector<48x16xbf16>
    %c0_382 = arith.constant 0 : index
    %c20 = arith.constant 20 : index
    %288 = vector.load %arg15[%c0_382, %c20] : memref<48x80xbf16, #tpu.memory_space<vmem>>, vector<48x1xbf16>
    tpu.vector_store %arg15[%c0_382, %c20], %269 {strides = array<i32>} : memref<48x80xbf16, #tpu.memory_space<vmem>>, vector<48x1xbf16>,
    %289 = vector.extract_strided_slice %287 {offsets = [0, 0], sizes = [48, 8], strides = [1, 1]} : vector<48x16xbf16> to vector<48x8xbf16>
    %c0_383 = arith.constant 0 : index
    %c21 = arith.constant 21 : index
    %290 = vector.load %arg15[%c0_383, %c21] : memref<48x80xbf16, #tpu.memory_space<vmem>>, vector<48x8xbf16>
    tpu.vector_store %arg15[%c0_383, %c21], %289 {strides = array<i32>} : memref<48x80xbf16, #tpu.memory_space<vmem>>, vector<48x8xbf16>,
    %c0_384 = arith.constant 0 : index
    %c29 = arith.constant 29 : index
    %291 = vector.load %arg15[%c0_384, %c29] : memref<48x80xbf16, #tpu.memory_space<vmem>>, vector<48x2xbf16>
    tpu.vector_store %arg15[%c0_384, %c29], %270 {strides = array<i32>} : memref<48x80xbf16, #tpu.memory_space<vmem>>, vector<48x2xbf16>,
    %292 = vector.extract_strided_slice %287 {offsets = [0, 8], sizes = [48, 8], strides = [1, 1]} : vector<48x16xbf16> to vector<48x8xbf16>
    %c0_385 = arith.constant 0 : index
    %c31 = arith.constant 31 : index
    %293 = vector.load %arg15[%c0_385, %c31] : memref<48x80xbf16, #tpu.memory_space<vmem>>, vector<48x8xbf16>
    tpu.vector_store %arg15[%c0_385, %c31], %292 {strides = array<i32>} : memref<48x80xbf16, #tpu.memory_space<vmem>>, vector<48x8xbf16>,
    %c0_386 = arith.constant 0 : index
    %c39 = arith.constant 39 : index
    %294 = vector.load %arg15[%c0_386, %c39] : memref<48x80xbf16, #tpu.memory_space<vmem>>, vector<48x1xbf16>
    tpu.vector_store %arg15[%c0_386, %c39], %269 {strides = array<i32>} : memref<48x80xbf16, #tpu.memory_space<vmem>>, vector<48x1xbf16>,
    %295 = vector.extract_strided_slice %268 {offsets = [0, 2], sizes = [48, 1], strides = [1, 1]} : vector<48x4xf32> to vector<48x1xf32>
    %296 = vector.extract_strided_slice %226 {offsets = [0, 32], sizes = [48, 16], strides = [1, 1]} : vector<48x64xf32> to vector<48x16xf32>
    %297 = vector.broadcast %295 : vector<48x1xf32> to vector<48x16xf32>
    %298 = arith.mulf %297, %296 : vector<48x16xf32>
    %299 = arith.truncf %298 : vector<48x16xf32> to vector<48x16xbf16>
    %c0_387 = arith.constant 0 : index
    %c40_388 = arith.constant 40 : index
    %300 = vector.load %arg15[%c0_387, %c40_388] : memref<48x80xbf16, #tpu.memory_space<vmem>>, vector<48x1xbf16>
    tpu.vector_store %arg15[%c0_387, %c40_388], %269 {strides = array<i32>} : memref<48x80xbf16, #tpu.memory_space<vmem>>, vector<48x1xbf16>,
    %301 = vector.extract_strided_slice %299 {offsets = [0, 0], sizes = [48, 8], strides = [1, 1]} : vector<48x16xbf16> to vector<48x8xbf16>
    %c0_389 = arith.constant 0 : index
    %c41 = arith.constant 41 : index
    %302 = vector.load %arg15[%c0_389, %c41] : memref<48x80xbf16, #tpu.memory_space<vmem>>, vector<48x8xbf16>
    tpu.vector_store %arg15[%c0_389, %c41], %301 {strides = array<i32>} : memref<48x80xbf16, #tpu.memory_space<vmem>>, vector<48x8xbf16>,
    %c0_390 = arith.constant 0 : index
    %c49 = arith.constant 49 : index
    %303 = vector.load %arg15[%c0_390, %c49] : memref<48x80xbf16, #tpu.memory_space<vmem>>, vector<48x2xbf16>
    tpu.vector_store %arg15[%c0_390, %c49], %270 {strides = array<i32>} : memref<48x80xbf16, #tpu.memory_space<vmem>>, vector<48x2xbf16>,
    %304 = vector.extract_strided_slice %299 {offsets = [0, 8], sizes = [48, 8], strides = [1, 1]} : vector<48x16xbf16> to vector<48x8xbf16>
    %c0_391 = arith.constant 0 : index
    %c51 = arith.constant 51 : index
    %305 = vector.load %arg15[%c0_391, %c51] : memref<48x80xbf16, #tpu.memory_space<vmem>>, vector<48x8xbf16>
    tpu.vector_store %arg15[%c0_391, %c51], %304 {strides = array<i32>} : memref<48x80xbf16, #tpu.memory_space<vmem>>, vector<48x8xbf16>,
    %c0_392 = arith.constant 0 : index
    %c59 = arith.constant 59 : index
    %306 = vector.load %arg15[%c0_392, %c59] : memref<48x80xbf16, #tpu.memory_space<vmem>>, vector<48x1xbf16>
    tpu.vector_store %arg15[%c0_392, %c59], %269 {strides = array<i32>} : memref<48x80xbf16, #tpu.memory_space<vmem>>, vector<48x1xbf16>,
    %307 = vector.extract_strided_slice %268 {offsets = [0, 3], sizes = [48, 1], strides = [1, 1]} : vector<48x4xf32> to vector<48x1xf32>
    %308 = vector.extract_strided_slice %226 {offsets = [0, 48], sizes = [48, 16], strides = [1, 1]} : vector<48x64xf32> to vector<48x16xf32>
    %309 = vector.broadcast %307 : vector<48x1xf32> to vector<48x16xf32>
    %310 = arith.mulf %309, %308 : vector<48x16xf32>
    %311 = arith.truncf %310 : vector<48x16xf32> to vector<48x16xbf16>
    %c0_393 = arith.constant 0 : index
    %c60 = arith.constant 60 : index
    %312 = vector.load %arg15[%c0_393, %c60] : memref<48x80xbf16, #tpu.memory_space<vmem>>, vector<48x1xbf16>
    tpu.vector_store %arg15[%c0_393, %c60], %269 {strides = array<i32>} : memref<48x80xbf16, #tpu.memory_space<vmem>>, vector<48x1xbf16>,
    %313 = vector.extract_strided_slice %311 {offsets = [0, 0], sizes = [48, 8], strides = [1, 1]} : vector<48x16xbf16> to vector<48x8xbf16>
    %c0_394 = arith.constant 0 : index
    %c61 = arith.constant 61 : index
    %314 = vector.load %arg15[%c0_394, %c61] : memref<48x80xbf16, #tpu.memory_space<vmem>>, vector<48x8xbf16>
    tpu.vector_store %arg15[%c0_394, %c61], %313 {strides = array<i32>} : memref<48x80xbf16, #tpu.memory_space<vmem>>, vector<48x8xbf16>,
    %c0_395 = arith.constant 0 : index
    %c69 = arith.constant 69 : index
    %315 = vector.load %arg15[%c0_395, %c69] : memref<48x80xbf16, #tpu.memory_space<vmem>>, vector<48x2xbf16>
    tpu.vector_store %arg15[%c0_395, %c69], %270 {strides = array<i32>} : memref<48x80xbf16, #tpu.memory_space<vmem>>, vector<48x2xbf16>,
    %316 = vector.extract_strided_slice %311 {offsets = [0, 8], sizes = [48, 8], strides = [1, 1]} : vector<48x16xbf16> to vector<48x8xbf16>
    %c0_396 = arith.constant 0 : index
    %c71 = arith.constant 71 : index
    %317 = vector.load %arg15[%c0_396, %c71] : memref<48x80xbf16, #tpu.memory_space<vmem>>, vector<48x8xbf16>
    tpu.vector_store %arg15[%c0_396, %c71], %316 {strides = array<i32>} : memref<48x80xbf16, #tpu.memory_space<vmem>>, vector<48x8xbf16>,
    %c0_397 = arith.constant 0 : index
    %c79 = arith.constant 79 : index
    %318 = vector.load %arg15[%c0_397, %c79] : memref<48x80xbf16, #tpu.memory_space<vmem>>, vector<48x1xbf16>
    tpu.vector_store %arg15[%c0_397, %c79], %269 {strides = array<i32>} : memref<48x80xbf16, #tpu.memory_space<vmem>>, vector<48x1xbf16>,
    %c0_398 = arith.constant 0 : index
    %c0_399 = arith.constant 0 : index
    %319 = vector.load %arg15[%c0_398, %c0_399] : memref<48x80xbf16, #tpu.memory_space<vmem>>, vector<48x8xbf16>
    %c0_400 = arith.constant 0 : index
    %c0_401 = arith.constant 0 : index
    %320 = vector.load %arg16[%c0_400, %c0_401] : memref<256x32xbf16, #tpu.memory_space<vmem>>, vector<48x8xbf16>
    tpu.vector_store %arg16[%c0_400, %c0_401], %319 {strides = array<i32>} : memref<256x32xbf16, #tpu.memory_space<vmem>>, vector<48x8xbf16>,
    %c0_402 = arith.constant 0 : index
    %c10 = arith.constant 10 : index
    %321 = vector.load %arg15[%c0_402, %c10] : memref<48x80xbf16, #tpu.memory_space<vmem>>, vector<48x8xbf16>
    %c48_403 = arith.constant 48 : index
    %c0_404 = arith.constant 0 : index
    %322 = vector.load %arg16[%c48_403, %c0_404] : memref<256x32xbf16, #tpu.memory_space<vmem>>, vector<48x8xbf16>
    tpu.vector_store %arg16[%c48_403, %c0_404], %321 {strides = array<i32>} : memref<256x32xbf16, #tpu.memory_space<vmem>>, vector<48x8xbf16>,
    %c0_405 = arith.constant 0 : index
    %c1_406 = arith.constant 1 : index
    %323 = vector.load %arg15[%c0_405, %c1_406] : memref<48x80xbf16, #tpu.memory_space<vmem>>, vector<48x8xbf16>
    %c96_407 = arith.constant 96 : index
    %c0_408 = arith.constant 0 : index
    %324 = vector.load %arg16[%c96_407, %c0_408] : memref<256x32xbf16, #tpu.memory_space<vmem>>, vector<48x8xbf16>
    tpu.vector_store %arg16[%c96_407, %c0_408], %323 {strides = array<i32>} : memref<256x32xbf16, #tpu.memory_space<vmem>>, vector<48x8xbf16>,
    %c0_409 = arith.constant 0 : index
    %c11_410 = arith.constant 11 : index
    %325 = vector.load %arg15[%c0_409, %c11_410] : memref<48x80xbf16, #tpu.memory_space<vmem>>, vector<48x8xbf16>
    %c144 = arith.constant 144 : index
    %c0_411 = arith.constant 0 : index
    %326 = vector.load %arg16[%c144, %c0_411] : memref<256x32xbf16, #tpu.memory_space<vmem>>, vector<48x8xbf16>
    tpu.vector_store %arg16[%c144, %c0_411], %325 {strides = array<i32>} : memref<256x32xbf16, #tpu.memory_space<vmem>>, vector<48x8xbf16>,
    %c0_412 = arith.constant 0 : index
    %c2_413 = arith.constant 2 : index
    %327 = vector.load %arg15[%c0_412, %c2_413] : memref<48x80xbf16, #tpu.memory_space<vmem>>, vector<48x8xbf16>
    %c192 = arith.constant 192 : index
    %c0_414 = arith.constant 0 : index
    %328 = vector.load %arg16[%c192, %c0_414] : memref<256x32xbf16, #tpu.memory_space<vmem>>, vector<48x8xbf16>
    tpu.vector_store %arg16[%c192, %c0_414], %327 {strides = array<i32>} : memref<256x32xbf16, #tpu.memory_space<vmem>>, vector<48x8xbf16>,
    %c0_415 = arith.constant 0 : index
    %c0_416 = arith.constant 0 : index
    %c2_417 = arith.constant 2 : index
    %329 = vector.load %arg1[%c0_415, %c0_416, %c2_417] : memref<4x16x12xbf16, #tpu.memory_space<vmem>>, vector<1x16x8xbf16>
    %330 = vector.shape_cast %329 : vector<1x16x8xbf16> to vector<16x8xbf16>
    %c240 = arith.constant 240 : index
    %c0_418 = arith.constant 0 : index
    %331 = vector.load %arg16[%c240, %c0_418] : memref<256x32xbf16, #tpu.memory_space<vmem>>, vector<16x8xbf16>
    tpu.vector_store %arg16[%c240, %c0_418], %330 {strides = array<i32>} : memref<256x32xbf16, #tpu.memory_space<vmem>>, vector<16x8xbf16>,
    %c0_419 = arith.constant 0 : index
    %c20_420 = arith.constant 20 : index
    %332 = vector.load %arg15[%c0_419, %c20_420] : memref<48x80xbf16, #tpu.memory_space<vmem>>, vector<48x8xbf16>
    %c0_421 = arith.constant 0 : index
    %c8_422 = arith.constant 8 : index
    %333 = vector.load %arg16[%c0_421, %c8_422] : memref<256x32xbf16, #tpu.memory_space<vmem>>, vector<48x8xbf16>
    tpu.vector_store %arg16[%c0_421, %c8_422], %332 {strides = array<i32>} : memref<256x32xbf16, #tpu.memory_space<vmem>>, vector<48x8xbf16>,
    %c0_423 = arith.constant 0 : index
    %c30 = arith.constant 30 : index
    %334 = vector.load %arg15[%c0_423, %c30] : memref<48x80xbf16, #tpu.memory_space<vmem>>, vector<48x8xbf16>
    %c48_424 = arith.constant 48 : index
    %c8_425 = arith.constant 8 : index
    %335 = vector.load %arg16[%c48_424, %c8_425] : memref<256x32xbf16, #tpu.memory_space<vmem>>, vector<48x8xbf16>
    tpu.vector_store %arg16[%c48_424, %c8_425], %334 {strides = array<i32>} : memref<256x32xbf16, #tpu.memory_space<vmem>>, vector<48x8xbf16>,
    %c0_426 = arith.constant 0 : index
    %c21_427 = arith.constant 21 : index
    %336 = vector.load %arg15[%c0_426, %c21_427] : memref<48x80xbf16, #tpu.memory_space<vmem>>, vector<48x8xbf16>
    %c96_428 = arith.constant 96 : index
    %c8_429 = arith.constant 8 : index
    %337 = vector.load %arg16[%c96_428, %c8_429] : memref<256x32xbf16, #tpu.memory_space<vmem>>, vector<48x8xbf16>
    tpu.vector_store %arg16[%c96_428, %c8_429], %336 {strides = array<i32>} : memref<256x32xbf16, #tpu.memory_space<vmem>>, vector<48x8xbf16>,
    %c0_430 = arith.constant 0 : index
    %c31_431 = arith.constant 31 : index
    %338 = vector.load %arg15[%c0_430, %c31_431] : memref<48x80xbf16, #tpu.memory_space<vmem>>, vector<48x8xbf16>
    %c144_432 = arith.constant 144 : index
    %c8_433 = arith.constant 8 : index
    %339 = vector.load %arg16[%c144_432, %c8_433] : memref<256x32xbf16, #tpu.memory_space<vmem>>, vector<48x8xbf16>
    tpu.vector_store %arg16[%c144_432, %c8_433], %338 {strides = array<i32>} : memref<256x32xbf16, #tpu.memory_space<vmem>>, vector<48x8xbf16>,
    %c0_434 = arith.constant 0 : index
    %c22 = arith.constant 22 : index
    %340 = vector.load %arg15[%c0_434, %c22] : memref<48x80xbf16, #tpu.memory_space<vmem>>, vector<48x8xbf16>
    %c192_435 = arith.constant 192 : index
    %c8_436 = arith.constant 8 : index
    %341 = vector.load %arg16[%c192_435, %c8_436] : memref<256x32xbf16, #tpu.memory_space<vmem>>, vector<48x8xbf16>
    tpu.vector_store %arg16[%c192_435, %c8_436], %340 {strides = array<i32>} : memref<256x32xbf16, #tpu.memory_space<vmem>>, vector<48x8xbf16>,
    %c1_437 = arith.constant 1 : index
    %c0_438 = arith.constant 0 : index
    %c2_439 = arith.constant 2 : index
    %342 = vector.load %arg1[%c1_437, %c0_438, %c2_439] : memref<4x16x12xbf16, #tpu.memory_space<vmem>>, vector<1x16x8xbf16>
    %343 = vector.shape_cast %342 : vector<1x16x8xbf16> to vector<16x8xbf16>
    %c240_440 = arith.constant 240 : index
    %c8_441 = arith.constant 8 : index
    %344 = vector.load %arg16[%c240_440, %c8_441] : memref<256x32xbf16, #tpu.memory_space<vmem>>, vector<16x8xbf16>
    tpu.vector_store %arg16[%c240_440, %c8_441], %343 {strides = array<i32>} : memref<256x32xbf16, #tpu.memory_space<vmem>>, vector<16x8xbf16>,
    %c0_442 = arith.constant 0 : index
    %c40_443 = arith.constant 40 : index
    %345 = vector.load %arg15[%c0_442, %c40_443] : memref<48x80xbf16, #tpu.memory_space<vmem>>, vector<48x8xbf16>
    %c0_444 = arith.constant 0 : index
    %c16_445 = arith.constant 16 : index
    %346 = vector.load %arg16[%c0_444, %c16_445] : memref<256x32xbf16, #tpu.memory_space<vmem>>, vector<48x8xbf16>
    tpu.vector_store %arg16[%c0_444, %c16_445], %345 {strides = array<i32>} : memref<256x32xbf16, #tpu.memory_space<vmem>>, vector<48x8xbf16>,
    %c0_446 = arith.constant 0 : index
    %c50 = arith.constant 50 : index
    %347 = vector.load %arg15[%c0_446, %c50] : memref<48x80xbf16, #tpu.memory_space<vmem>>, vector<48x8xbf16>
    %c48_447 = arith.constant 48 : index
    %c16_448 = arith.constant 16 : index
    %348 = vector.load %arg16[%c48_447, %c16_448] : memref<256x32xbf16, #tpu.memory_space<vmem>>, vector<48x8xbf16>
    tpu.vector_store %arg16[%c48_447, %c16_448], %347 {strides = array<i32>} : memref<256x32xbf16, #tpu.memory_space<vmem>>, vector<48x8xbf16>,
    %c0_449 = arith.constant 0 : index
    %c41_450 = arith.constant 41 : index
    %349 = vector.load %arg15[%c0_449, %c41_450] : memref<48x80xbf16, #tpu.memory_space<vmem>>, vector<48x8xbf16>
    %c96_451 = arith.constant 96 : index
    %c16_452 = arith.constant 16 : index
    %350 = vector.load %arg16[%c96_451, %c16_452] : memref<256x32xbf16, #tpu.memory_space<vmem>>, vector<48x8xbf16>
    tpu.vector_store %arg16[%c96_451, %c16_452], %349 {strides = array<i32>} : memref<256x32xbf16, #tpu.memory_space<vmem>>, vector<48x8xbf16>,
    %c0_453 = arith.constant 0 : index
    %c51_454 = arith.constant 51 : index
    %351 = vector.load %arg15[%c0_453, %c51_454] : memref<48x80xbf16, #tpu.memory_space<vmem>>, vector<48x8xbf16>
    %c144_455 = arith.constant 144 : index
    %c16_456 = arith.constant 16 : index
    %352 = vector.load %arg16[%c144_455, %c16_456] : memref<256x32xbf16, #tpu.memory_space<vmem>>, vector<48x8xbf16>
    tpu.vector_store %arg16[%c144_455, %c16_456], %351 {strides = array<i32>} : memref<256x32xbf16, #tpu.memory_space<vmem>>, vector<48x8xbf16>,
    %c0_457 = arith.constant 0 : index
    %c42 = arith.constant 42 : index
    %353 = vector.load %arg15[%c0_457, %c42] : memref<48x80xbf16, #tpu.memory_space<vmem>>, vector<48x8xbf16>
    %c192_458 = arith.constant 192 : index
    %c16_459 = arith.constant 16 : index
    %354 = vector.load %arg16[%c192_458, %c16_459] : memref<256x32xbf16, #tpu.memory_space<vmem>>, vector<48x8xbf16>
    tpu.vector_store %arg16[%c192_458, %c16_459], %353 {strides = array<i32>} : memref<256x32xbf16, #tpu.memory_space<vmem>>, vector<48x8xbf16>,
    %c2_460 = arith.constant 2 : index
    %c0_461 = arith.constant 0 : index
    %c2_462 = arith.constant 2 : index
    %355 = vector.load %arg1[%c2_460, %c0_461, %c2_462] : memref<4x16x12xbf16, #tpu.memory_space<vmem>>, vector<1x16x8xbf16>
    %356 = vector.shape_cast %355 : vector<1x16x8xbf16> to vector<16x8xbf16>
    %c240_463 = arith.constant 240 : index
    %c16_464 = arith.constant 16 : index
    %357 = vector.load %arg16[%c240_463, %c16_464] : memref<256x32xbf16, #tpu.memory_space<vmem>>, vector<16x8xbf16>
    tpu.vector_store %arg16[%c240_463, %c16_464], %356 {strides = array<i32>} : memref<256x32xbf16, #tpu.memory_space<vmem>>, vector<16x8xbf16>,
    %c0_465 = arith.constant 0 : index
    %c60_466 = arith.constant 60 : index
    %358 = vector.load %arg15[%c0_465, %c60_466] : memref<48x80xbf16, #tpu.memory_space<vmem>>, vector<48x8xbf16>
    %c0_467 = arith.constant 0 : index
    %c24_468 = arith.constant 24 : index
    %359 = vector.load %arg16[%c0_467, %c24_468] : memref<256x32xbf16, #tpu.memory_space<vmem>>, vector<48x8xbf16>
    tpu.vector_store %arg16[%c0_467, %c24_468], %358 {strides = array<i32>} : memref<256x32xbf16, #tpu.memory_space<vmem>>, vector<48x8xbf16>,
    %c0_469 = arith.constant 0 : index
    %c70 = arith.constant 70 : index
    %360 = vector.load %arg15[%c0_469, %c70] : memref<48x80xbf16, #tpu.memory_space<vmem>>, vector<48x8xbf16>
    %c48_470 = arith.constant 48 : index
    %c24_471 = arith.constant 24 : index
    %361 = vector.load %arg16[%c48_470, %c24_471] : memref<256x32xbf16, #tpu.memory_space<vmem>>, vector<48x8xbf16>
    tpu.vector_store %arg16[%c48_470, %c24_471], %360 {strides = array<i32>} : memref<256x32xbf16, #tpu.memory_space<vmem>>, vector<48x8xbf16>,
    %c0_472 = arith.constant 0 : index
    %c61_473 = arith.constant 61 : index
    %362 = vector.load %arg15[%c0_472, %c61_473] : memref<48x80xbf16, #tpu.memory_space<vmem>>, vector<48x8xbf16>
    %c96_474 = arith.constant 96 : index
    %c24_475 = arith.constant 24 : index
    %363 = vector.load %arg16[%c96_474, %c24_475] : memref<256x32xbf16, #tpu.memory_space<vmem>>, vector<48x8xbf16>
    tpu.vector_store %arg16[%c96_474, %c24_475], %362 {strides = array<i32>} : memref<256x32xbf16, #tpu.memory_space<vmem>>, vector<48x8xbf16>,
    %c0_476 = arith.constant 0 : index
    %c71_477 = arith.constant 71 : index
    %364 = vector.load %arg15[%c0_476, %c71_477] : memref<48x80xbf16, #tpu.memory_space<vmem>>, vector<48x8xbf16>
    %c144_478 = arith.constant 144 : index
    %c24_479 = arith.constant 24 : index
    %365 = vector.load %arg16[%c144_478, %c24_479] : memref<256x32xbf16, #tpu.memory_space<vmem>>, vector<48x8xbf16>
    tpu.vector_store %arg16[%c144_478, %c24_479], %364 {strides = array<i32>} : memref<256x32xbf16, #tpu.memory_space<vmem>>, vector<48x8xbf16>,
    %c0_480 = arith.constant 0 : index
    %c62 = arith.constant 62 : index
    %366 = vector.load %arg15[%c0_480, %c62] : memref<48x80xbf16, #tpu.memory_space<vmem>>, vector<48x8xbf16>
    %c192_481 = arith.constant 192 : index
    %c24_482 = arith.constant 24 : index
    %367 = vector.load %arg16[%c192_481, %c24_482] : memref<256x32xbf16, #tpu.memory_space<vmem>>, vector<48x8xbf16>
    tpu.vector_store %arg16[%c192_481, %c24_482], %366 {strides = array<i32>} : memref<256x32xbf16, #tpu.memory_space<vmem>>, vector<48x8xbf16>,
    %c3_483 = arith.constant 3 : index
    %c0_484 = arith.constant 0 : index
    %c2_485 = arith.constant 2 : index
    %368 = vector.load %arg1[%c3_483, %c0_484, %c2_485] : memref<4x16x12xbf16, #tpu.memory_space<vmem>>, vector<1x16x8xbf16>
    %369 = vector.shape_cast %368 : vector<1x16x8xbf16> to vector<16x8xbf16>
    %c240_486 = arith.constant 240 : index
    %c24_487 = arith.constant 24 : index
    %370 = vector.load %arg16[%c240_486, %c24_487] : memref<256x32xbf16, #tpu.memory_space<vmem>>, vector<16x8xbf16>
    tpu.vector_store %arg16[%c240_486, %c24_487], %369 {strides = array<i32>} : memref<256x32xbf16, #tpu.memory_space<vmem>>, vector<16x8xbf16>,
    %c0_488 = arith.constant 0 : index
    %c0_489 = arith.constant 0 : index
    %371 = vector.load %arg9[%c0_488, %c0_489] : memref<8x240xbf16, #tpu.memory_space<vmem>>, vector<8x240xbf16>
    %c0_490 = arith.constant 0 : index
    %c0_491 = arith.constant 0 : index
    %372 = vector.load %arg16[%c0_490, %c0_491] : memref<256x32xbf16, #tpu.memory_space<vmem>>, vector<240x32xbf16>
    %cst_492 = arith.constant dense<0.000000e+00> : vector<8x32xf32>
    %373 = tpu.matmul %371, %372, %cst_492 {dimension_numbers = #tpu.dot_dimension_numbers<[1], [0], [0], [1], [0, 0, 1, 1], [], []>} : vector<8x240xbf16>, vector<240x32xbf16>, vector<8x32xf32> -> vector<8x32xf32>
    %c0_493 = arith.constant 0 : index
    %c0_494 = arith.constant 0 : index
    %374 = vector.load %arg10[%c0_493, %c0_494] : memref<8x1xf32, #tpu.memory_space<vmem>>, vector<8x1xf32>
    %375 = vector.broadcast %374 : vector<8x1xf32> to vector<8x32xf32>
    %376 = arith.addf %373, %375 : vector<8x32xf32>
    %cst_495 = arith.constant 0.000000e+00 : f32
    %377 = vector.broadcast %cst_495 : f32 to vector<8x32xf32>
    %378 = arith.cmpf oge, %376, %377 : vector<8x32xf32>
    %cst_496 = arith.constant 0.00999999977 : f32
    %379 = vector.broadcast %cst_496 : f32 to vector<8x32xf32>
    %380 = arith.mulf %379, %376 : vector<8x32xf32>
    %381 = arith.select %378, %376, %380 : vector<8x32xi1>, vector<8x32xf32>
    %c0_497 = arith.constant 0 : index
    %c0_498 = arith.constant 0 : index
    %382 = vector.load %arg11[%c0_497, %c0_498] : memref<8x16xbf16, #tpu.memory_space<vmem>>, vector<8x16xbf16>
    %c240_499 = arith.constant 240 : index
    %c0_500 = arith.constant 0 : index
    %383 = vector.load %arg16[%c240_499, %c0_500] : memref<256x32xbf16, #tpu.memory_space<vmem>>, vector<16x32xbf16>
    %cst_501 = arith.constant dense<0.000000e+00> : vector<8x32xf32>
    %384 = tpu.matmul %382, %383, %cst_501 {dimension_numbers = #tpu.dot_dimension_numbers<[1], [0], [0], [1], [0, 0, 1, 1], [], []>} : vector<8x16xbf16>, vector<16x32xbf16>, vector<8x32xf32> -> vector<8x32xf32>
    %c0_502 = arith.constant 0 : index
    %c0_503 = arith.constant 0 : index
    %385 = vector.load %arg12[%c0_502, %c0_503] : memref<8x1xf32, #tpu.memory_space<vmem>>, vector<8x1xf32>
    %386 = vector.broadcast %385 : vector<8x1xf32> to vector<8x32xf32>
    %387 = arith.addf %384, %386 : vector<8x32xf32>
    %cst_504 = arith.constant 0.000000e+00 : f32
    %388 = vector.broadcast %cst_504 : f32 to vector<8x32xf32>
    %389 = arith.maximumf %387, %388 : vector<8x32xf32>
    %390 = arith.addf %381, %389 : vector<8x32xf32>
    %391 = vector.extract_strided_slice %390 {offsets = [0, 0], sizes = [8, 8], strides = [1, 1]} : vector<8x32xf32> to vector<8x8xf32>
    %c0_505 = arith.constant 0 : index
    %c0_506 = arith.constant 0 : index
    %c0_507 = arith.constant 0 : index
    %392 = vector.load %arg13[%c0_505, %c0_506, %c0_507] : memref<4x8x8xf32, #tpu.memory_space<vmem>>, vector<1x8x8xf32>
    %393 = vector.shape_cast %392 : vector<1x8x8xf32> to vector<8x8xf32>
    %394 = vector.shape_cast %391 : vector<8x8xf32> to vector<1x8x8xf32>
    tpu.vector_store %arg13[%c0_505, %c0_506, %c0_507], %394 {strides = array<i32>} : memref<4x8x8xf32, #tpu.memory_space<vmem>>, vector<1x8x8xf32>,
    %395 = vector.extract_strided_slice %390 {offsets = [0, 8], sizes = [8, 8], strides = [1, 1]} : vector<8x32xf32> to vector<8x8xf32>
    %c1_508 = arith.constant 1 : index
    %c0_509 = arith.constant 0 : index
    %c0_510 = arith.constant 0 : index
    %396 = vector.load %arg13[%c1_508, %c0_509, %c0_510] : memref<4x8x8xf32, #tpu.memory_space<vmem>>, vector<1x8x8xf32>
    %397 = vector.shape_cast %396 : vector<1x8x8xf32> to vector<8x8xf32>
    %398 = vector.shape_cast %395 : vector<8x8xf32> to vector<1x8x8xf32>
    tpu.vector_store %arg13[%c1_508, %c0_509, %c0_510], %398 {strides = array<i32>} : memref<4x8x8xf32, #tpu.memory_space<vmem>>, vector<1x8x8xf32>,
    %399 = vector.extract_strided_slice %390 {offsets = [0, 16], sizes = [8, 8], strides = [1, 1]} : vector<8x32xf32> to vector<8x8xf32>
    %c2_511 = arith.constant 2 : index
    %c0_512 = arith.constant 0 : index
    %c0_513 = arith.constant 0 : index
    %400 = vector.load %arg13[%c2_511, %c0_512, %c0_513] : memref<4x8x8xf32, #tpu.memory_space<vmem>>, vector<1x8x8xf32>
    %401 = vector.shape_cast %400 : vector<1x8x8xf32> to vector<8x8xf32>
    %402 = vector.shape_cast %399 : vector<8x8xf32> to vector<1x8x8xf32>
    tpu.vector_store %arg13[%c2_511, %c0_512, %c0_513], %402 {strides = array<i32>} : memref<4x8x8xf32, #tpu.memory_space<vmem>>, vector<1x8x8xf32>,
    %403 = vector.extract_strided_slice %390 {offsets = [0, 24], sizes = [8, 8], strides = [1, 1]} : vector<8x32xf32> to vector<8x8xf32>
    %c3_514 = arith.constant 3 : index
    %c0_515 = arith.constant 0 : index
    %c0_516 = arith.constant 0 : index
    %404 = vector.load %arg13[%c3_514, %c0_515, %c0_516] : memref<4x8x8xf32, #tpu.memory_space<vmem>>, vector<1x8x8xf32>
    %405 = vector.shape_cast %404 : vector<1x8x8xf32> to vector<8x8xf32>
    %406 = vector.shape_cast %403 : vector<8x8xf32> to vector<1x8x8xf32>
    tpu.vector_store %arg13[%c3_514, %c0_515, %c0_516], %406 {strides = array<i32>} : memref<4x8x8xf32, #tpu.memory_space<vmem>>, vector<1x8x8xf32>,
    return
  }
  func.func @transform_0(%arg0: i32) -> (i32, i32, i32) {
    %c0_i32 = arith.constant 0 : i32
    %c0_i32_0 = arith.constant 0 : i32
    %c0_i32_1 = arith.constant 0 : i32
    return %arg0, %c0_i32, %c0_i32_0 : i32, i32, i32
  }
  func.func @transform_1(%arg0: i32) -> (i32, i32, i32) {
    %c0_i32 = arith.constant 0 : i32
    %c0_i32_0 = arith.constant 0 : i32
    %c0_i32_1 = arith.constant 0 : i32
    return %arg0, %c0_i32, %c0_i32_0 : i32, i32, i32
  }
  func.func @transform_2(%arg0: i32) -> (i32, i32) {
    %c0_i32 = arith.constant 0 : i32
    %c0_i32_0 = arith.constant 0 : i32
    %c0_i32_1 = arith.constant 0 : i32
    return %c0_i32, %c0_i32_0 : i32, i32
  }
  func.func @transform_3(%arg0: i32) -> (i32, i32) {
    %c0_i32 = arith.constant 0 : i32
    %c0_i32_0 = arith.constant 0 : i32
    %c0_i32_1 = arith.constant 0 : i32
    return %c0_i32, %c0_i32_0 : i32, i32
  }
  func.func @transform_4(%arg0: i32) -> (i32, i32) {
    %c0_i32 = arith.constant 0 : i32
    %c0_i32_0 = arith.constant 0 : i32
    %c0_i32_1 = arith.constant 0 : i32
    return %c0_i32, %c0_i32_0 : i32, i32
  }
  func.func @transform_5(%arg0: i32) -> (i32, i32) {
    %c0_i32 = arith.constant 0 : i32
    %c0_i32_0 = arith.constant 0 : i32
    %c0_i32_1 = arith.constant 0 : i32
    return %c0_i32, %c0_i32_0 : i32, i32
  }
  func.func @transform_6(%arg0: i32) -> (i32, i32) {
    %c0_i32 = arith.constant 0 : i32
    %c0_i32_0 = arith.constant 0 : i32
    %c0_i32_1 = arith.constant 0 : i32
    return %c0_i32, %c0_i32_0 : i32, i32
  }
  func.func @transform_7(%arg0: i32) -> (i32, i32) {
    %c0_i32 = arith.constant 0 : i32
    %c0_i32_0 = arith.constant 0 : i32
    %c0_i32_1 = arith.constant 0 : i32
    return %c0_i32, %c0_i32_0 : i32, i32
  }
  func.func @transform_8(%arg0: i32) -> (i32, i32) {
    %c0_i32 = arith.constant 0 : i32
    %c0_i32_0 = arith.constant 0 : i32
    %c0_i32_1 = arith.constant 0 : i32
    return %c0_i32, %c0_i32_0 : i32, i32
  }
  func.func @transform_9(%arg0: i32) -> (i32, i32) {
    %c0_i32 = arith.constant 0 : i32
    %c0_i32_0 = arith.constant 0 : i32
    %c0_i32_1 = arith.constant 0 : i32
    return %c0_i32, %c0_i32_0 : i32, i32
  }
  func.func @transform_10(%arg0: i32) -> (i32, i32) {
    %c0_i32 = arith.constant 0 : i32
    %c0_i32_0 = arith.constant 0 : i32
    %c0_i32_1 = arith.constant 0 : i32
    return %c0_i32, %c0_i32_0 : i32, i32
  }
  func.func @transform_11(%arg0: i32) -> (i32, i32) {
    %c0_i32 = arith.constant 0 : i32
    %c0_i32_0 = arith.constant 0 : i32
    %c0_i32_1 = arith.constant 0 : i32
    return %c0_i32, %c0_i32_0 : i32, i32
  }
  func.func @transform_12(%arg0: i32) -> (i32, i32, i32) {
    %c0_i32 = arith.constant 0 : i32
    %c0_i32_0 = arith.constant 0 : i32
    %c0_i32_1 = arith.constant 0 : i32
    return %arg0, %c0_i32, %c0_i32_0 : i32, i32, i32
  }
}

</mosaic_0001>

<llo_original>
// kernel: bottleneck_forward.1
$region0: #{bottleneck_forward.1}
  #allocation0 [shape = 'u32[]', space=smem, size = 0x4, offset = 0x4, fixed_abs, tag = 'smem constant byte address 0x4 - core index']
  #allocation1 [shape = 'u32[72,128]{1,0:T(1,128)}', space=vmem, size = 0x9000, scoped, tag = 'internal scratch']
  #allocation2 [shape = 'bf16[144,64]{1,0:T(8,128)(2,1)}', space=vmem, size = 0x9000, scoped, tag = 'scratch operand']
  #allocation3 [shape = 'bf16[48,80]{1,0:T(8,128)(2,1)}', space=vmem, size = 0x3000, scoped, tag = 'scratch operand']
  #allocation4 [shape = 'bf16[256,32]{1,0:T(8,128)(2,1)}', space=vmem, size = 0x10000, scoped, tag = 'scratch operand']
  %s0 = inlined_call_operand.vmem [shape: bf16[4,16,12], index: 0, kind: input, shape index: {}]
  %s1 = inlined_call_operand.vmem [shape: bf16[4,16,12], index: 1, kind: input, shape index: {}]
  %s2 = inlined_call_operand.vmem [shape: bf16[48,144], index: 2, kind: input, shape index: {}]
  %s3 = inlined_call_operand.vmem [shape: f32[48,1], index: 3, kind: input, shape index: {}]
  %s4 = inlined_call_operand.vmem [shape: f32[16,48], index: 4, kind: input, shape index: {}]
  %s5 = inlined_call_operand.vmem [shape: f32[16,1], index: 5, kind: input, shape index: {}]
  %s6 = inlined_call_operand.vmem [shape: f32[48,16], index: 6, kind: input, shape index: {}]
  %s7 = inlined_call_operand.vmem [shape: f32[48,1], index: 7, kind: input, shape index: {}]
  %s8 = inlined_call_operand.vmem [shape: bf16[8,240], index: 8, kind: input, shape index: {}]
  %s9 = inlined_call_operand.vmem [shape: f32[8,1], index: 9, kind: input, shape index: {}]
  %s10 = inlined_call_operand.vmem [shape: bf16[8,16], index: 10, kind: input, shape index: {}]
  %s11 = inlined_call_operand.vmem [shape: f32[8,1], index: 11, kind: input, shape index: {}]
  %s12 = inlined_call_operand.hbm [shape: f32[4,8,8], index: 12, kind: output, shape index: {}]
  %s13 = sld [smem:[#allocation0]]
  $region58: #{bottleneck_forward.1} parent=0
    _
  %s15 = ssub.s32 1, %s13
  %s16 = scalar_select 0, %s15, %s13
  $region1: #{bottleneck_forward.1} parent=0
    #allocation5 [shape = 'u8[16384]{0}', space=vmem, size = 0x4000, scoped, tag = 'output window, operand 0, single buffered']
    #allocation6 [shape = 's32[1]{0}', space=sflag, size = 0x4, scoped, tag = 'scoped memory for bottleneck_forward.1']
    %17 = vsyncpa [#allocation6], 0
    // Predicated region
    $region2: #{bottleneck_forward.1} parent=1 // pred_check
      _
    $region3: #{bottleneck_forward.1} parent=1 // pred_check_branch
      %19 = sbr.rel (0) target = $region5
    $region4: #{bottleneck_forward.1} parent=1 // pred_region
      _
    $region5: #{bottleneck_forward.1} parent=1 // pred_fallthru
      _
    // Predicated region
    $region6: #{bottleneck_forward.1} parent=1 // pred_check
      _
    $region7: #{bottleneck_forward.1} parent=1 // pred_check_branch
      %21 = sbr.rel (0) target = $region9
    $region8: #{bottleneck_forward.1} parent=1 // pred_region
      _
    $region9: #{bottleneck_forward.1} parent=1 // pred_fallthru
      _
    // Predicated region
    $region10: #{bottleneck_forward.1} parent=1 // pred_check
      _
    $region11: #{bottleneck_forward.1} parent=1 // pred_check_branch
      %23 = sbr.rel (0) target = $region13
    $region12: #{bottleneck_forward.1} parent=1 // pred_region
      _
    $region13: #{bottleneck_forward.1} parent=1 // pred_fallthru
      _
    // Predicated region
    $region14: #{bottleneck_forward.1} parent=1 // pred_check
      _
    $region15: #{bottleneck_forward.1} parent=1 // pred_check_branch
      %25 = sbr.rel (0) target = $region17
    $region16: #{bottleneck_forward.1} parent=1 // pred_region
      _
    $region17: #{bottleneck_forward.1} parent=1 // pred_fallthru
      _
    // Predicated region
    $region18: #{bottleneck_forward.1} parent=1 // pred_check
      _
    $region19: #{bottleneck_forward.1} parent=1 // pred_check_branch
      %27 = sbr.rel (0) target = $region21
    $region20: #{bottleneck_forward.1} parent=1 // pred_region
      _
    $region21: #{bottleneck_forward.1} parent=1 // pred_fallthru
      _
    // Predicated region
    $region22: #{bottleneck_forward.1} parent=1 // pred_check
      _
    $region23: #{bottleneck_forward.1} parent=1 // pred_check_branch
      %29 = sbr.rel (0) target = $region25
    $region24: #{bottleneck_forward.1} parent=1 // pred_region
      _
    $region25: #{bottleneck_forward.1} parent=1 // pred_fallthru
      _
    // Predicated region
    $region26: #{bottleneck_forward.1} parent=1 // pred_check
      _
    $region27: #{bottleneck_forward.1} parent=1 // pred_check_branch
      %31 = sbr.rel (0) target = $region29
    $region28: #{bottleneck_forward.1} parent=1 // pred_region
      _
    $region29: #{bottleneck_forward.1} parent=1 // pred_fallthru
      _
    // Predicated region
    $region30: #{bottleneck_forward.1} parent=1 // pred_check
      _
    $region31: #{bottleneck_forward.1} parent=1 // pred_check_branch
      %33 = sbr.rel (0) target = $region33
    $region32: #{bottleneck_forward.1} parent=1 // pred_region
      _
    $region33: #{bottleneck_forward.1} parent=1 // pred_fallthru
      _
    // Predicated region
    $region34: #{bottleneck_forward.1} parent=1 // pred_check
      _
    $region35: #{bottleneck_forward.1} parent=1 // pred_check_branch
      %35 = sbr.rel (0) target = $region37
    $region36: #{bottleneck_forward.1} parent=1 // pred_region
      _
    $region37: #{bottleneck_forward.1} parent=1 // pred_fallthru
      _
    // Predicated region
    $region38: #{bottleneck_forward.1} parent=1 // pred_check
      _
    $region39: #{bottleneck_forward.1} parent=1 // pred_check_branch
      %37 = sbr.rel (0) target = $region41
    $region40: #{bottleneck_forward.1} parent=1 // pred_region
      _
    $region41: #{bottleneck_forward.1} parent=1 // pred_fallthru
      _
    // Predicated region
    $region42: #{bottleneck_forward.1} parent=1 // pred_check
      _
    $region43: #{bottleneck_forward.1} parent=1 // pred_check_branch
      %39 = sbr.rel (0) target = $region45
    $region44: #{bottleneck_forward.1} parent=1 // pred_region
      _
    $region45: #{bottleneck_forward.1} parent=1 // pred_fallthru
      _
    // Predicated region
    $region46: #{bottleneck_forward.1} parent=1 // pred_check
      _
    $region47: #{bottleneck_forward.1} parent=1 // pred_check_branch
      %41 = sbr.rel (0) target = $region49
    $region48: #{bottleneck_forward.1} parent=1 // pred_region
      _
    $region49: #{bottleneck_forward.1} parent=1 // pred_fallthru
      _
    %v43 = vld [vmem:[%s0] sm:$0xf]
    %v44 = vld [vmem:[%s0 + $0x4] sm:$0xf]
    %vm45 = vcmask 60416
    %46 = vst.msk [vmem:[#allocation2] sm:$0xf] %vm45, %v43
    %47 = vst.msk [vmem:[#allocation2 + $0x4] sm:$0xf] %vm45, %v44
    %v48 = vld [vmem:[%s1] sm:$0xf]
    %v49 = vld [vmem:[%s1 + $0x4] sm:$0xf]
    %52 = vrot.lane.b32.xlu0 %v48, 8
    %v53 = vpop.permute.xlu0 %52
    %54 = vrot.lane.b32.xlu0 %v49, 8
    %v55 = vpop.permute.xlu0 %54
    %vm58 = vcmask 126016
    %59 = vst.msk [vmem:[#allocation2] sm:$0xf] %vm58, %v53
    %60 = vst.msk [vmem:[#allocation2 + $0x4] sm:$0xf] %vm58, %v55
    %v61 = vld [vmem:[%s1] sm:$0xf]
    %v62 = vld [vmem:[%s1 + $0x4] sm:$0xf]
    %63 = vst.msk [vmem:[#allocation2 + $0x8] sm:$0xf] %vm45, %v61
    %64 = vst.msk [vmem:[#allocation2 + $0xc] sm:$0xf] %vm45, %v62
    %v65 = vld [vmem:[%s0] sm:$0xf]
    %v66 = vld [vmem:[%s0 + $0x4] sm:$0xf]
    %69 = vrot.lane.b32.xlu0 %v65, 7
    %v70 = vpop.permute.xlu0 %69
    %71 = vrot.lane.b32.xlu0 %v66, 7
    %v72 = vpop.permute.xlu0 %71
    %75 = vst.msk [vmem:[#allocation2 + $0x8] sm:$0xf] %vm58, %v70
    %76 = vst.msk [vmem:[#allocation2 + $0xc] sm:$0xf] %vm58, %v72
    %v77 = vld [vmem:[%s0] sm:$0xf]
    %v78 = vld [vmem:[%s0 + $0x4] sm:$0xf]
    %81 = vrot.lane.b32.xlu0 %v77, 127
    %v82 = vpop.permute.xlu0 %81
    %83 = vrot.lane.b32.xlu0 %v78, 127
    %v84 = vpop.permute.xlu0 %83
    %87 = vst.msk [vmem:[#allocation2 + $0x10] sm:$0xf] %vm45, %v82
    %88 = vst.msk [vmem:[#allocation2 + $0x14] sm:$0xf] %vm45, %v84
    %v89 = vld [vmem:[%s1] sm:$0xf]
    %v90 = vld [vmem:[%s1 + $0x4] sm:$0xf]
    %93 = vrot.lane.b32.xlu0 %v89, 7
    %v94 = vpop.permute.xlu0 %93
    %95 = vrot.lane.b32.xlu0 %v90, 7
    %v96 = vpop.permute.xlu0 %95
    %99 = vst.msk [vmem:[#allocation2 + $0x10] sm:$0xf] %vm58, %v94
    %100 = vst.msk [vmem:[#allocation2 + $0x14] sm:$0xf] %vm58, %v96
    %v101 = vld [vmem:[%s1] sm:$0xf]
    %v102 = vld [vmem:[%s1 + $0x4] sm:$0xf]
    %105 = vrot.lane.b32.xlu0 %v101, 127
    %v106 = vpop.permute.xlu0 %105
    %107 = vrot.lane.b32.xlu0 %v102, 127
    %v108 = vpop.permute.xlu0 %107
    %111 = vst.msk [vmem:[#allocation2 + $0x18] sm:$0xf] %vm45, %v106
    %112 = vst.msk [vmem:[#allocation2 + $0x1c] sm:$0xf] %vm45, %v108
    %v113 = vld [vmem:[%s0] sm:$0xf]
    %v114 = vld [vmem:[%s0 + $0x4] sm:$0xf]
    %117 = vrot.lane.b32.xlu0 %v113, 6
    %v118 = vpop.permute.xlu0 %117
    %119 = vrot.lane.b32.xlu0 %v114, 6
    %v120 = vpop.permute.xlu0 %119
    %123 = vst.msk [vmem:[#allocation2 + $0x18] sm:$0xf] %vm58, %v118
    %124 = vst.msk [vmem:[#allocation2 + $0x1c] sm:$0xf] %vm58, %v120
    %v125 = vld [vmem:[%s0] sm:$0xf]
    %v126 = vld [vmem:[%s0 + $0x4] sm:$0xf]
    %129 = vrot.lane.b32.xlu0 %v125, 126
    %v130 = vpop.permute.xlu0 %129
    %131 = vrot.lane.b32.xlu0 %v126, 126
    %v132 = vpop.permute.xlu0 %131
    %135 = vst.msk [vmem:[#allocation2 + $0x20] sm:$0xf] %vm45, %v130
    %136 = vst.msk [vmem:[#allocation2 + $0x24] sm:$0xf] %vm45, %v132
    %v137 = vld [vmem:[%s1] sm:$0xf]
    %v138 = vld [vmem:[%s1 + $0x4] sm:$0xf]
    %141 = vrot.lane.b32.xlu0 %v137, 6
    %v142 = vpop.permute.xlu0 %141
    %143 = vrot.lane.b32.xlu0 %v138, 6
    %v144 = vpop.permute.xlu0 %143
    %147 = vst.msk [vmem:[#allocation2 + $0x20] sm:$0xf] %vm58, %v142
    %148 = vst.msk [vmem:[#allocation2 + $0x24] sm:$0xf] %vm58, %v144
    %v149 = vld [vmem:[%s1] sm:$0xf]
    %v150 = vld [vmem:[%s1 + $0x4] sm:$0xf]
    %153 = vrot.lane.b32.xlu0 %v149, 126
    %v154 = vpop.permute.xlu0 %153
    %155 = vrot.lane.b32.xlu0 %v150, 126
    %v156 = vpop.permute.xlu0 %155
    %159 = vst.msk [vmem:[#allocation2 + $0x28] sm:$0xf] %vm45, %v154
    %160 = vst.msk [vmem:[#allocation2 + $0x2c] sm:$0xf] %vm45, %v156
    %v161 = vld [vmem:[%s0] sm:$0xf]
    %v162 = vld [vmem:[%s0 + $0x4] sm:$0xf]
    %165 = vrot.lane.b32.xlu0 %v161, 5
    %v166 = vpop.permute.xlu0 %165
    %167 = vrot.lane.b32.xlu0 %v162, 5
    %v168 = vpop.permute.xlu0 %167
    %171 = vst.msk [vmem:[#allocation2 + $0x28] sm:$0xf] %vm58, %v166
    %172 = vst.msk [vmem:[#allocation2 + $0x2c] sm:$0xf] %vm58, %v168
    %v173 = vld [vmem:[%s0] sm:$0xf]
    %v174 = vld [vmem:[%s0 + $0x4] sm:$0xf]
    %177 = vrot.lane.b32.xlu0 %v173, 125
    %v178 = vpop.permute.xlu0 %177
    %179 = vrot.lane.b32.xlu0 %v174, 125
    %v180 = vpop.permute.xlu0 %179
    %183 = vst.msk [vmem:[#allocation2 + $0x30] sm:$0xf] %vm45, %v178
    %184 = vst.msk [vmem:[#allocation2 + $0x34] sm:$0xf] %vm45, %v180
    %v185 = vld [vmem:[%s1] sm:$0xf]
    %v186 = vld [vmem:[%s1 + $0x4] sm:$0xf]
    %189 = vrot.lane.b32.xlu0 %v185, 5
    %v190 = vpop.permute.xlu0 %189
    %191 = vrot.lane.b32.xlu0 %v186, 5
    %v192 = vpop.permute.xlu0 %191
    %195 = vst.msk [vmem:[#allocation2 + $0x30] sm:$0xf] %vm58, %v190
    %196 = vst.msk [vmem:[#allocation2 + $0x34] sm:$0xf] %vm58, %v192
    %v197 = vld [vmem:[%s1] sm:$0xf]
    %v198 = vld [vmem:[%s1 + $0x4] sm:$0xf]
    %201 = vrot.lane.b32.xlu0 %v197, 125
    %v202 = vpop.permute.xlu0 %201
    %203 = vrot.lane.b32.xlu0 %v198, 125
    %v204 = vpop.permute.xlu0 %203
    %207 = vst.msk [vmem:[#allocation2 + $0x38] sm:$0xf] %vm45, %v202
    %208 = vst.msk [vmem:[#allocation2 + $0x3c] sm:$0xf] %vm45, %v204
    %v209 = vld [vmem:[%s0] sm:$0xf]
    %v210 = vld [vmem:[%s0 + $0x4] sm:$0xf]
    %213 = vrot.lane.b32.xlu0 %v209, 4
    %v214 = vpop.permute.xlu0 %213
    %215 = vrot.lane.b32.xlu0 %v210, 4
    %v216 = vpop.permute.xlu0 %215
    %219 = vst.msk [vmem:[#allocation2 + $0x38] sm:$0xf] %vm58, %v214
    %220 = vst.msk [vmem:[#allocation2 + $0x3c] sm:$0xf] %vm58, %v216
    %v221 = vld [vmem:[%s0] sm:$0xf]
    %v222 = vld [vmem:[%s0 + $0x4] sm:$0xf]
    %225 = vrot.lane.b32.xlu0 %v221, 124
    %v226 = vpop.permute.xlu0 %225
    %227 = vrot.lane.b32.xlu0 %v222, 124
    %v228 = vpop.permute.xlu0 %227
    %231 = vst.msk [vmem:[#allocation2 + $0x40] sm:$0xf] %vm45, %v226
    %232 = vst.msk [vmem:[#allocation2 + $0x44] sm:$0xf] %vm45, %v228
    %v233 = vld [vmem:[%s1] sm:$0xf]
    %v234 = vld [vmem:[%s1 + $0x4] sm:$0xf]
    %237 = vrot.lane.b32.xlu0 %v233, 4
    %v238 = vpop.permute.xlu0 %237
    %239 = vrot.lane.b32.xlu0 %v234, 4
    %v240 = vpop.permute.xlu0 %239
    %243 = vst.msk [vmem:[#allocation2 + $0x40] sm:$0xf] %vm58, %v238
    %244 = vst.msk [vmem:[#allocation2 + $0x44] sm:$0xf] %vm58, %v240
    %s245 = scalar_lea.vmem %s0, 8
    %v246 = vld [vmem:[%s245] sm:$0xf]
    %v247 = vld [vmem:[%s245 + $0x4] sm:$0xf]
    %250 = vrot.lane.b32.xlu0 %v246, 16
    %v251 = vpop.permute.xlu0 %250
    %252 = vrot.lane.b32.xlu0 %v247, 16
    %v253 = vpop.permute.xlu0 %252
    %vm256 = vcmask 191616
    %257 = vst.msk [vmem:[#allocation2] sm:$0xf] %vm256, %v251
    %258 = vst.msk [vmem:[#allocation2 + $0x4] sm:$0xf] %vm256, %v253
    %s259 = scalar_lea.vmem %s1, 8
    %v260 = vld [vmem:[%s259] sm:$0xf]
    %v261 = vld [vmem:[%s259 + $0x4] sm:$0xf]
    %264 = vrot.lane.b32.xlu0 %v260, 24
    %v265 = vpop.permute.xlu0 %264
    %266 = vrot.lane.b32.xlu0 %v261, 24
    %v267 = vpop.permute.xlu0 %266
    %vm270 = vcmask 257216
    %271 = vst.msk [vmem:[#allocation2] sm:$0xf] %vm270, %v265
    %272 = vst.msk [vmem:[#allocation2 + $0x4] sm:$0xf] %vm270, %v267
    %v273 = vld [vmem:[%s259] sm:$0xf]
    %v274 = vld [vmem:[%s259 + $0x4] sm:$0xf]
    %277 = vrot.lane.b32.xlu0 %v273, 16
    %v278 = vpop.permute.xlu0 %277
    %279 = vrot.lane.b32.xlu0 %v274, 16
    %v280 = vpop.permute.xlu0 %279
    %283 = vst.msk [vmem:[#allocation2 + $0x8] sm:$0xf] %vm256, %v278
    %284 = vst.msk [vmem:[#allocation2 + $0xc] sm:$0xf] %vm256, %v280
    %v285 = vld [vmem:[%s245] sm:$0xf]
    %v286 = vld [vmem:[%s245 + $0x4] sm:$0xf]
    %289 = vrot.lane.b32.xlu0 %v285, 23
    %v290 = vpop.permute.xlu0 %289
    %291 = vrot.lane.b32.xlu0 %v286, 23
    %v292 = vpop.permute.xlu0 %291
    %295 = vst.msk [vmem:[#allocation2 + $0x8] sm:$0xf] %vm270, %v290
    %296 = vst.msk [vmem:[#allocation2 + $0xc] sm:$0xf] %vm270, %v292
    %v297 = vld [vmem:[%s245] sm:$0xf]
    %v298 = vld [vmem:[%s245 + $0x4] sm:$0xf]
    %301 = vrot.lane.b32.xlu0 %v297, 15
    %v302 = vpop.permute.xlu0 %301
    %303 = vrot.lane.b32.xlu0 %v298, 15
    %v304 = vpop.permute.xlu0 %303
    %307 = vst.msk [vmem:[#allocation2 + $0x10] sm:$0xf] %vm256, %v302
    %308 = vst.msk [vmem:[#allocation2 + $0x14] sm:$0xf] %vm256, %v304
    %v309 = vld [vmem:[%s259] sm:$0xf]
    %v310 = vld [vmem:[%s259 + $0x4] sm:$0xf]
    %313 = vrot.lane.b32.xlu0 %v309, 23
    %v314 = vpop.permute.xlu0 %313
    %315 = vrot.lane.b32.xlu0 %v310, 23
    %v316 = vpop.permute.xlu0 %315
    %319 = vst.msk [vmem:[#allocation2 + $0x10] sm:$0xf] %vm270, %v314
    %320 = vst.msk [vmem:[#allocation2 + $0x14] sm:$0xf] %vm270, %v316
    %v321 = vld [vmem:[%s259] sm:$0xf]
    %v322 = vld [vmem:[%s259 + $0x4] sm:$0xf]
    %325 = vrot.lane.b32.xlu0 %v321, 15
    %v326 = vpop.permute.xlu0 %325
    %327 = vrot.lane.b32.xlu0 %v322, 15
    %v328 = vpop.permute.xlu0 %327
    %331 = vst.msk [vmem:[#allocation2 + $0x18] sm:$0xf] %vm256, %v326
    %332 = vst.msk [vmem:[#allocation2 + $0x1c] sm:$0xf] %vm256, %v328
    %v333 = vld [vmem:[%s245] sm:$0xf]
    %v334 = vld [vmem:[%s245 + $0x4] sm:$0xf]
    %337 = vrot.lane.b32.xlu0 %v333, 22
    %v338 = vpop.permute.xlu0 %337
    %339 = vrot.lane.b32.xlu0 %v334, 22
    %v340 = vpop.permute.xlu0 %339
    %343 = vst.msk [vmem:[#allocation2 + $0x18] sm:$0xf] %vm270, %v338
    %344 = vst.msk [vmem:[#allocation2 + $0x1c] sm:$0xf] %vm270, %v340
    %v345 = vld [vmem:[%s245] sm:$0xf]
    %v346 = vld [vmem:[%s245 + $0x4] sm:$0xf]
    %349 = vrot.lane.b32.xlu0 %v345, 14
    %v350 = vpop.permute.xlu0 %349
    %351 = vrot.lane.b32.xlu0 %v346, 14
    %v352 = vpop.permute.xlu0 %351
    %355 = vst.msk [vmem:[#allocation2 + $0x20] sm:$0xf] %vm256, %v350
    %356 = vst.msk [vmem:[#allocation2 + $0x24] sm:$0xf] %vm256, %v352
    %v357 = vld [vmem:[%s259] sm:$0xf]
    %v358 = vld [vmem:[%s259 + $0x4] sm:$0xf]
    %361 = vrot.lane.b32.xlu0 %v357, 22
    %v362 = vpop.permute.xlu0 %361
    %363 = vrot.lane.b32.xlu0 %v358, 22
    %v364 = vpop.permute.xlu0 %363
    %367 = vst.msk [vmem:[#allocation2 + $0x20] sm:$0xf] %vm270, %v362
    %368 = vst.msk [vmem:[#allocation2 + $0x24] sm:$0xf] %vm270, %v364
    %v369 = vld [vmem:[%s259] sm:$0xf]
    %v370 = vld [vmem:[%s259 + $0x4] sm:$0xf]
    %373 = vrot.lane.b32.xlu0 %v369, 14
    %v374 = vpop.permute.xlu0 %373
    %375 = vrot.lane.b32.xlu0 %v370, 14
    %v376 = vpop.permute.xlu0 %375
    %379 = vst.msk [vmem:[#allocation2 + $0x28] sm:$0xf] %vm256, %v374
    %380 = vst.msk [vmem:[#allocation2 + $0x2c] sm:$0xf] %vm256, %v376
    %v381 = vld [vmem:[%s245] sm:$0xf]
    %v382 = vld [vmem:[%s245 + $0x4] sm:$0xf]
    %385 = vrot.lane.b32.xlu0 %v381, 21
    %v386 = vpop.permute.xlu0 %385
    %387 = vrot.lane.b32.xlu0 %v382, 21
    %v388 = vpop.permute.xlu0 %387
    %391 = vst.msk [vmem:[#allocation2 + $0x28] sm:$0xf] %vm270, %v386
    %392 = vst.msk [vmem:[#allocation2 + $0x2c] sm:$0xf] %vm270, %v388
    %v393 = vld [vmem:[%s245] sm:$0xf]
    %v394 = vld [vmem:[%s245 + $0x4] sm:$0xf]
    %397 = vrot.lane.b32.xlu0 %v393, 13
    %v398 = vpop.permute.xlu0 %397
    %399 = vrot.lane.b32.xlu0 %v394, 13
    %v400 = vpop.permute.xlu0 %399
    %403 = vst.msk [vmem:[#allocation2 + $0x30] sm:$0xf] %vm256, %v398
    %404 = vst.msk [vmem:[#allocation2 + $0x34] sm:$0xf] %vm256, %v400
    %v405 = vld [vmem:[%s259] sm:$0xf]
    %v406 = vld [vmem:[%s259 + $0x4] sm:$0xf]
    %409 = vrot.lane.b32.xlu0 %v405, 21
    %v410 = vpop.permute.xlu0 %409
    %411 = vrot.lane.b32.xlu0 %v406, 21
    %v412 = vpop.permute.xlu0 %411
    %415 = vst.msk [vmem:[#allocation2 + $0x30] sm:$0xf] %vm270, %v410
    %416 = vst.msk [vmem:[#allocation2 + $0x34] sm:$0xf] %vm270, %v412
    %v417 = vld [vmem:[%s259] sm:$0xf]
    %v418 = vld [vmem:[%s259 + $0x4] sm:$0xf]
    %421 = vrot.lane.b32.xlu0 %v417, 13
    %v422 = vpop.permute.xlu0 %421
    %423 = vrot.lane.b32.xlu0 %v418, 13
    %v424 = vpop.permute.xlu0 %423
    %427 = vst.msk [vmem:[#allocation2 + $0x38] sm:$0xf] %vm256, %v422
    %428 = vst.msk [vmem:[#allocation2 + $0x3c] sm:$0xf] %vm256, %v424
    %v429 = vld [vmem:[%s245] sm:$0xf]
    %v430 = vld [vmem:[%s245 + $0x4] sm:$0xf]
    %433 = vrot.lane.b32.xlu0 %v429, 20
    %v434 = vpop.permute.xlu0 %433
    %435 = vrot.lane.b32.xlu0 %v430, 20
    %v436 = vpop.permute.xlu0 %435
    %439 = vst.msk [vmem:[#allocation2 + $0x38] sm:$0xf] %vm270, %v434
    %440 = vst.msk [vmem:[#allocation2 + $0x3c] sm:$0xf] %vm270, %v436
    %v441 = vld [vmem:[%s245] sm:$0xf]
    %v442 = vld [vmem:[%s245 + $0x4] sm:$0xf]
    %445 = vrot.lane.b32.xlu0 %v441, 12
    %v446 = vpop.permute.xlu0 %445
    %447 = vrot.lane.b32.xlu0 %v442, 12
    %v448 = vpop.permute.xlu0 %447
    %451 = vst.msk [vmem:[#allocation2 + $0x40] sm:$0xf] %vm256, %v446
    %452 = vst.msk [vmem:[#allocation2 + $0x44] sm:$0xf] %vm256, %v448
    %v453 = vld [vmem:[%s259] sm:$0xf]
    %v454 = vld [vmem:[%s259 + $0x4] sm:$0xf]
    %457 = vrot.lane.b32.xlu0 %v453, 20
    %v458 = vpop.permute.xlu0 %457
    %459 = vrot.lane.b32.xlu0 %v454, 20
    %v460 = vpop.permute.xlu0 %459
    %463 = vst.msk [vmem:[#allocation2 + $0x40] sm:$0xf] %vm270, %v458
    %464 = vst.msk [vmem:[#allocation2 + $0x44] sm:$0xf] %vm270, %v460
    %s465 = scalar_lea.vmem %s0, 16
    %v466 = vld [vmem:[%s465] sm:$0xf]
    %v467 = vld [vmem:[%s465 + $0x4] sm:$0xf]
    %470 = vrot.lane.b32.xlu0 %v466, 32
    %v471 = vpop.permute.xlu0 %470
    %472 = vrot.lane.b32.xlu0 %v467, 32
    %v473 = vpop.permute.xlu0 %472
    %vm476 = vcmask 322816
    %477 = vst.msk [vmem:[#allocation2] sm:$0xf] %vm476, %v471
    %478 = vst.msk [vmem:[#allocation2 + $0x4] sm:$0xf] %vm476, %v473
    %s479 = scalar_lea.vmem %s1, 16
    %v480 = vld [vmem:[%s479] sm:$0xf]
    %v481 = vld [vmem:[%s479 + $0x4] sm:$0xf]
    %484 = vrot.lane.b32.xlu0 %v480, 40
    %v485 = vpop.permute.xlu0 %484
    %486 = vrot.lane.b32.xlu0 %v481, 40
    %v487 = vpop.permute.xlu0 %486
    %vm490 = vcmask 388416
    %491 = vst.msk [vmem:[#allocation2] sm:$0xf] %vm490, %v485
    %492 = vst.msk [vmem:[#allocation2 + $0x4] sm:$0xf] %vm490, %v487
    %v493 = vld [vmem:[%s479] sm:$0xf]
    %v494 = vld [vmem:[%s479 + $0x4] sm:$0xf]
    %497 = vrot.lane.b32.xlu0 %v493, 32
    %v498 = vpop.permute.xlu0 %497
    %499 = vrot.lane.b32.xlu0 %v494, 32
    %v500 = vpop.permute.xlu0 %499
    %503 = vst.msk [vmem:[#allocation2 + $0x8] sm:$0xf] %vm476, %v498
    %504 = vst.msk [vmem:[#allocation2 + $0xc] sm:$0xf] %vm476, %v500
    %v505 = vld [vmem:[%s465] sm:$0xf]
    %v506 = vld [vmem:[%s465 + $0x4] sm:$0xf]
    %509 = vrot.lane.b32.xlu0 %v505, 39
    %v510 = vpop.permute.xlu0 %509
    %511 = vrot.lane.b32.xlu0 %v506, 39
    %v512 = vpop.permute.xlu0 %511
    %515 = vst.msk [vmem:[#allocation2 + $0x8] sm:$0xf] %vm490, %v510
    %516 = vst.msk [vmem:[#allocation2 + $0xc] sm:$0xf] %vm490, %v512
    %v517 = vld [vmem:[%s465] sm:$0xf]
    %v518 = vld [vmem:[%s465 + $0x4] sm:$0xf]
    %521 = vrot.lane.b32.xlu0 %v517, 31
    %v522 = vpop.permute.xlu0 %521
    %523 = vrot.lane.b32.xlu0 %v518, 31
    %v524 = vpop.permute.xlu0 %523
    %527 = vst.msk [vmem:[#allocation2 + $0x10] sm:$0xf] %vm476, %v522
    %528 = vst.msk [vmem:[#allocation2 + $0x14] sm:$0xf] %vm476, %v524
    %v529 = vld [vmem:[%s479] sm:$0xf]
    %v530 = vld [vmem:[%s479 + $0x4] sm:$0xf]
    %533 = vrot.lane.b32.xlu0 %v529, 39
    %v534 = vpop.permute.xlu0 %533
    %535 = vrot.lane.b32.xlu0 %v530, 39
    %v536 = vpop.permute.xlu0 %535
    %539 = vst.msk [vmem:[#allocation2 + $0x10] sm:$0xf] %vm490, %v534
    %540 = vst.msk [vmem:[#allocation2 + $0x14] sm:$0xf] %vm490, %v536
    %v541 = vld [vmem:[%s479] sm:$0xf]
    %v542 = vld [vmem:[%s479 + $0x4] sm:$0xf]
    %545 = vrot.lane.b32.xlu0 %v541, 31
    %v546 = vpop.permute.xlu0 %545
    %547 = vrot.lane.b32.xlu0 %v542, 31
    %v548 = vpop.permute.xlu0 %547
    %551 = vst.msk [vmem:[#allocation2 + $0x18] sm:$0xf] %vm476, %v546
    %552 = vst.msk [vmem:[#allocation2 + $0x1c] sm:$0xf] %vm476, %v548
    %v553 = vld [vmem:[%s465] sm:$0xf]
    %v554 = vld [vmem:[%s465 + $0x4] sm:$0xf]
    %557 = vrot.lane.b32.xlu0 %v553, 38
    %v558 = vpop.permute.xlu0 %557
    %559 = vrot.lane.b32.xlu0 %v554, 38
    %v560 = vpop.permute.xlu0 %559
    %563 = vst.msk [vmem:[#allocation2 + $0x18] sm:$0xf] %vm490, %v558
    %564 = vst.msk [vmem:[#allocation2 + $0x1c] sm:$0xf] %vm490, %v560
    %v565 = vld [vmem:[%s465] sm:$0xf]
    %v566 = vld [vmem:[%s465 + $0x4] sm:$0xf]
    %569 = vrot.lane.b32.xlu0 %v565, 30
    %v570 = vpop.permute.xlu0 %569
    %571 = vrot.lane.b32.xlu0 %v566, 30
    %v572 = vpop.permute.xlu0 %571
    %575 = vst.msk [vmem:[#allocation2 + $0x20] sm:$0xf] %vm476, %v570
    %576 = vst.msk [vmem:[#allocation2 + $0x24] sm:$0xf] %vm476, %v572
    %v577 = vld [vmem:[%s479] sm:$0xf]
    %v578 = vld [vmem:[%s479 + $0x4] sm:$0xf]
    %581 = vrot.lane.b32.xlu0 %v577, 38
    %v582 = vpop.permute.xlu0 %581
    %583 = vrot.lane.b32.xlu0 %v578, 38
    %v584 = vpop.permute.xlu0 %583
    %587 = vst.msk [vmem:[#allocation2 + $0x20] sm:$0xf] %vm490, %v582
    %588 = vst.msk [vmem:[#allocation2 + $0x24] sm:$0xf] %vm490, %v584
    %v589 = vld [vmem:[%s479] sm:$0xf]
    %v590 = vld [vmem:[%s479 + $0x4] sm:$0xf]
    %593 = vrot.lane.b32.xlu0 %v589, 30
    %v594 = vpop.permute.xlu0 %593
    %595 = vrot.lane.b32.xlu0 %v590, 30
    %v596 = vpop.permute.xlu0 %595
    %599 = vst.msk [vmem:[#allocation2 + $0x28] sm:$0xf] %vm476, %v594
    %600 = vst.msk [vmem:[#allocation2 + $0x2c] sm:$0xf] %vm476, %v596
    %v601 = vld [vmem:[%s465] sm:$0xf]
    %v602 = vld [vmem:[%s465 + $0x4] sm:$0xf]
    %605 = vrot.lane.b32.xlu0 %v601, 37
    %v606 = vpop.permute.xlu0 %605
    %607 = vrot.lane.b32.xlu0 %v602, 37
    %v608 = vpop.permute.xlu0 %607
    %611 = vst.msk [vmem:[#allocation2 + $0x28] sm:$0xf] %vm490, %v606
    %612 = vst.msk [vmem:[#allocation2 + $0x2c] sm:$0xf] %vm490, %v608
    %v613 = vld [vmem:[%s465] sm:$0xf]
    %v614 = vld [vmem:[%s465 + $0x4] sm:$0xf]
    %617 = vrot.lane.b32.xlu0 %v613, 29
    %v618 = vpop.permute.xlu0 %617
    %619 = vrot.lane.b32.xlu0 %v614, 29
    %v620 = vpop.permute.xlu0 %619
    %623 = vst.msk [vmem:[#allocation2 + $0x30] sm:$0xf] %vm476, %v618
    %624 = vst.msk [vmem:[#allocation2 + $0x34] sm:$0xf] %vm476, %v620
    %v625 = vld [vmem:[%s479] sm:$0xf]
    %v626 = vld [vmem:[%s479 + $0x4] sm:$0xf]
    %629 = vrot.lane.b32.xlu0 %v625, 37
    %v630 = vpop.permute.xlu0 %629
    %631 = vrot.lane.b32.xlu0 %v626, 37
    %v632 = vpop.permute.xlu0 %631
    %635 = vst.msk [vmem:[#allocation2 + $0x30] sm:$0xf] %vm490, %v630
    %636 = vst.msk [vmem:[#allocation2 + $0x34] sm:$0xf] %vm490, %v632
    %v637 = vld [vmem:[%s479] sm:$0xf]
    %v638 = vld [vmem:[%s479 + $0x4] sm:$0xf]
    %641 = vrot.lane.b32.xlu0 %v637, 29
    %v642 = vpop.permute.xlu0 %641
    %643 = vrot.lane.b32.xlu0 %v638, 29
    %v644 = vpop.permute.xlu0 %643
    %647 = vst.msk [vmem:[#allocation2 + $0x38] sm:$0xf] %vm476, %v642
    %648 = vst.msk [vmem:[#allocation2 + $0x3c] sm:$0xf] %vm476, %v644
    %v649 = vld [vmem:[%s465] sm:$0xf]
    %v650 = vld [vmem:[%s465 + $0x4] sm:$0xf]
    %653 = vrot.lane.b32.xlu0 %v649, 36
    %v654 = vpop.permute.xlu0 %653
    %655 = vrot.lane.b32.xlu0 %v650, 36
    %v656 = vpop.permute.xlu0 %655
    %659 = vst.msk [vmem:[#allocation2 + $0x38] sm:$0xf] %vm490, %v654
    %660 = vst.msk [vmem:[#allocation2 + $0x3c] sm:$0xf] %vm490, %v656
    %v661 = vld [vmem:[%s465] sm:$0xf]
    %v662 = vld [vmem:[%s465 + $0x4] sm:$0xf]
    %665 = vrot.lane.b32.xlu0 %v661, 28
    %v666 = vpop.permute.xlu0 %665
    %667 = vrot.lane.b32.xlu0 %v662, 28
    %v668 = vpop.permute.xlu0 %667
    %671 = vst.msk [vmem:[#allocation2 + $0x40] sm:$0xf] %vm476, %v666
    %672 = vst.msk [vmem:[#allocation2 + $0x44] sm:$0xf] %vm476, %v668
    %v673 = vld [vmem:[%s479] sm:$0xf]
    %v674 = vld [vmem:[%s479 + $0x4] sm:$0xf]
    %677 = vrot.lane.b32.xlu0 %v673, 36
    %v678 = vpop.permute.xlu0 %677
    %679 = vrot.lane.b32.xlu0 %v674, 36
    %v680 = vpop.permute.xlu0 %679
    %683 = vst.msk [vmem:[#allocation2 + $0x40] sm:$0xf] %vm490, %v678
    %684 = vst.msk [vmem:[#allocation2 + $0x44] sm:$0xf] %vm490, %v680
    %s685 = scalar_lea.vmem %s0, 24
    %v686 = vld [vmem:[%s685] sm:$0xf]
    %v687 = vld [vmem:[%s685 + $0x4] sm:$0xf]
    %690 = vrot.lane.b32.xlu0 %v686, 48
    %v691 = vpop.permute.xlu0 %690
    %692 = vrot.lane.b32.xlu0 %v687, 48
    %v693 = vpop.permute.xlu0 %692
    %vm696 = vcmask 454016
    %697 = vst.msk [vmem:[#allocation2] sm:$0xf] %vm696, %v691
    %698 = vst.msk [vmem:[#allocation2 + $0x4] sm:$0xf] %vm696, %v693
    %s699 = scalar_lea.vmem %s1, 24
    %v700 = vld [vmem:[%s699] sm:$0xf]
    %v701 = vld [vmem:[%s699 + $0x4] sm:$0xf]
    %704 = vrot.lane.b32.xlu0 %v700, 56
    %v705 = vpop.permute.xlu0 %704
    %706 = vrot.lane.b32.xlu0 %v701, 56
    %v707 = vpop.permute.xlu0 %706
    %vm710 = vcmask 519616
    %711 = vst.msk [vmem:[#allocation2] sm:$0xf] %vm710, %v705
    %712 = vst.msk [vmem:[#allocation2 + $0x4] sm:$0xf] %vm710, %v707
    %v713 = vld [vmem:[%s699] sm:$0xf]
    %v714 = vld [vmem:[%s699 + $0x4] sm:$0xf]
    %717 = vrot.lane.b32.xlu0 %v713, 48
    %v718 = vpop.permute.xlu0 %717
    %719 = vrot.lane.b32.xlu0 %v714, 48
    %v720 = vpop.permute.xlu0 %719
    %723 = vst.msk [vmem:[#allocation2 + $0x8] sm:$0xf] %vm696, %v718
    %724 = vst.msk [vmem:[#allocation2 + $0xc] sm:$0xf] %vm696, %v720
    %v725 = vld [vmem:[%s685] sm:$0xf]
    %v726 = vld [vmem:[%s685 + $0x4] sm:$0xf]
    %729 = vrot.lane.b32.xlu0 %v725, 55
    %v730 = vpop.permute.xlu0 %729
    %731 = vrot.lane.b32.xlu0 %v726, 55
    %v732 = vpop.permute.xlu0 %731
    %735 = vst.msk [vmem:[#allocation2 + $0x8] sm:$0xf] %vm710, %v730
    %736 = vst.msk [vmem:[#allocation2 + $0xc] sm:$0xf] %vm710, %v732
    %v737 = vld [vmem:[%s685] sm:$0xf]
    %v738 = vld [vmem:[%s685 + $0x4] sm:$0xf]
    %741 = vrot.lane.b32.xlu0 %v737, 47
    %v742 = vpop.permute.xlu0 %741
    %743 = vrot.lane.b32.xlu0 %v738, 47
    %v744 = vpop.permute.xlu0 %743
    %747 = vst.msk [vmem:[#allocation2 + $0x10] sm:$0xf] %vm696, %v742
    %748 = vst.msk [vmem:[#allocation2 + $0x14] sm:$0xf] %vm696, %v744
    %v749 = vld [vmem:[%s699] sm:$0xf]
    %v750 = vld [vmem:[%s699 + $0x4] sm:$0xf]
    %753 = vrot.lane.b32.xlu0 %v749, 55
    %v754 = vpop.permute.xlu0 %753
    %755 = vrot.lane.b32.xlu0 %v750, 55
    %v756 = vpop.permute.xlu0 %755
    %759 = vst.msk [vmem:[#allocation2 + $0x10] sm:$0xf] %vm710, %v754
    %760 = vst.msk [vmem:[#allocation2 + $0x14] sm:$0xf] %vm710, %v756
    %v761 = vld [vmem:[%s699] sm:$0xf]
    %v762 = vld [vmem:[%s699 + $0x4] sm:$0xf]
    %765 = vrot.lane.b32.xlu0 %v761, 47
    %v766 = vpop.permute.xlu0 %765
    %767 = vrot.lane.b32.xlu0 %v762, 47
    %v768 = vpop.permute.xlu0 %767
    %771 = vst.msk [vmem:[#allocation2 + $0x18] sm:$0xf] %vm696, %v766
    %772 = vst.msk [vmem:[#allocation2 + $0x1c] sm:$0xf] %vm696, %v768
    %v773 = vld [vmem:[%s685] sm:$0xf]
    %v774 = vld [vmem:[%s685 + $0x4] sm:$0xf]
    %777 = vrot.lane.b32.xlu0 %v773, 54
    %v778 = vpop.permute.xlu0 %777
    %779 = vrot.lane.b32.xlu0 %v774, 54
    %v780 = vpop.permute.xlu0 %779
    %783 = vst.msk [vmem:[#allocation2 + $0x18] sm:$0xf] %vm710, %v778
    %784 = vst.msk [vmem:[#allocation2 + $0x1c] sm:$0xf] %vm710, %v780
    %v785 = vld [vmem:[%s685] sm:$0xf]
    %v786 = vld [vmem:[%s685 + $0x4] sm:$0xf]
    %789 = vrot.lane.b32.xlu0 %v785, 46
    %v790 = vpop.permute.xlu0 %789
    %791 = vrot.lane.b32.xlu0 %v786, 46
    %v792 = vpop.permute.xlu0 %791
    %795 = vst.msk [vmem:[#allocation2 + $0x20] sm:$0xf] %vm696, %v790
    %796 = vst.msk [vmem:[#allocation2 + $0x24] sm:$0xf] %vm696, %v792
    %v797 = vld [vmem:[%s699] sm:$0xf]
    %v798 = vld [vmem:[%s699 + $0x4] sm:$0xf]
    %801 = vrot.lane.b32.xlu0 %v797, 54
    %v802 = vpop.permute.xlu0 %801
    %803 = vrot.lane.b32.xlu0 %v798, 54
    %v804 = vpop.permute.xlu0 %803
    %807 = vst.msk [vmem:[#allocation2 + $0x20] sm:$0xf] %vm710, %v802
    %808 = vst.msk [vmem:[#allocation2 + $0x24] sm:$0xf] %vm710, %v804
    %v809 = vld [vmem:[%s699] sm:$0xf]
    %v810 = vld [vmem:[%s699 + $0x4] sm:$0xf]
    %813 = vrot.lane.b32.xlu0 %v809, 46
    %v814 = vpop.permute.xlu0 %813
    %815 = vrot.lane.b32.xlu0 %v810, 46
    %v816 = vpop.permute.xlu0 %815
    %819 = vst.msk [vmem:[#allocation2 + $0x28] sm:$0xf] %vm696, %v814
    %820 = vst.msk [vmem:[#allocation2 + $0x2c] sm:$0xf] %vm696, %v816
    %v821 = vld [vmem:[%s685] sm:$0xf]
    %v822 = vld [vmem:[%s685 + $0x4] sm:$0xf]
    %825 = vrot.lane.b32.xlu0 %v821, 53
    %v826 = vpop.permute.xlu0 %825
    %827 = vrot.lane.b32.xlu0 %v822, 53
    %v828 = vpop.permute.xlu0 %827
    %831 = vst.msk [vmem:[#allocation2 + $0x28] sm:$0xf] %vm710, %v826
    %832 = vst.msk [vmem:[#allocation2 + $0x2c] sm:$0xf] %vm710, %v828
    %v833 = vld [vmem:[%s685] sm:$0xf]
    %v834 = vld [vmem:[%s685 + $0x4] sm:$0xf]
    %837 = vrot.lane.b32.xlu0 %v833, 45
    %v838 = vpop.permute.xlu0 %837
    %839 = vrot.lane.b32.xlu0 %v834, 45
    %v840 = vpop.permute.xlu0 %839
    %843 = vst.msk [vmem:[#allocation2 + $0x30] sm:$0xf] %vm696, %v838
    %844 = vst.msk [vmem:[#allocation2 + $0x34] sm:$0xf] %vm696, %v840
    %v845 = vld [vmem:[%s699] sm:$0xf]
    %v846 = vld [vmem:[%s699 + $0x4] sm:$0xf]
    %849 = vrot.lane.b32.xlu0 %v845, 53
    %v850 = vpop.permute.xlu0 %849
    %851 = vrot.lane.b32.xlu0 %v846, 53
    %v852 = vpop.permute.xlu0 %851
    %855 = vst.msk [vmem:[#allocation2 + $0x30] sm:$0xf] %vm710, %v850
    %856 = vst.msk [vmem:[#allocation2 + $0x34] sm:$0xf] %vm710, %v852
    %v857 = vld [vmem:[%s699] sm:$0xf]
    %v858 = vld [vmem:[%s699 + $0x4] sm:$0xf]
    %861 = vrot.lane.b32.xlu0 %v857, 45
    %v862 = vpop.permute.xlu0 %861
    %863 = vrot.lane.b32.xlu0 %v858, 45
    %v864 = vpop.permute.xlu0 %863
    %867 = vst.msk [vmem:[#allocation2 + $0x38] sm:$0xf] %vm696, %v862
    %868 = vst.msk [vmem:[#allocation2 + $0x3c] sm:$0xf] %vm696, %v864
    %v869 = vld [vmem:[%s685] sm:$0xf]
    %v870 = vld [vmem:[%s685 + $0x4] sm:$0xf]
    %873 = vrot.lane.b32.xlu0 %v869, 52
    %v874 = vpop.permute.xlu0 %873
    %875 = vrot.lane.b32.xlu0 %v870, 52
    %v876 = vpop.permute.xlu0 %875
    %879 = vst.msk [vmem:[#allocation2 + $0x38] sm:$0xf] %vm710, %v874
    %880 = vst.msk [vmem:[#allocation2 + $0x3c] sm:$0xf] %vm710, %v876
    %v881 = vld [vmem:[%s685] sm:$0xf]
    %v882 = vld [vmem:[%s685 + $0x4] sm:$0xf]
    %885 = vrot.lane.b32.xlu0 %v881, 44
    %v886 = vpop.permute.xlu0 %885
    %887 = vrot.lane.b32.xlu0 %v882, 44
    %v888 = vpop.permute.xlu0 %887
    %891 = vst.msk [vmem:[#allocation2 + $0x40] sm:$0xf] %vm696, %v886
    %892 = vst.msk [vmem:[#allocation2 + $0x44] sm:$0xf] %vm696, %v888
    %v893 = vld [vmem:[%s699] sm:$0xf]
    %v894 = vld [vmem:[%s699 + $0x4] sm:$0xf]
    %897 = vrot.lane.b32.xlu0 %v893, 52
    %v898 = vpop.permute.xlu0 %897
    %899 = vrot.lane.b32.xlu0 %v894, 52
    %v900 = vpop.permute.xlu0 %899
    %903 = vst.msk [vmem:[#allocation2 + $0x40] sm:$0xf] %vm710, %v898
    %904 = vst.msk [vmem:[#allocation2 + $0x44] sm:$0xf] %vm710, %v900
    %v905 = vld [vmem:[%s2] sm:$0xff]
    %v906 = vld [vmem:[%s2 + $0x8] sm:$0xff]
    %v907 = vld [vmem:[%s2 + $0x10] sm:$0xff]
    %v908 = vld [vmem:[%s2 + $0x18] sm:$0xff]
    %v909 = vld [vmem:[%s2 + $0x20] sm:$0xff]
    %v910 = vld [vmem:[%s2 + $0x28] sm:$0xff]
    %v911 = vld [vmem:[#allocation2] sm:$0xf]
    %v912 = vld [vmem:[#allocation2 + $0x4] sm:$0xf]
    %v913 = vld [vmem:[#allocation2 + $0x8] sm:$0xf]
    %v914 = vld [vmem:[#allocation2 + $0xc] sm:$0xf]
    %v915 = vld [vmem:[#allocation2 + $0x10] sm:$0xf]
    %v916 = vld [vmem:[#allocation2 + $0x14] sm:$0xf]
    %v917 = vld [vmem:[#allocation2 + $0x18] sm:$0xf]
    %v918 = vld [vmem:[#allocation2 + $0x1c] sm:$0xf]
    %v919 = vld [vmem:[#allocation2 + $0x20] sm:$0xf]
    %v920 = vld [vmem:[#allocation2 + $0x24] sm:$0xf]
    %v921 = vld [vmem:[#allocation2 + $0x28] sm:$0xf]
    %v922 = vld [vmem:[#allocation2 + $0x2c] sm:$0xf]
    %v923 = vld [vmem:[#allocation2 + $0x30] sm:$0xf]
    %v924 = vld [vmem:[#allocation2 + $0x34] sm:$0xf]
    %v925 = vld [vmem:[#allocation2 + $0x38] sm:$0xf]
    %v926 = vld [vmem:[#allocation2 + $0x3c] sm:$0xf]
    %v927 = vld [vmem:[#allocation2 + $0x40] sm:$0xf]
    %v928 = vld [vmem:[#allocation2 + $0x44] sm:$0xf]
    %v929 = vld [vmem:[%s3] sm:$0xff]
    %v930 = vld [vmem:[%s3 + $0x8] sm:$0xff]
    %v931 = vld [vmem:[%s3 + $0x10] sm:$0xff]
    %v932 = vld [vmem:[%s3 + $0x18] sm:$0xff]
    %v933 = vld [vmem:[%s3 + $0x20] sm:$0xff]
    %v934 = vld [vmem:[%s3 + $0x28] sm:$0xff]
    %936 = vset.pattern.permute.xlu0 0
    %937 = vperm.xlu0 %936, %v929
    %v938 = vpop.permute.xlu0 %937
    %941 = vset.pattern.permute.xlu0 0
    %942 = vperm.xlu0 %941, %v930
    %v943 = vpop.permute.xlu0 %942
    %946 = vset.pattern.permute.xlu0 0
    %947 = vperm.xlu0 %946, %v931
    %v948 = vpop.permute.xlu0 %947
    %951 = vset.pattern.permute.xlu0 0
    %952 = vperm.xlu0 %951, %v932
    %v953 = vpop.permute.xlu0 %952
    %956 = vset.pattern.permute.xlu0 0
    %957 = vperm.xlu0 %956, %v933
    %v958 = vpop.permute.xlu0 %957
    %961 = vset.pattern.permute.xlu0 0
    %962 = vperm.xlu0 %961, %v934
    %v963 = vpop.permute.xlu0 %962
    %v971 = vunpack.c.l.b16 %v905
    %v972 = vunpack.c.h.b16 %v905
    %v973 = vunpack.c.l.b16 %v906
    %v974 = vunpack.c.h.b16 %v906
    %v975 = vunpack.c.l.b16 %v907
    %v976 = vunpack.c.h.b16 %v907
    %v977 = vunpack.c.l.b16 %v908
    %v978 = vunpack.c.h.b16 %v908
    %v979 = vunpack.c.l.b16 %v909
    %v980 = vunpack.c.h.b16 %v909
    %v981 = vunpack.c.l.b16 %v910
    %v982 = vunpack.c.h.b16 %v910
    %v983 = vpack.c.b16 %v973, %v971
    %v984 = vpack.c.b16 %v974, %v972
    %v985 = vpack.c.b16 %v977, %v975
    %v986 = vpack.c.b16 %v978, %v976
    %v987 = vpack.c.b16 %v981, %v979
    %v988 = vpack.c.b16 %v982, %v980
    %v1010 = vunpack.c.l.b16 %v911
    %v1011 = vunpack.c.l.b16 %v912
    %v1012 = vunpack.c.l.b16 %v913
    %v1013 = vunpack.c.l.b16 %v914
    %v1014 = vunpack.c.l.b16 %v915
    %v1015 = vunpack.c.l.b16 %v916
    %v1016 = vunpack.c.l.b16 %v917
    %v1017 = vunpack.c.l.b16 %v918
    %v1018 = vunpack.c.l.b16 %v919
    %v1019 = vunpack.c.l.b16 %v920
    %v1020 = vunpack.c.l.b16 %v921
    %v1021 = vunpack.c.l.b16 %v922
    %v1022 = vunpack.c.l.b16 %v923
    %v1023 = vunpack.c.l.b16 %v924
    %v1024 = vunpack.c.l.b16 %v925
    %v1025 = vunpack.c.l.b16 %v926
    %v1026 = vunpack.c.l.b16 %v927
    %v1027 = vunpack.c.l.b16 %v928
    %v1028 = vpack.c.b16 %v1011, %v1010
    %v1029 = vpack.c.b16 %v1013, %v1012
    %v1030 = vpack.c.b16 %v1015, %v1014
    %v1031 = vpack.c.b16 %v1017, %v1016
    %v1032 = vpack.c.b16 %v1019, %v1018
    %v1033 = vpack.c.b16 %v1021, %v1020
    %v1034 = vpack.c.b16 %v1023, %v1022
    %v1035 = vpack.c.b16 %v1025, %v1024
    %v1036 = vpack.c.b16 %v1027, %v1026
    %vm1046 = vcmask 130048
    %v1048 = vsel %vm1046, %v984, 0
    %v1051 = vsel %vm1046, %v986, 0
    %v1054 = vsel %vm1046, %v988, 0
    %1056 = vmatpush.bf16.msra.mxu0 %v1035
    %1057 = vmatpush.bf16.msra.mxu0 %v1034
    %1058 = vmatpush.bf16.msra.mxu0 %v1033
    %1059 = vmatpush.bf16.msra.mxu0 %v1032
    %1060 = vmatpush.bf16.msra.mxu0 %v1031
    %1061 = vmatpush.bf16.msra.mxu0 %v1030
    %1062 = vmatpush.bf16.msra.mxu0 %v1029
    %1063 = vmatpush.bf16.msra.mxu0 %v1028
    %1064 = vmatmul.bf16.gmra.mxu0 %v983
    %v1065 = vpop.f32.mrf.mxu0
    %v1066 = vadd.f32 %v938, %v1065
    %v1067 = vpop.f32.mrf.mxu0
    %v1068 = vadd.f32 %v943, %v1067
    %1069 = vmatmul.bf16.gmra.mxu0 %v985
    %v1070 = vpop.f32.mrf.mxu0
    %v1071 = vadd.f32 %v948, %v1070
    %v1072 = vpop.f32.mrf.mxu0
    %v1073 = vadd.f32 %v953, %v1072
    %1074 = vmatmul.bf16.gmra.mxu0 %v987
    %v1075 = vpop.f32.mrf.mxu0
    %v1076 = vadd.f32 %v958, %v1075
    %v1077 = vpop.f32.mrf.mxu0
    %v1078 = vadd.f32 %v963, %v1077
    %1079 = vdwg.mxu0
    %1080 = vmatpush.bf16.msra.mxu0 0
    %1081 = vmatpush.bf16.msra.mxu0 0
    %1082 = vmatpush.bf16.msra.mxu0 0
    %1083 = vmatpush.bf16.msra.mxu0 0
    %1084 = vmatpush.bf16.msra.mxu0 0
    %1085 = vmatpush.bf16.msra.mxu0 0
    %1086 = vmatpush.bf16.msra.mxu0 0
    %1087 = vmatpush.bf16.msra.mxu0 %v1036
    %1088 = vmatmul.bf16.gmra.mxu0 %v1048
    %v1089 = vpop.f32.mrf.mxu0
    %v1090 = vadd.f32 %v1066, %v1089
    %v1091 = vpop.f32.mrf.mxu0
    %v1092 = vadd.f32 %v1068, %v1091
    %1093 = vmatmul.bf16.gmra.mxu0 %v1051
    %v1094 = vpop.f32.mrf.mxu0
    %v1095 = vadd.f32 %v1071, %v1094
    %v1096 = vpop.f32.mrf.mxu0
    %v1097 = vadd.f32 %v1073, %v1096
    %1098 = vmatmul.bf16.gmra.mxu0 %v1054
    %v1099 = vpop.f32.mrf.mxu0
    %v1100 = vadd.f32 %v1076, %v1099
    %v1101 = vpop.f32.mrf.mxu0
    %v1102 = vadd.f32 %v1078, %v1101
    %1103 = vdwg.mxu0
    %vm1104 = vcmp.ge.f32.partialorder %v1090, 0.0
    %vm1105 = vcmp.ge.f32.partialorder %v1092, 0.0
    %vm1106 = vcmp.ge.f32.partialorder %v1095, 0.0
    %vm1107 = vcmp.ge.f32.partialorder %v1097, 0.0
    %vm1108 = vcmp.ge.f32.partialorder %v1100, 0.0
    %vm1109 = vcmp.ge.f32.partialorder %v1102, 0.0
    %v1110 = vmul.f32 %v1090, 0.01
    %v1111 = vmul.f32 %v1092, 0.01
    %v1112 = vmul.f32 %v1095, 0.01
    %v1113 = vmul.f32 %v1097, 0.01
    %v1114 = vmul.f32 %v1100, 0.01
    %v1115 = vmul.f32 %v1102, 0.01
    %v1116 = vsel %vm1104, %v1090, %v1110
    %v1117 = vsel %vm1105, %v1092, %v1111
    %v1118 = vsel %vm1106, %v1095, %v1112
    %v1119 = vsel %vm1107, %v1097, %v1113
    %v1120 = vsel %vm1108, %v1100, %v1114
    %v1121 = vsel %vm1109, %v1102, %v1115
    %v1122 = vsel %vm1046, %v1116, 0.0
    %1123 = vadd.xlane.f32.xlu0 %v1122
    %v1124 = vpop.xlane.xlu0 %1123
    %v1125 = vsel %vm1046, %v1117, 0.0
    %1126 = vadd.xlane.f32.xlu0 %v1125
    %v1127 = vpop.xlane.xlu0 %1126
    %v1128 = vsel %vm1046, %v1118, 0.0
    %1129 = vadd.xlane.f32.xlu0 %v1128
    %v1130 = vpop.xlane.xlu0 %1129
    %v1131 = vsel %vm1046, %v1119, 0.0
    %1132 = vadd.xlane.f32.xlu0 %v1131
    %v1133 = vpop.xlane.xlu0 %1132
    %v1134 = vsel %vm1046, %v1120, 0.0
    %1135 = vadd.xlane.f32.xlu0 %v1134
    %v1136 = vpop.xlane.xlu0 %1135
    %v1137 = vsel %vm1046, %v1121, 0.0
    %1138 = vadd.xlane.f32.xlu0 %v1137
    %v1139 = vpop.xlane.xlu0 %1138
    %1146 = vrot.lane.b32.xlu0 %v1116, 112
    %v1147 = vpop.permute.xlu0 %1146
    %1148 = vrot.lane.b32.xlu0 %v1117, 112
    %v1149 = vpop.permute.xlu0 %1148
    %1150 = vrot.lane.b32.xlu0 %v1118, 112
    %v1151 = vpop.permute.xlu0 %1150
    %1152 = vrot.lane.b32.xlu0 %v1119, 112
    %v1153 = vpop.permute.xlu0 %1152
    %1154 = vrot.lane.b32.xlu0 %v1120, 112
    %v1155 = vpop.permute.xlu0 %1154
    %1156 = vrot.lane.b32.xlu0 %v1121, 112
    %v1157 = vpop.permute.xlu0 %1156
    %v1164 = vsel %vm1046, %v1147, 0.0
    %1165 = vadd.xlane.f32.xlu0 %v1164
    %v1166 = vpop.xlane.xlu0 %1165
    %v1167 = vsel %vm1046, %v1149, 0.0
    %1168 = vadd.xlane.f32.xlu0 %v1167
    %v1169 = vpop.xlane.xlu0 %1168
    %v1170 = vsel %vm1046, %v1151, 0.0
    %1171 = vadd.xlane.f32.xlu0 %v1170
    %v1172 = vpop.xlane.xlu0 %1171
    %v1173 = vsel %vm1046, %v1153, 0.0
    %1174 = vadd.xlane.f32.xlu0 %v1173
    %v1175 = vpop.xlane.xlu0 %1174
    %v1176 = vsel %vm1046, %v1155, 0.0
    %1177 = vadd.xlane.f32.xlu0 %v1176
    %v1178 = vpop.xlane.xlu0 %1177
    %v1179 = vsel %vm1046, %v1157, 0.0
    %1180 = vadd.xlane.f32.xlu0 %v1179
    %v1181 = vpop.xlane.xlu0 %1180
    %1182 = vrot.lane.b32.xlu0 %v1116, 96
    %v1183 = vpop.permute.xlu0 %1182
    %1184 = vrot.lane.b32.xlu0 %v1117, 96
    %v1185 = vpop.permute.xlu0 %1184
    %1186 = vrot.lane.b32.xlu0 %v1118, 96
    %v1187 = vpop.permute.xlu0 %1186
    %1188 = vrot.lane.b32.xlu0 %v1119, 96
    %v1189 = vpop.permute.xlu0 %1188
    %1190 = vrot.lane.b32.xlu0 %v1120, 96
    %v1191 = vpop.permute.xlu0 %1190
    %1192 = vrot.lane.b32.xlu0 %v1121, 96
    %v1193 = vpop.permute.xlu0 %1192
    %v1200 = vsel %vm1046, %v1183, 0.0
    %1201 = vadd.xlane.f32.xlu0 %v1200
    %v1202 = vpop.xlane.xlu0 %1201
    %v1203 = vsel %vm1046, %v1185, 0.0
    %1204 = vadd.xlane.f32.xlu0 %v1203
    %v1205 = vpop.xlane.xlu0 %1204
    %v1206 = vsel %vm1046, %v1187, 0.0
    %1207 = vadd.xlane.f32.xlu0 %v1206
    %v1208 = vpop.xlane.xlu0 %1207
    %v1209 = vsel %vm1046, %v1189, 0.0
    %1210 = vadd.xlane.f32.xlu0 %v1209
    %v1211 = vpop.xlane.xlu0 %1210
    %v1212 = vsel %vm1046, %v1191, 0.0
    %1213 = vadd.xlane.f32.xlu0 %v1212
    %v1214 = vpop.xlane.xlu0 %1213
    %v1215 = vsel %vm1046, %v1193, 0.0
    %1216 = vadd.xlane.f32.xlu0 %v1215
    %v1217 = vpop.xlane.xlu0 %1216
    %1218 = vrot.lane.b32.xlu0 %v1116, 80
    %v1219 = vpop.permute.xlu0 %1218
    %1220 = vrot.lane.b32.xlu0 %v1117, 80
    %v1221 = vpop.permute.xlu0 %1220
    %1222 = vrot.lane.b32.xlu0 %v1118, 80
    %v1223 = vpop.permute.xlu0 %1222
    %1224 = vrot.lane.b32.xlu0 %v1119, 80
    %v1225 = vpop.permute.xlu0 %1224
    %1226 = vrot.lane.b32.xlu0 %v1120, 80
    %v1227 = vpop.permute.xlu0 %1226
    %1228 = vrot.lane.b32.xlu0 %v1121, 80
    %v1229 = vpop.permute.xlu0 %1228
    %v1236 = vsel %vm1046, %v1219, 0.0
    %1237 = vadd.xlane.f32.xlu0 %v1236
    %v1238 = vpop.xlane.xlu0 %1237
    %v1239 = vsel %vm1046, %v1221, 0.0
    %1240 = vadd.xlane.f32.xlu0 %v1239
    %v1241 = vpop.xlane.xlu0 %1240
    %v1242 = vsel %vm1046, %v1223, 0.0
    %1243 = vadd.xlane.f32.xlu0 %v1242
    %v1244 = vpop.xlane.xlu0 %1243
    %v1245 = vsel %vm1046, %v1225, 0.0
    %1246 = vadd.xlane.f32.xlu0 %v1245
    %v1247 = vpop.xlane.xlu0 %1246
    %v1248 = vsel %vm1046, %v1227, 0.0
    %1249 = vadd.xlane.f32.xlu0 %v1248
    %v1250 = vpop.xlane.xlu0 %1249
    %v1251 = vsel %vm1046, %v1229, 0.0
    %1252 = vadd.xlane.f32.xlu0 %v1251
    %v1253 = vpop.xlane.xlu0 %1252
    %vm1254 = vcmask 7168
    %v1255 = vsel %vm1254, %v1124, %v1166
    %v1256 = vsel %vm1254, %v1127, %v1169
    %v1257 = vsel %vm1254, %v1130, %v1172
    %v1258 = vsel %vm1254, %v1133, %v1175
    %v1259 = vsel %vm1254, %v1136, %v1178
    %v1260 = vsel %vm1254, %v1139, %v1181
    %vm1261 = vcmask 15360
    %v1262 = vsel %vm1261, %v1255, %v1202
    %v1263 = vsel %vm1261, %v1256, %v1205
    %v1264 = vsel %vm1261, %v1257, %v1208
    %v1265 = vsel %vm1261, %v1258, %v1211
    %v1266 = vsel %vm1261, %v1259, %v1214
    %v1267 = vsel %vm1261, %v1260, %v1217
    %vm1268 = vcmask 23552
    %v1269 = vsel %vm1268, %v1262, %v1238
    %v1270 = vsel %vm1268, %v1263, %v1241
    %v1271 = vsel %vm1268, %v1264, %v1244
    %v1272 = vsel %vm1268, %v1265, %v1247
    %v1273 = vsel %vm1268, %v1266, %v1250
    %v1274 = vsel %vm1268, %v1267, %v1253
    %v1275 = vmul.f32 %v1269, 0.0625
    %v1276 = vmul.f32 %v1270, 0.0625
    %v1277 = vmul.f32 %v1271, 0.0625
    %v1278 = vmul.f32 %v1272, 0.0625
    %v1279 = vmul.f32 %v1273, 0.0625
    %v1280 = vmul.f32 %v1274, 0.0625
    %v1281 = vld [vmem:[%s4] sm:$0xff]
    %v1282 = vld [vmem:[%s4 + $0x8] sm:$0xff]
    %v1283 = vld [vmem:[%s5] sm:$0xff]
    %v1284 = vld [vmem:[%s5 + $0x8] sm:$0xff]
    %1286 = vset.pattern.permute.xlu0 0
    %1287 = vperm.xlu0 %1286, %v1283
    %v1288 = vpop.permute.xlu0 %1287
    %1291 = vset.pattern.permute.xlu0 0
    %1292 = vperm.xlu0 %1291, %v1284
    %v1293 = vpop.permute.xlu0 %1292
    %vm1295 = vcmask 392192
    %v1297 = vsel %vm1295, %v1281, 0
    %v1300 = vsel %vm1295, %v1282, 0
    %1302 = vmatpush.msra.mxu0 0.0
    %1303 = vmatpush.msra.mxu0 0.0
    %1304 = vmatpush.msra.mxu0 0.0
    %1305 = vmatpush.msra.mxu0 0.0
    %1306 = vmatpush.msra.mxu0 0.0
    %1307 = vmatpush.msra.mxu0 0.0
    %1308 = vmatpush.msra.mxu0 0.0
    %1309 = vmatpush.msra.mxu0 0.0
    %1310 = vmatpush.msra.mxu0 0.0
    %1311 = vmatpush.msra.mxu0 0.0
    %1312 = vmatpush.msra.mxu0 %v1280
    %1313 = vmatpush.msra.mxu0 %v1279
    %1314 = vmatpush.msra.mxu0 %v1278
    %1315 = vmatpush.msra.mxu0 %v1277
    %1316 = vmatpush.msra.mxu0 %v1276
    %1317 = vmatpush.msra.mxu0 %v1275
    %1318 = vmatmul.f32.gmra.mxu0 %v1297
    %v1319 = vpop.f32.mrf.mxu0
    %v1320 = vadd.f32 %v1288, %v1319
    %1321 = vmatmul.f32.gmra.mxu0 %v1300
    %v1322 = vpop.f32.mrf.mxu0
    %v1323 = vadd.f32 %v1293, %v1322
    %1324 = vdwg.mxu0
    %vm1325 = vcmp.ge.f32.partialorder %v1320, 0.0
    %vm1326 = vcmp.ge.f32.partialorder %v1323, 0.0
    %v1327 = vmul.f32 %v1320, 0.01
    %v1328 = vmul.f32 %v1323, 0.01
    %v1329 = vsel %vm1325, %v1320, %v1327
    %v1330 = vsel %vm1326, %v1323, %v1328
    %v1331 = vld [vmem:[%s6] sm:$0xff]
    %v1332 = vld [vmem:[%s6 + $0x8] sm:$0xff]
    %v1333 = vld [vmem:[%s6 + $0x10] sm:$0xff]
    %v1334 = vld [vmem:[%s6 + $0x18] sm:$0xff]
    %v1335 = vld [vmem:[%s6 + $0x20] sm:$0xff]
    %v1336 = vld [vmem:[%s6 + $0x28] sm:$0xff]
    %v1337 = vld [vmem:[%s7] sm:$0xff]
    %v1338 = vld [vmem:[%s7 + $0x8] sm:$0xff]
    %v1339 = vld [vmem:[%s7 + $0x10] sm:$0xff]
    %v1340 = vld [vmem:[%s7 + $0x18] sm:$0xff]
    %v1341 = vld [vmem:[%s7 + $0x20] sm:$0xff]
    %v1342 = vld [vmem:[%s7 + $0x28] sm:$0xff]
    %1344 = vset.pattern.permute.xlu0 0
    %1345 = vperm.xlu0 %1344, %v1337
    %v1346 = vpop.permute.xlu0 %1345
    %1349 = vset.pattern.permute.xlu0 0
    %1350 = vperm.xlu0 %1349, %v1338
    %v1351 = vpop.permute.xlu0 %1350
    %1354 = vset.pattern.permute.xlu0 0
    %1355 = vperm.xlu0 %1354, %v1339
    %v1356 = vpop.permute.xlu0 %1355
    %1359 = vset.pattern.permute.xlu0 0
    %1360 = vperm.xlu0 %1359, %v1340
    %v1361 = vpop.permute.xlu0 %1360
    %1364 = vset.pattern.permute.xlu0 0
    %1365 = vperm.xlu0 %1364, %v1341
    %v1366 = vpop.permute.xlu0 %1365
    %1369 = vset.pattern.permute.xlu0 0
    %1370 = vperm.xlu0 %1369, %v1342
    %v1371 = vpop.permute.xlu0 %1370
    %v1374 = vsel %vm1046, %v1331, 0
    %v1377 = vsel %vm1046, %v1332, 0
    %v1380 = vsel %vm1046, %v1333, 0
    %v1383 = vsel %vm1046, %v1334, 0
    %v1386 = vsel %vm1046, %v1335, 0
    %v1389 = vsel %vm1046, %v1336, 0
    %1391 = vmatpush.msra.mxu0 0.0
    %1392 = vmatpush.msra.mxu0 0.0
    %1393 = vmatpush.msra.mxu0 0.0
    %1394 = vmatpush.msra.mxu0 0.0
    %1395 = vmatpush.msra.mxu0 0.0
    %1396 = vmatpush.msra.mxu0 0.0
    %1397 = vmatpush.msra.mxu0 0.0
    %1398 = vmatpush.msra.mxu0 0.0
    %1399 = vmatpush.msra.mxu0 0.0
    %1400 = vmatpush.msra.mxu0 0.0
    %1401 = vmatpush.msra.mxu0 0.0
    %1402 = vmatpush.msra.mxu0 0.0
    %1403 = vmatpush.msra.mxu0 0.0
    %1404 = vmatpush.msra.mxu0 0.0
    %1405 = vmatpush.msra.mxu0 %v1330
    %1406 = vmatpush.msra.mxu0 %v1329
    %1407 = vmatmul.f32.gmra.mxu0 %v1374
    %v1408 = vpop.f32.mrf.mxu0
    %v1409 = vadd.f32 %v1346, %v1408
    %1410 = vmatmul.f32.gmra.mxu0 %v1377
    %v1411 = vpop.f32.mrf.mxu0
    %v1412 = vadd.f32 %v1351, %v1411
    %1413 = vmatmul.f32.gmra.mxu0 %v1380
    %v1414 = vpop.f32.mrf.mxu0
    %v1415 = vadd.f32 %v1356, %v1414
    %1416 = vmatmul.f32.gmra.mxu0 %v1383
    %v1417 = vpop.f32.mrf.mxu0
    %v1418 = vadd.f32 %v1361, %v1417
    %1419 = vmatmul.f32.gmra.mxu0 %v1386
    %v1420 = vpop.f32.mrf.mxu0
    %v1421 = vadd.f32 %v1366, %v1420
    %1422 = vmatmul.f32.gmra.mxu0 %v1389
    %v1423 = vpop.f32.mrf.mxu0
    %v1424 = vadd.f32 %v1371, %v1423
    %1425 = vdwg.mxu0
    %vm1426 = vcmp.ge.f32.partialorder %v1409, 0.0
    %vm1427 = vcmp.ge.f32.partialorder %v1412, 0.0
    %vm1428 = vcmp.ge.f32.partialorder %v1415, 0.0
    %vm1429 = vcmp.ge.f32.partialorder %v1418, 0.0
    %vm1430 = vcmp.ge.f32.partialorder %v1421, 0.0
    %vm1431 = vcmp.ge.f32.partialorder %v1424, 0.0
    %v1432 = vmul.f32 %v1409, 0.01
    %v1433 = vmul.f32 %v1412, 0.01
    %v1434 = vmul.f32 %v1415, 0.01
    %v1435 = vmul.f32 %v1418, 0.01
    %v1436 = vmul.f32 %v1421, 0.01
    %v1437 = vmul.f32 %v1424, 0.01
    %v1438 = vsel %vm1426, %v1409, %v1432
    %v1439 = vsel %vm1427, %v1412, %v1433
    %v1440 = vsel %vm1428, %v1415, %v1434
    %v1441 = vsel %vm1429, %v1418, %v1435
    %v1442 = vsel %vm1430, %v1421, %v1436
    %v1443 = vsel %vm1431, %v1424, %v1437
    %v1444 = vsub.f32 0.0, %v1438
    %v1445 = vsub.f32 0.0, %v1439
    %v1446 = vsub.f32 0.0, %v1440
    %v1447 = vsub.f32 0.0, %v1441
    %v1448 = vsub.f32 0.0, %v1442
    %v1449 = vsub.f32 0.0, %v1443
    %v1450 = vmul.f32 %v1444, 1.442695
    %v1451 = vpow.pop %v1450
    %v1452 = vmul.f32 %v1445, 1.442695
    %v1453 = vpow.pop %v1452
    %v1454 = vmul.f32 %v1446, 1.442695
    %v1455 = vpow.pop %v1454
    %v1456 = vmul.f32 %v1447, 1.442695
    %v1457 = vpow.pop %v1456
    %v1458 = vmul.f32 %v1448, 1.442695
    %v1459 = vpow.pop %v1458
    %v1460 = vmul.f32 %v1449, 1.442695
    %v1461 = vpow.pop %v1460
    %v1462 = vadd.f32 %v1451, 1.0
    %v1463 = vadd.f32 %v1453, 1.0
    %v1464 = vadd.f32 %v1455, 1.0
    %v1465 = vadd.f32 %v1457, 1.0
    %v1466 = vadd.f32 %v1459, 1.0
    %v1467 = vadd.f32 %v1461, 1.0
    %v1468 = vrcp.pop %v1462
    %v1469 = vmul.f32 %v1462, %v1468
    %v1470 = vsub.f32 1.0, %v1469
    %v1471 = vmul.f32 %v1468, %v1470
    %v1472 = vadd.f32 %v1468, %v1471
    %vm1473 = vweird.f32 %v1462
    %vm1474 = vweird.f32 %v1468
    %vm1475 = vmor %vm1473, %vm1474
    %v1476 = vsel %vm1475, %v1468, %v1472
    %v1477 = vand.u32 2147483647, %v1462
    %vm1478 = vcmp.eq.f32.partialorder %v1477, 8.507059e+37
    %v1479 = vand.u32 %v1462, 2147483648
    %v1480 = vor.u32 1.1754944e-38, %v1479
    %v1481 = vsel %vm1478, %v1480, %v1476
    %v1482 = vmul.f32 1.0, %v1481
    %v1483 = vrcp.pop %v1463
    %v1484 = vmul.f32 %v1463, %v1483
    %v1485 = vsub.f32 1.0, %v1484
    %v1486 = vmul.f32 %v1483, %v1485
    %v1487 = vadd.f32 %v1483, %v1486
    %vm1488 = vweird.f32 %v1463
    %vm1489 = vweird.f32 %v1483
    %vm1490 = vmor %vm1488, %vm1489
    %v1491 = vsel %vm1490, %v1483, %v1487
    %v1492 = vand.u32 2147483647, %v1463
    %vm1493 = vcmp.eq.f32.partialorder %v1492, 8.507059e+37
    %v1494 = vand.u32 %v1463, 2147483648
    %v1495 = vor.u32 1.1754944e-38, %v1494
    %v1496 = vsel %vm1493, %v1495, %v1491
    %v1497 = vmul.f32 1.0, %v1496
    %v1498 = vrcp.pop %v1464
    %v1499 = vmul.f32 %v1464, %v1498
    %v1500 = vsub.f32 1.0, %v1499
    %v1501 = vmul.f32 %v1498, %v1500
    %v1502 = vadd.f32 %v1498, %v1501
    %vm1503 = vweird.f32 %v1464
    %vm1504 = vweird.f32 %v1498
    %vm1505 = vmor %vm1503, %vm1504
    %v1506 = vsel %vm1505, %v1498, %v1502
    %v1507 = vand.u32 2147483647, %v1464
    %vm1508 = vcmp.eq.f32.partialorder %v1507, 8.507059e+37
    %v1509 = vand.u32 %v1464, 2147483648
    %v1510 = vor.u32 1.1754944e-38, %v1509
    %v1511 = vsel %vm1508, %v1510, %v1506
    %v1512 = vmul.f32 1.0, %v1511
    %v1513 = vrcp.pop %v1465
    %v1514 = vmul.f32 %v1465, %v1513
    %v1515 = vsub.f32 1.0, %v1514
    %v1516 = vmul.f32 %v1513, %v1515
    %v1517 = vadd.f32 %v1513, %v1516
    %vm1518 = vweird.f32 %v1465
    %vm1519 = vweird.f32 %v1513
    %vm1520 = vmor %vm1518, %vm1519
    %v1521 = vsel %vm1520, %v1513, %v1517
    %v1522 = vand.u32 2147483647, %v1465
    %vm1523 = vcmp.eq.f32.partialorder %v1522, 8.507059e+37
    %v1524 = vand.u32 %v1465, 2147483648
    %v1525 = vor.u32 1.1754944e-38, %v1524
    %v1526 = vsel %vm1523, %v1525, %v1521
    %v1527 = vmul.f32 1.0, %v1526
    %v1528 = vrcp.pop %v1466
    %v1529 = vmul.f32 %v1466, %v1528
    %v1530 = vsub.f32 1.0, %v1529
    %v1531 = vmul.f32 %v1528, %v1530
    %v1532 = vadd.f32 %v1528, %v1531
    %vm1533 = vweird.f32 %v1466
    %vm1534 = vweird.f32 %v1528
    %vm1535 = vmor %vm1533, %vm1534
    %v1536 = vsel %vm1535, %v1528, %v1532
    %v1537 = vand.u32 2147483647, %v1466
    %vm1538 = vcmp.eq.f32.partialorder %v1537, 8.507059e+37
    %v1539 = vand.u32 %v1466, 2147483648
    %v1540 = vor.u32 1.1754944e-38, %v1539
    %v1541 = vsel %vm1538, %v1540, %v1536
    %v1542 = vmul.f32 1.0, %v1541
    %v1543 = vrcp.pop %v1467
    %v1544 = vmul.f32 %v1467, %v1543
    %v1545 = vsub.f32 1.0, %v1544
    %v1546 = vmul.f32 %v1543, %v1545
    %v1547 = vadd.f32 %v1543, %v1546
    %vm1548 = vweird.f32 %v1467
    %vm1549 = vweird.f32 %v1543
    %vm1550 = vmor %vm1548, %vm1549
    %v1551 = vsel %vm1550, %v1543, %v1547
    %v1552 = vand.u32 2147483647, %v1467
    %vm1553 = vcmp.eq.f32.partialorder %v1552, 8.507059e+37
    %v1554 = vand.u32 %v1467, 2147483648
    %v1555 = vor.u32 1.1754944e-38, %v1554
    %v1556 = vsel %vm1553, %v1555, %v1551
    %v1557 = vmul.f32 1.0, %v1556
    %1559 = vset.pattern.permute.xlu0 0
    %1560 = vperm.xlu0 %1559, %v1482
    %v1561 = vpop.permute.xlu0 %1560
    %1564 = vset.pattern.permute.xlu0 0
    %1565 = vperm.xlu0 %1564, %v1497
    %v1566 = vpop.permute.xlu0 %1565
    %1569 = vset.pattern.permute.xlu0 0
    %1570 = vperm.xlu0 %1569, %v1512
    %v1571 = vpop.permute.xlu0 %1570
    %1574 = vset.pattern.permute.xlu0 0
    %1575 = vperm.xlu0 %1574, %v1527
    %v1576 = vpop.permute.xlu0 %1575
    %1579 = vset.pattern.permute.xlu0 0
    %1580 = vperm.xlu0 %1579, %v1542
    %v1581 = vpop.permute.xlu0 %1580
    %1584 = vset.pattern.permute.xlu0 0
    %1585 = vperm.xlu0 %1584, %v1557
    %v1586 = vpop.permute.xlu0 %1585
    %v1588 = vmul.f32 %v1561, %v1116
    %v1589 = vmul.f32 %v1566, %v1117
    %v1590 = vmul.f32 %v1571, %v1118
    %v1591 = vmul.f32 %v1576, %v1119
    %v1592 = vmul.f32 %v1581, %v1120
    %v1593 = vmul.f32 %v1586, %v1121
    %v1594 = vpack.c.bf16 %v1588, %v1588
    %v1595 = vpack.c.bf16 %v1589, %v1589
    %v1596 = vpack.c.bf16 %v1590, %v1590
    %v1597 = vpack.c.bf16 %v1591, %v1591
    %v1598 = vpack.c.bf16 %v1592, %v1592
    %v1599 = vpack.c.bf16 %v1593, %v1593
    %vm1600 = vcmask 3072
    %1601 = vst.msk [vmem:[#allocation3] sm:$0xf] %vm1600, 0
    %1602 = vst.msk [vmem:[#allocation3 + $0x4] sm:$0xf] %vm1600, 0
    %1603 = vst.msk [vmem:[#allocation3 + $0x8] sm:$0xf] %vm1600, 0
    %1604 = vst.msk [vmem:[#allocation3 + $0xc] sm:$0xf] %vm1600, 0
    %1605 = vst.msk [vmem:[#allocation3 + $0x10] sm:$0xf] %vm1600, 0
    %1606 = vst.msk [vmem:[#allocation3 + $0x14] sm:$0xf] %vm1600, 0
    %1613 = vrot.lane.b32.xlu0 %v1594, 1
    %v1614 = vpop.permute.xlu0 %1613
    %1615 = vrot.lane.b32.xlu0 %v1595, 1
    %v1616 = vpop.permute.xlu0 %1615
    %1617 = vrot.lane.b32.xlu0 %v1596, 1
    %v1618 = vpop.permute.xlu0 %1617
    %1619 = vrot.lane.b32.xlu0 %v1597, 1
    %v1620 = vpop.permute.xlu0 %1619
    %1621 = vrot.lane.b32.xlu0 %v1598, 1
    %v1622 = vpop.permute.xlu0 %1621
    %1623 = vrot.lane.b32.xlu0 %v1599, 1
    %v1624 = vpop.permute.xlu0 %1623
    %vm1631 = vcmask 68616
    %1632 = vst.msk [vmem:[#allocation3] sm:$0xf] %vm1631, %v1614
    %1633 = vst.msk [vmem:[#allocation3 + $0x4] sm:$0xf] %vm1631, %v1616
    %1634 = vst.msk [vmem:[#allocation3 + $0x8] sm:$0xf] %vm1631, %v1618
    %1635 = vst.msk [vmem:[#allocation3 + $0xc] sm:$0xf] %vm1631, %v1620
    %1636 = vst.msk [vmem:[#allocation3 + $0x10] sm:$0xf] %vm1631, %v1622
    %1637 = vst.msk [vmem:[#allocation3 + $0x14] sm:$0xf] %vm1631, %v1624
    %vm1638 = vcmask 85064
    %1639 = vst.msk [vmem:[#allocation3] sm:$0xf] %vm1638, 0
    %1640 = vst.msk [vmem:[#allocation3 + $0x4] sm:$0xf] %vm1638, 0
    %1641 = vst.msk [vmem:[#allocation3 + $0x8] sm:$0xf] %vm1638, 0
    %1642 = vst.msk [vmem:[#allocation3 + $0xc] sm:$0xf] %vm1638, 0
    %1643 = vst.msk [vmem:[#allocation3 + $0x10] sm:$0xf] %vm1638, 0
    %1644 = vst.msk [vmem:[#allocation3 + $0x14] sm:$0xf] %vm1638, 0
    %1645 = vrot.lane.b32.xlu0 %v1594, 3
    %v1646 = vpop.permute.xlu0 %1645
    %1647 = vrot.lane.b32.xlu0 %v1595, 3
    %v1648 = vpop.permute.xlu0 %1647
    %1649 = vrot.lane.b32.xlu0 %v1596, 3
    %v1650 = vpop.permute.xlu0 %1649
    %1651 = vrot.lane.b32.xlu0 %v1597, 3
    %v1652 = vpop.permute.xlu0 %1651
    %1653 = vrot.lane.b32.xlu0 %v1598, 3
    %v1654 = vpop.permute.xlu0 %1653
    %1655 = vrot.lane.b32.xlu0 %v1599, 3
    %v1656 = vpop.permute.xlu0 %1655
    %vm1663 = vcmask 150616
    %1664 = vst.msk [vmem:[#allocation3] sm:$0xf] %vm1663, %v1646
    %1665 = vst.msk [vmem:[#allocation3 + $0x4] sm:$0xf] %vm1663, %v1648
    %1666 = vst.msk [vmem:[#allocation3 + $0x8] sm:$0xf] %vm1663, %v1650
    %1667 = vst.msk [vmem:[#allocation3 + $0xc] sm:$0xf] %vm1663, %v1652
    %1668 = vst.msk [vmem:[#allocation3 + $0x10] sm:$0xf] %vm1663, %v1654
    %1669 = vst.msk [vmem:[#allocation3 + $0x14] sm:$0xf] %vm1663, %v1656
    %vm1670 = vcmask 158872
    %1671 = vst.msk [vmem:[#allocation3] sm:$0xf] %vm1670, 0
    %1672 = vst.msk [vmem:[#allocation3 + $0x4] sm:$0xf] %vm1670, 0
    %1673 = vst.msk [vmem:[#allocation3 + $0x8] sm:$0xf] %vm1670, 0
    %1674 = vst.msk [vmem:[#allocation3 + $0xc] sm:$0xf] %vm1670, 0
    %1675 = vst.msk [vmem:[#allocation3 + $0x10] sm:$0xf] %vm1670, 0
    %1676 = vst.msk [vmem:[#allocation3 + $0x14] sm:$0xf] %vm1670, 0
    %1677 = vset.pattern.permute.xlu0 1
    %1678 = vperm.xlu0 %1677, %v1482
    %v1679 = vpop.permute.xlu0 %1678
    %1681 = vset.pattern.permute.xlu0 1
    %1682 = vperm.xlu0 %1681, %v1497
    %v1683 = vpop.permute.xlu0 %1682
    %1685 = vset.pattern.permute.xlu0 1
    %1686 = vperm.xlu0 %1685, %v1512
    %v1687 = vpop.permute.xlu0 %1686
    %1689 = vset.pattern.permute.xlu0 1
    %1690 = vperm.xlu0 %1689, %v1527
    %v1691 = vpop.permute.xlu0 %1690
    %1693 = vset.pattern.permute.xlu0 1
    %1694 = vperm.xlu0 %1693, %v1542
    %v1695 = vpop.permute.xlu0 %1694
    %1697 = vset.pattern.permute.xlu0 1
    %1698 = vperm.xlu0 %1697, %v1557
    %v1699 = vpop.permute.xlu0 %1698
    %v1701 = vmul.f32 %v1679, %v1116
    %v1702 = vmul.f32 %v1683, %v1117
    %v1703 = vmul.f32 %v1687, %v1118
    %v1704 = vmul.f32 %v1691, %v1119
    %v1705 = vmul.f32 %v1695, %v1120
    %v1706 = vmul.f32 %v1699, %v1121
    %v1707 = vpack.c.bf16 %v1701, %v1701
    %v1708 = vpack.c.bf16 %v1702, %v1702
    %v1709 = vpack.c.bf16 %v1703, %v1703
    %v1710 = vpack.c.bf16 %v1704, %v1704
    %v1711 = vpack.c.bf16 %v1705, %v1705
    %v1712 = vpack.c.bf16 %v1706, %v1706
    %vm1713 = vcmask 167072
    %1714 = vst.msk [vmem:[#allocation3] sm:$0xf] %vm1713, 0
    %1715 = vst.msk [vmem:[#allocation3 + $0x4] sm:$0xf] %vm1713, 0
    %1716 = vst.msk [vmem:[#allocation3 + $0x8] sm:$0xf] %vm1713, 0
    %1717 = vst.msk [vmem:[#allocation3 + $0xc] sm:$0xf] %vm1713, 0
    %1718 = vst.msk [vmem:[#allocation3 + $0x10] sm:$0xf] %vm1713, 0
    %1719 = vst.msk [vmem:[#allocation3 + $0x14] sm:$0xf] %vm1713, 0
    %1726 = vrot.lane.b32.xlu0 %v1707, 5
    %v1727 = vpop.permute.xlu0 %1726
    %1728 = vrot.lane.b32.xlu0 %v1708, 5
    %v1729 = vpop.permute.xlu0 %1728
    %1730 = vrot.lane.b32.xlu0 %v1709, 5
    %v1731 = vpop.permute.xlu0 %1730
    %1732 = vrot.lane.b32.xlu0 %v1710, 5
    %v1733 = vpop.permute.xlu0 %1732
    %1734 = vrot.lane.b32.xlu0 %v1711, 5
    %v1735 = vpop.permute.xlu0 %1734
    %1736 = vrot.lane.b32.xlu0 %v1712, 5
    %v1737 = vpop.permute.xlu0 %1736
    %vm1744 = vcmask 232616
    %1745 = vst.msk [vmem:[#allocation3] sm:$0xf] %vm1744, %v1727
    %1746 = vst.msk [vmem:[#allocation3 + $0x4] sm:$0xf] %vm1744, %v1729
    %1747 = vst.msk [vmem:[#allocation3 + $0x8] sm:$0xf] %vm1744, %v1731
    %1748 = vst.msk [vmem:[#allocation3 + $0xc] sm:$0xf] %vm1744, %v1733
    %1749 = vst.msk [vmem:[#allocation3 + $0x10] sm:$0xf] %vm1744, %v1735
    %1750 = vst.msk [vmem:[#allocation3 + $0x14] sm:$0xf] %vm1744, %v1737
    %vm1751 = vcmask 249064
    %1752 = vst.msk [vmem:[#allocation3] sm:$0xf] %vm1751, 0
    %1753 = vst.msk [vmem:[#allocation3 + $0x4] sm:$0xf] %vm1751, 0
    %1754 = vst.msk [vmem:[#allocation3 + $0x8] sm:$0xf] %vm1751, 0
    %1755 = vst.msk [vmem:[#allocation3 + $0xc] sm:$0xf] %vm1751, 0
    %1756 = vst.msk [vmem:[#allocation3 + $0x10] sm:$0xf] %vm1751, 0
    %1757 = vst.msk [vmem:[#allocation3 + $0x14] sm:$0xf] %vm1751, 0
    %1758 = vrot.lane.b32.xlu0 %v1707, 7
    %v1759 = vpop.permute.xlu0 %1758
    %1760 = vrot.lane.b32.xlu0 %v1708, 7
    %v1761 = vpop.permute.xlu0 %1760
    %1762 = vrot.lane.b32.xlu0 %v1709, 7
    %v1763 = vpop.permute.xlu0 %1762
    %1764 = vrot.lane.b32.xlu0 %v1710, 7
    %v1765 = vpop.permute.xlu0 %1764
    %1766 = vrot.lane.b32.xlu0 %v1711, 7
    %v1767 = vpop.permute.xlu0 %1766
    %1768 = vrot.lane.b32.xlu0 %v1712, 7
    %v1769 = vpop.permute.xlu0 %1768
    %vm1776 = vcmask 314616
    %1777 = vst.msk [vmem:[#allocation3] sm:$0xf] %vm1776, %v1759
    %1778 = vst.msk [vmem:[#allocation3 + $0x4] sm:$0xf] %vm1776, %v1761
    %1779 = vst.msk [vmem:[#allocation3 + $0x8] sm:$0xf] %vm1776, %v1763
    %1780 = vst.msk [vmem:[#allocation3 + $0xc] sm:$0xf] %vm1776, %v1765
    %1781 = vst.msk [vmem:[#allocation3 + $0x10] sm:$0xf] %vm1776, %v1767
    %1782 = vst.msk [vmem:[#allocation3 + $0x14] sm:$0xf] %vm1776, %v1769
    %vm1783 = vcmask 322872
    %1784 = vst.msk [vmem:[#allocation3] sm:$0xf] %vm1783, 0
    %1785 = vst.msk [vmem:[#allocation3 + $0x4] sm:$0xf] %vm1783, 0
    %1786 = vst.msk [vmem:[#allocation3 + $0x8] sm:$0xf] %vm1783, 0
    %1787 = vst.msk [vmem:[#allocation3 + $0xc] sm:$0xf] %vm1783, 0
    %1788 = vst.msk [vmem:[#allocation3 + $0x10] sm:$0xf] %vm1783, 0
    %1789 = vst.msk [vmem:[#allocation3 + $0x14] sm:$0xf] %vm1783, 0
    %1790 = vset.pattern.permute.xlu0 2
    %1791 = vperm.xlu0 %1790, %v1482
    %v1792 = vpop.permute.xlu0 %1791
    %1794 = vset.pattern.permute.xlu0 2
    %1795 = vperm.xlu0 %1794, %v1497
    %v1796 = vpop.permute.xlu0 %1795
    %1798 = vset.pattern.permute.xlu0 2
    %1799 = vperm.xlu0 %1798, %v1512
    %v1800 = vpop.permute.xlu0 %1799
    %1802 = vset.pattern.permute.xlu0 2
    %1803 = vperm.xlu0 %1802, %v1527
    %v1804 = vpop.permute.xlu0 %1803
    %1806 = vset.pattern.permute.xlu0 2
    %1807 = vperm.xlu0 %1806, %v1542
    %v1808 = vpop.permute.xlu0 %1807
    %1810 = vset.pattern.permute.xlu0 2
    %1811 = vperm.xlu0 %1810, %v1557
    %v1812 = vpop.permute.xlu0 %1811
    %v1814 = vmul.f32 %v1792, %v1116
    %v1815 = vmul.f32 %v1796, %v1117
    %v1816 = vmul.f32 %v1800, %v1118
    %v1817 = vmul.f32 %v1804, %v1119
    %v1818 = vmul.f32 %v1808, %v1120
    %v1819 = vmul.f32 %v1812, %v1121
    %v1820 = vpack.c.bf16 %v1814, %v1814
    %v1821 = vpack.c.bf16 %v1815, %v1815
    %v1822 = vpack.c.bf16 %v1816, %v1816
    %v1823 = vpack.c.bf16 %v1817, %v1817
    %v1824 = vpack.c.bf16 %v1818, %v1818
    %v1825 = vpack.c.bf16 %v1819, %v1819
    %vm1826 = vcmask 331072
    %1827 = vst.msk [vmem:[#allocation3] sm:$0xf] %vm1826, 0
    %1828 = vst.msk [vmem:[#allocation3 + $0x4] sm:$0xf] %vm1826, 0
    %1829 = vst.msk [vmem:[#allocation3 + $0x8] sm:$0xf] %vm1826, 0
    %1830 = vst.msk [vmem:[#allocation3 + $0xc] sm:$0xf] %vm1826, 0
    %1831 = vst.msk [vmem:[#allocation3 + $0x10] sm:$0xf] %vm1826, 0
    %1832 = vst.msk [vmem:[#allocation3 + $0x14] sm:$0xf] %vm1826, 0
    %1839 = vrot.lane.b32.xlu0 %v1820, 9
    %v1840 = vpop.permute.xlu0 %1839
    %1841 = vrot.lane.b32.xlu0 %v1821, 9
    %v1842 = vpop.permute.xlu0 %1841
    %1843 = vrot.lane.b32.xlu0 %v1822, 9
    %v1844 = vpop.permute.xlu0 %1843
    %1845 = vrot.lane.b32.xlu0 %v1823, 9
    %v1846 = vpop.permute.xlu0 %1845
    %1847 = vrot.lane.b32.xlu0 %v1824, 9
    %v1848 = vpop.permute.xlu0 %1847
    %1849 = vrot.lane.b32.xlu0 %v1825, 9
    %v1850 = vpop.permute.xlu0 %1849
    %vm1857 = vcmask 396616
    %1858 = vst.msk [vmem:[#allocation3] sm:$0xf] %vm1857, %v1840
    %1859 = vst.msk [vmem:[#allocation3 + $0x4] sm:$0xf] %vm1857, %v1842
    %1860 = vst.msk [vmem:[#allocation3 + $0x8] sm:$0xf] %vm1857, %v1844
    %1861 = vst.msk [vmem:[#allocation3 + $0xc] sm:$0xf] %vm1857, %v1846
    %1862 = vst.msk [vmem:[#allocation3 + $0x10] sm:$0xf] %vm1857, %v1848
    %1863 = vst.msk [vmem:[#allocation3 + $0x14] sm:$0xf] %vm1857, %v1850
    %vm1864 = vcmask 413064
    %1865 = vst.msk [vmem:[#allocation3] sm:$0xf] %vm1864, 0
    %1866 = vst.msk [vmem:[#allocation3 + $0x4] sm:$0xf] %vm1864, 0
    %1867 = vst.msk [vmem:[#allocation3 + $0x8] sm:$0xf] %vm1864, 0
    %1868 = vst.msk [vmem:[#allocation3 + $0xc] sm:$0xf] %vm1864, 0
    %1869 = vst.msk [vmem:[#allocation3 + $0x10] sm:$0xf] %vm1864, 0
    %1870 = vst.msk [vmem:[#allocation3 + $0x14] sm:$0xf] %vm1864, 0
    %1871 = vrot.lane.b32.xlu0 %v1820, 11
    %v1872 = vpop.permute.xlu0 %1871
    %1873 = vrot.lane.b32.xlu0 %v1821, 11
    %v1874 = vpop.permute.xlu0 %1873
    %1875 = vrot.lane.b32.xlu0 %v1822, 11
    %v1876 = vpop.permute.xlu0 %1875
    %1877 = vrot.lane.b32.xlu0 %v1823, 11
    %v1878 = vpop.permute.xlu0 %1877
    %1879 = vrot.lane.b32.xlu0 %v1824, 11
    %v1880 = vpop.permute.xlu0 %1879
    %1881 = vrot.lane.b32.xlu0 %v1825, 11
    %v1882 = vpop.permute.xlu0 %1881
    %vm1889 = vcmask 478616
    %1890 = vst.msk [vmem:[#allocation3] sm:$0xf] %vm1889, %v1872
    %1891 = vst.msk [vmem:[#allocation3 + $0x4] sm:$0xf] %vm1889, %v1874
    %1892 = vst.msk [vmem:[#allocation3 + $0x8] sm:$0xf] %vm1889, %v1876
    %1893 = vst.msk [vmem:[#allocation3 + $0xc] sm:$0xf] %vm1889, %v1878
    %1894 = vst.msk [vmem:[#allocation3 + $0x10] sm:$0xf] %vm1889, %v1880
    %1895 = vst.msk [vmem:[#allocation3 + $0x14] sm:$0xf] %vm1889, %v1882
    %vm1896 = vcmask 486872
    %1897 = vst.msk [vmem:[#allocation3] sm:$0xf] %vm1896, 0
    %1898 = vst.msk [vmem:[#allocation3 + $0x4] sm:$0xf] %vm1896, 0
    %1899 = vst.msk [vmem:[#allocation3 + $0x8] sm:$0xf] %vm1896, 0
    %1900 = vst.msk [vmem:[#allocation3 + $0xc] sm:$0xf] %vm1896, 0
    %1901 = vst.msk [vmem:[#allocation3 + $0x10] sm:$0xf] %vm1896, 0
    %1902 = vst.msk [vmem:[#allocation3 + $0x14] sm:$0xf] %vm1896, 0
    %1903 = vset.pattern.permute.xlu0 3
    %1904 = vperm.xlu0 %1903, %v1482
    %v1905 = vpop.permute.xlu0 %1904
    %1907 = vset.pattern.permute.xlu0 3
    %1908 = vperm.xlu0 %1907, %v1497
    %v1909 = vpop.permute.xlu0 %1908
    %1911 = vset.pattern.permute.xlu0 3
    %1912 = vperm.xlu0 %1911, %v1512
    %v1913 = vpop.permute.xlu0 %1912
    %1915 = vset.pattern.permute.xlu0 3
    %1916 = vperm.xlu0 %1915, %v1527
    %v1917 = vpop.permute.xlu0 %1916
    %1919 = vset.pattern.permute.xlu0 3
    %1920 = vperm.xlu0 %1919, %v1542
    %v1921 = vpop.permute.xlu0 %1920
    %1923 = vset.pattern.permute.xlu0 3
    %1924 = vperm.xlu0 %1923, %v1557
    %v1925 = vpop.permute.xlu0 %1924
    %v1927 = vmul.f32 %v1905, %v1116
    %v1928 = vmul.f32 %v1909, %v1117
    %v1929 = vmul.f32 %v1913, %v1118
    %v1930 = vmul.f32 %v1917, %v1119
    %v1931 = vmul.f32 %v1921, %v1120
    %v1932 = vmul.f32 %v1925, %v1121
    %v1933 = vpack.c.bf16 %v1927, %v1927
    %v1934 = vpack.c.bf16 %v1928, %v1928
    %v1935 = vpack.c.bf16 %v1929, %v1929
    %v1936 = vpack.c.bf16 %v1930, %v1930
    %v1937 = vpack.c.bf16 %v1931, %v1931
    %v1938 = vpack.c.bf16 %v1932, %v1932
    %vm1939 = vcmask 495072
    %1940 = vst.msk [vmem:[#allocation3] sm:$0xf] %vm1939, 0
    %1941 = vst.msk [vmem:[#allocation3 + $0x4] sm:$0xf] %vm1939, 0
    %1942 = vst.msk [vmem:[#allocation3 + $0x8] sm:$0xf] %vm1939, 0
    %1943 = vst.msk [vmem:[#allocation3 + $0xc] sm:$0xf] %vm1939, 0
    %1944 = vst.msk [vmem:[#allocation3 + $0x10] sm:$0xf] %vm1939, 0
    %1945 = vst.msk [vmem:[#allocation3 + $0x14] sm:$0xf] %vm1939, 0
    %1952 = vrot.lane.b32.xlu0 %v1933, 13
    %v1953 = vpop.permute.xlu0 %1952
    %1954 = vrot.lane.b32.xlu0 %v1934, 13
    %v1955 = vpop.permute.xlu0 %1954
    %1956 = vrot.lane.b32.xlu0 %v1935, 13
    %v1957 = vpop.permute.xlu0 %1956
    %1958 = vrot.lane.b32.xlu0 %v1936, 13
    %v1959 = vpop.permute.xlu0 %1958
    %1960 = vrot.lane.b32.xlu0 %v1937, 13
    %v1961 = vpop.permute.xlu0 %1960
    %1962 = vrot.lane.b32.xlu0 %v1938, 13
    %v1963 = vpop.permute.xlu0 %1962
    %vm1970 = vcmask 560616
    %1971 = vst.msk [vmem:[#allocation3] sm:$0xf] %vm1970, %v1953
    %1972 = vst.msk [vmem:[#allocation3 + $0x4] sm:$0xf] %vm1970, %v1955
    %1973 = vst.msk [vmem:[#allocation3 + $0x8] sm:$0xf] %vm1970, %v1957
    %1974 = vst.msk [vmem:[#allocation3 + $0xc] sm:$0xf] %vm1970, %v1959
    %1975 = vst.msk [vmem:[#allocation3 + $0x10] sm:$0xf] %vm1970, %v1961
    %1976 = vst.msk [vmem:[#allocation3 + $0x14] sm:$0xf] %vm1970, %v1963
    %vm1977 = vcmask 577064
    %1978 = vst.msk [vmem:[#allocation3] sm:$0xf] %vm1977, 0
    %1979 = vst.msk [vmem:[#allocation3 + $0x4] sm:$0xf] %vm1977, 0
    %1980 = vst.msk [vmem:[#allocation3 + $0x8] sm:$0xf] %vm1977, 0
    %1981 = vst.msk [vmem:[#allocation3 + $0xc] sm:$0xf] %vm1977, 0
    %1982 = vst.msk [vmem:[#allocation3 + $0x10] sm:$0xf] %vm1977, 0
    %1983 = vst.msk [vmem:[#allocation3 + $0x14] sm:$0xf] %vm1977, 0
    %1984 = vrot.lane.b32.xlu0 %v1933, 15
    %v1985 = vpop.permute.xlu0 %1984
    %1986 = vrot.lane.b32.xlu0 %v1934, 15
    %v1987 = vpop.permute.xlu0 %1986
    %1988 = vrot.lane.b32.xlu0 %v1935, 15
    %v1989 = vpop.permute.xlu0 %1988
    %1990 = vrot.lane.b32.xlu0 %v1936, 15
    %v1991 = vpop.permute.xlu0 %1990
    %1992 = vrot.lane.b32.xlu0 %v1937, 15
    %v1993 = vpop.permute.xlu0 %1992
    %1994 = vrot.lane.b32.xlu0 %v1938, 15
    %v1995 = vpop.permute.xlu0 %1994
    %vm2002 = vcmask 642616
    %2003 = vst.msk [vmem:[#allocation3] sm:$0xf] %vm2002, %v1985
    %2004 = vst.msk [vmem:[#allocation3 + $0x4] sm:$0xf] %vm2002, %v1987
    %2005 = vst.msk [vmem:[#allocation3 + $0x8] sm:$0xf] %vm2002, %v1989
    %2006 = vst.msk [vmem:[#allocation3 + $0xc] sm:$0xf] %vm2002, %v1991
    %2007 = vst.msk [vmem:[#allocation3 + $0x10] sm:$0xf] %vm2002, %v1993
    %2008 = vst.msk [vmem:[#allocation3 + $0x14] sm:$0xf] %vm2002, %v1995
    %vm2009 = vcmask 650872
    %2010 = vst.msk [vmem:[#allocation3] sm:$0xf] %vm2009, 0
    %2011 = vst.msk [vmem:[#allocation3 + $0x4] sm:$0xf] %vm2009, 0
    %2012 = vst.msk [vmem:[#allocation3 + $0x8] sm:$0xf] %vm2009, 0
    %2013 = vst.msk [vmem:[#allocation3 + $0xc] sm:$0xf] %vm2009, 0
    %2014 = vst.msk [vmem:[#allocation3 + $0x10] sm:$0xf] %vm2009, 0
    %2015 = vst.msk [vmem:[#allocation3 + $0x14] sm:$0xf] %vm2009, 0
    %v2016 = vld [vmem:[#allocation3] sm:$0xf]
    %v2017 = vld [vmem:[#allocation3 + $0x4] sm:$0xf]
    %v2018 = vld [vmem:[#allocation3 + $0x8] sm:$0xf]
    %v2019 = vld [vmem:[#allocation3 + $0xc] sm:$0xf]
    %v2020 = vld [vmem:[#allocation3 + $0x10] sm:$0xf]
    %v2021 = vld [vmem:[#allocation3 + $0x14] sm:$0xf]
    %2022 = vst.msk [vmem:[#allocation4] sm:$0xf] %vm45, %v2016
    %2023 = vst.msk [vmem:[#allocation4 + $0x4] sm:$0xf] %vm45, %v2017
    %2024 = vst.msk [vmem:[#allocation4 + $0x8] sm:$0xf] %vm45, %v2018
    %2025 = vst.msk [vmem:[#allocation4 + $0xc] sm:$0xf] %vm45, %v2019
    %2026 = vst.msk [vmem:[#allocation4 + $0x10] sm:$0xf] %vm45, %v2020
    %2027 = vst.msk [vmem:[#allocation4 + $0x14] sm:$0xf] %vm45, %v2021
    %v2028 = vld [vmem:[#allocation3] sm:$0xf]
    %v2029 = vld [vmem:[#allocation3 + $0x4] sm:$0xf]
    %v2030 = vld [vmem:[#allocation3 + $0x8] sm:$0xf]
    %v2031 = vld [vmem:[#allocation3 + $0xc] sm:$0xf]
    %v2032 = vld [vmem:[#allocation3 + $0x10] sm:$0xf]
    %v2033 = vld [vmem:[#allocation3 + $0x14] sm:$0xf]
    %2040 = vrot.lane.b32.xlu0 %v2028, 118
    %v2041 = vpop.permute.xlu0 %2040
    %2042 = vrot.lane.b32.xlu0 %v2029, 118
    %v2043 = vpop.permute.xlu0 %2042
    %2044 = vrot.lane.b32.xlu0 %v2030, 118
    %v2045 = vpop.permute.xlu0 %2044
    %2046 = vrot.lane.b32.xlu0 %v2031, 118
    %v2047 = vpop.permute.xlu0 %2046
    %2048 = vrot.lane.b32.xlu0 %v2032, 118
    %v2049 = vpop.permute.xlu0 %2048
    %2050 = vrot.lane.b32.xlu0 %v2033, 118
    %v2051 = vpop.permute.xlu0 %2050
    %2058 = vst.msk [vmem:[#allocation4 + $0x18] sm:$0xf] %vm45, %v2041
    %2059 = vst.msk [vmem:[#allocation4 + $0x1c] sm:$0xf] %vm45, %v2043
    %2060 = vst.msk [vmem:[#allocation4 + $0x20] sm:$0xf] %vm45, %v2045
    %2061 = vst.msk [vmem:[#allocation4 + $0x24] sm:$0xf] %vm45, %v2047
    %2062 = vst.msk [vmem:[#allocation4 + $0x28] sm:$0xf] %vm45, %v2049
    %2063 = vst.msk [vmem:[#allocation4 + $0x2c] sm:$0xf] %vm45, %v2051
    %v2064 = vld [vmem:[#allocation3] sm:$0xf]
    %v2065 = vld [vmem:[#allocation3 + $0x4] sm:$0xf]
    %v2066 = vld [vmem:[#allocation3 + $0x8] sm:$0xf]
    %v2067 = vld [vmem:[#allocation3 + $0xc] sm:$0xf]
    %v2068 = vld [vmem:[#allocation3 + $0x10] sm:$0xf]
    %v2069 = vld [vmem:[#allocation3 + $0x14] sm:$0xf]
    %2076 = vrot.lane.b32.xlu0 %v2064, 127
    %v2077 = vpop.permute.xlu0 %2076
    %2078 = vrot.lane.b32.xlu0 %v2065, 127
    %v2079 = vpop.permute.xlu0 %2078
    %2080 = vrot.lane.b32.xlu0 %v2066, 127
    %v2081 = vpop.permute.xlu0 %2080
    %2082 = vrot.lane.b32.xlu0 %v2067, 127
    %v2083 = vpop.permute.xlu0 %2082
    %2084 = vrot.lane.b32.xlu0 %v2068, 127
    %v2085 = vpop.permute.xlu0 %2084
    %2086 = vrot.lane.b32.xlu0 %v2069, 127
    %v2087 = vpop.permute.xlu0 %2086
    %2094 = vst.msk [vmem:[#allocation4 + $0x30] sm:$0xf] %vm45, %v2077
    %2095 = vst.msk [vmem:[#allocation4 + $0x34] sm:$0xf] %vm45, %v2079
    %2096 = vst.msk [vmem:[#allocation4 + $0x38] sm:$0xf] %vm45, %v2081
    %2097 = vst.msk [vmem:[#allocation4 + $0x3c] sm:$0xf] %vm45, %v2083
    %2098 = vst.msk [vmem:[#allocation4 + $0x40] sm:$0xf] %vm45, %v2085
    %2099 = vst.msk [vmem:[#allocation4 + $0x44] sm:$0xf] %vm45, %v2087
    %v2100 = vld [vmem:[#allocation3] sm:$0xf]
    %v2101 = vld [vmem:[#allocation3 + $0x4] sm:$0xf]
    %v2102 = vld [vmem:[#allocation3 + $0x8] sm:$0xf]
    %v2103 = vld [vmem:[#allocation3 + $0xc] sm:$0xf]
    %v2104 = vld [vmem:[#allocation3 + $0x10] sm:$0xf]
    %v2105 = vld [vmem:[#allocation3 + $0x14] sm:$0xf]
    %2112 = vrot.lane.b32.xlu0 %v2100, 117
    %v2113 = vpop.permute.xlu0 %2112
    %2114 = vrot.lane.b32.xlu0 %v2101, 117
    %v2115 = vpop.permute.xlu0 %2114
    %2116 = vrot.lane.b32.xlu0 %v2102, 117
    %v2117 = vpop.permute.xlu0 %2116
    %2118 = vrot.lane.b32.xlu0 %v2103, 117
    %v2119 = vpop.permute.xlu0 %2118
    %2120 = vrot.lane.b32.xlu0 %v2104, 117
    %v2121 = vpop.permute.xlu0 %2120
    %2122 = vrot.lane.b32.xlu0 %v2105, 117
    %v2123 = vpop.permute.xlu0 %2122
    %2130 = vst.msk [vmem:[#allocation4 + $0x48] sm:$0xf] %vm45, %v2113
    %2131 = vst.msk [vmem:[#allocation4 + $0x4c] sm:$0xf] %vm45, %v2115
    %2132 = vst.msk [vmem:[#allocation4 + $0x50] sm:$0xf] %vm45, %v2117
    %2133 = vst.msk [vmem:[#allocation4 + $0x54] sm:$0xf] %vm45, %v2119
    %2134 = vst.msk [vmem:[#allocation4 + $0x58] sm:$0xf] %vm45, %v2121
    %2135 = vst.msk [vmem:[#allocation4 + $0x5c] sm:$0xf] %vm45, %v2123
    %v2136 = vld [vmem:[#allocation3] sm:$0xf]
    %v2137 = vld [vmem:[#allocation3 + $0x4] sm:$0xf]
    %v2138 = vld [vmem:[#allocation3 + $0x8] sm:$0xf]
    %v2139 = vld [vmem:[#allocation3 + $0xc] sm:$0xf]
    %v2140 = vld [vmem:[#allocation3 + $0x10] sm:$0xf]
    %v2141 = vld [vmem:[#allocation3 + $0x14] sm:$0xf]
    %2148 = vrot.lane.b32.xlu0 %v2136, 126
    %v2149 = vpop.permute.xlu0 %2148
    %2150 = vrot.lane.b32.xlu0 %v2137, 126
    %v2151 = vpop.permute.xlu0 %2150
    %2152 = vrot.lane.b32.xlu0 %v2138, 126
    %v2153 = vpop.permute.xlu0 %2152
    %2154 = vrot.lane.b32.xlu0 %v2139, 126
    %v2155 = vpop.permute.xlu0 %2154
    %2156 = vrot.lane.b32.xlu0 %v2140, 126
    %v2157 = vpop.permute.xlu0 %2156
    %2158 = vrot.lane.b32.xlu0 %v2141, 126
    %v2159 = vpop.permute.xlu0 %2158
    %2166 = vst.msk [vmem:[#allocation4 + $0x60] sm:$0xf] %vm45, %v2149
    %2167 = vst.msk [vmem:[#allocation4 + $0x64] sm:$0xf] %vm45, %v2151
    %2168 = vst.msk [vmem:[#allocation4 + $0x68] sm:$0xf] %vm45, %v2153
    %2169 = vst.msk [vmem:[#allocation4 + $0x6c] sm:$0xf] %vm45, %v2155
    %2170 = vst.msk [vmem:[#allocation4 + $0x70] sm:$0xf] %vm45, %v2157
    %2171 = vst.msk [vmem:[#allocation4 + $0x74] sm:$0xf] %vm45, %v2159
    %v2172 = vld [vmem:[%s0] sm:$0xf]
    %v2173 = vld [vmem:[%s0 + $0x4] sm:$0xf]
    %2176 = vrot.lane.b32.xlu0 %v2172, 126
    %v2177 = vpop.permute.xlu0 %2176
    %2178 = vrot.lane.b32.xlu0 %v2173, 126
    %v2179 = vpop.permute.xlu0 %2178
    %2182 = vst.msk [vmem:[#allocation4 + $0x78] sm:$0xf] %vm45, %v2177
    %2183 = vst.msk [vmem:[#allocation4 + $0x7c] sm:$0xf] %vm45, %v2179
    %v2184 = vld [vmem:[#allocation3] sm:$0xf]
    %v2185 = vld [vmem:[#allocation3 + $0x4] sm:$0xf]
    %v2186 = vld [vmem:[#allocation3 + $0x8] sm:$0xf]
    %v2187 = vld [vmem:[#allocation3 + $0xc] sm:$0xf]
    %v2188 = vld [vmem:[#allocation3 + $0x10] sm:$0xf]
    %v2189 = vld [vmem:[#allocation3 + $0x14] sm:$0xf]
    %2196 = vrot.lane.b32.xlu0 %v2184, 116
    %v2197 = vpop.permute.xlu0 %2196
    %2198 = vrot.lane.b32.xlu0 %v2185, 116
    %v2199 = vpop.permute.xlu0 %2198
    %2200 = vrot.lane.b32.xlu0 %v2186, 116
    %v2201 = vpop.permute.xlu0 %2200
    %2202 = vrot.lane.b32.xlu0 %v2187, 116
    %v2203 = vpop.permute.xlu0 %2202
    %2204 = vrot.lane.b32.xlu0 %v2188, 116
    %v2205 = vpop.permute.xlu0 %2204
    %2206 = vrot.lane.b32.xlu0 %v2189, 116
    %v2207 = vpop.permute.xlu0 %2206
    %2214 = vst.msk [vmem:[#allocation4] sm:$0xf] %vm58, %v2197
    %2215 = vst.msk [vmem:[#allocation4 + $0x4] sm:$0xf] %vm58, %v2199
    %2216 = vst.msk [vmem:[#allocation4 + $0x8] sm:$0xf] %vm58, %v2201
    %2217 = vst.msk [vmem:[#allocation4 + $0xc] sm:$0xf] %vm58, %v2203
    %2218 = vst.msk [vmem:[#allocation4 + $0x10] sm:$0xf] %vm58, %v2205
    %2219 = vst.msk [vmem:[#allocation4 + $0x14] sm:$0xf] %vm58, %v2207
    %v2220 = vld [vmem:[#allocation3] sm:$0xf]
    %v2221 = vld [vmem:[#allocation3 + $0x4] sm:$0xf]
    %v2222 = vld [vmem:[#allocation3 + $0x8] sm:$0xf]
    %v2223 = vld [vmem:[#allocation3 + $0xc] sm:$0xf]
    %v2224 = vld [vmem:[#allocation3 + $0x10] sm:$0xf]
    %v2225 = vld [vmem:[#allocation3 + $0x14] sm:$0xf]
    %2232 = vrot.lane.b32.xlu0 %v2220, 106
    %v2233 = vpop.permute.xlu0 %2232
    %2234 = vrot.lane.b32.xlu0 %v2221, 106
    %v2235 = vpop.permute.xlu0 %2234
    %2236 = vrot.lane.b32.xlu0 %v2222, 106
    %v2237 = vpop.permute.xlu0 %2236
    %2238 = vrot.lane.b32.xlu0 %v2223, 106
    %v2239 = vpop.permute.xlu0 %2238
    %2240 = vrot.lane.b32.xlu0 %v2224, 106
    %v2241 = vpop.permute.xlu0 %2240
    %2242 = vrot.lane.b32.xlu0 %v2225, 106
    %v2243 = vpop.permute.xlu0 %2242
    %2250 = vst.msk [vmem:[#allocation4 + $0x18] sm:$0xf] %vm58, %v2233
    %2251 = vst.msk [vmem:[#allocation4 + $0x1c] sm:$0xf] %vm58, %v2235
    %2252 = vst.msk [vmem:[#allocation4 + $0x20] sm:$0xf] %vm58, %v2237
    %2253 = vst.msk [vmem:[#allocation4 + $0x24] sm:$0xf] %vm58, %v2239
    %2254 = vst.msk [vmem:[#allocation4 + $0x28] sm:$0xf] %vm58, %v2241
    %2255 = vst.msk [vmem:[#allocation4 + $0x2c] sm:$0xf] %vm58, %v2243
    %v2256 = vld [vmem:[#allocation3] sm:$0xf]
    %v2257 = vld [vmem:[#allocation3 + $0x4] sm:$0xf]
    %v2258 = vld [vmem:[#allocation3 + $0x8] sm:$0xf]
    %v2259 = vld [vmem:[#allocation3 + $0xc] sm:$0xf]
    %v2260 = vld [vmem:[#allocation3 + $0x10] sm:$0xf]
    %v2261 = vld [vmem:[#allocation3 + $0x14] sm:$0xf]
    %2268 = vrot.lane.b32.xlu0 %v2256, 115
    %v2269 = vpop.permute.xlu0 %2268
    %2270 = vrot.lane.b32.xlu0 %v2257, 115
    %v2271 = vpop.permute.xlu0 %2270
    %2272 = vrot.lane.b32.xlu0 %v2258, 115
    %v2273 = vpop.permute.xlu0 %2272
    %2274 = vrot.lane.b32.xlu0 %v2259, 115
    %v2275 = vpop.permute.xlu0 %2274
    %2276 = vrot.lane.b32.xlu0 %v2260, 115
    %v2277 = vpop.permute.xlu0 %2276
    %2278 = vrot.lane.b32.xlu0 %v2261, 115
    %v2279 = vpop.permute.xlu0 %2278
    %2286 = vst.msk [vmem:[#allocation4 + $0x30] sm:$0xf] %vm58, %v2269
    %2287 = vst.msk [vmem:[#allocation4 + $0x34] sm:$0xf] %vm58, %v2271
    %2288 = vst.msk [vmem:[#allocation4 + $0x38] sm:$0xf] %vm58, %v2273
    %2289 = vst.msk [vmem:[#allocation4 + $0x3c] sm:$0xf] %vm58, %v2275
    %2290 = vst.msk [vmem:[#allocation4 + $0x40] sm:$0xf] %vm58, %v2277
    %2291 = vst.msk [vmem:[#allocation4 + $0x44] sm:$0xf] %vm58, %v2279
    %v2292 = vld [vmem:[#allocation3] sm:$0xf]
    %v2293 = vld [vmem:[#allocation3 + $0x4] sm:$0xf]
    %v2294 = vld [vmem:[#allocation3 + $0x8] sm:$0xf]
    %v2295 = vld [vmem:[#allocation3 + $0xc] sm:$0xf]
    %v2296 = vld [vmem:[#allocation3 + $0x10] sm:$0xf]
    %v2297 = vld [vmem:[#allocation3 + $0x14] sm:$0xf]
    %2304 = vrot.lane.b32.xlu0 %v2292, 105
    %v2305 = vpop.permute.xlu0 %2304
    %2306 = vrot.lane.b32.xlu0 %v2293, 105
    %v2307 = vpop.permute.xlu0 %2306
    %2308 = vrot.lane.b32.xlu0 %v2294, 105
    %v2309 = vpop.permute.xlu0 %2308
    %2310 = vrot.lane.b32.xlu0 %v2295, 105
    %v2311 = vpop.permute.xlu0 %2310
    %2312 = vrot.lane.b32.xlu0 %v2296, 105
    %v2313 = vpop.permute.xlu0 %2312
    %2314 = vrot.lane.b32.xlu0 %v2297, 105
    %v2315 = vpop.permute.xlu0 %2314
    %2322 = vst.msk [vmem:[#allocation4 + $0x48] sm:$0xf] %vm58, %v2305
    %2323 = vst.msk [vmem:[#allocation4 + $0x4c] sm:$0xf] %vm58, %v2307
    %2324 = vst.msk [vmem:[#allocation4 + $0x50] sm:$0xf] %vm58, %v2309
    %2325 = vst.msk [vmem:[#allocation4 + $0x54] sm:$0xf] %vm58, %v2311
    %2326 = vst.msk [vmem:[#allocation4 + $0x58] sm:$0xf] %vm58, %v2313
    %2327 = vst.msk [vmem:[#allocation4 + $0x5c] sm:$0xf] %vm58, %v2315
    %v2328 = vld [vmem:[#allocation3] sm:$0xf]
    %v2329 = vld [vmem:[#allocation3 + $0x4] sm:$0xf]
    %v2330 = vld [vmem:[#allocation3 + $0x8] sm:$0xf]
    %v2331 = vld [vmem:[#allocation3 + $0xc] sm:$0xf]
    %v2332 = vld [vmem:[#allocation3 + $0x10] sm:$0xf]
    %v2333 = vld [vmem:[#allocation3 + $0x14] sm:$0xf]
    %2340 = vrot.lane.b32.xlu0 %v2328, 114
    %v2341 = vpop.permute.xlu0 %2340
    %2342 = vrot.lane.b32.xlu0 %v2329, 114
    %v2343 = vpop.permute.xlu0 %2342
    %2344 = vrot.lane.b32.xlu0 %v2330, 114
    %v2345 = vpop.permute.xlu0 %2344
    %2346 = vrot.lane.b32.xlu0 %v2331, 114
    %v2347 = vpop.permute.xlu0 %2346
    %2348 = vrot.lane.b32.xlu0 %v2332, 114
    %v2349 = vpop.permute.xlu0 %2348
    %2350 = vrot.lane.b32.xlu0 %v2333, 114
    %v2351 = vpop.permute.xlu0 %2350
    %2358 = vst.msk [vmem:[#allocation4 + $0x60] sm:$0xf] %vm58, %v2341
    %2359 = vst.msk [vmem:[#allocation4 + $0x64] sm:$0xf] %vm58, %v2343
    %2360 = vst.msk [vmem:[#allocation4 + $0x68] sm:$0xf] %vm58, %v2345
    %2361 = vst.msk [vmem:[#allocation4 + $0x6c] sm:$0xf] %vm58, %v2347
    %2362 = vst.msk [vmem:[#allocation4 + $0x70] sm:$0xf] %vm58, %v2349
    %2363 = vst.msk [vmem:[#allocation4 + $0x74] sm:$0xf] %vm58, %v2351
    %v2364 = vld [vmem:[%s245] sm:$0xf]
    %v2365 = vld [vmem:[%s245 + $0x4] sm:$0xf]
    %2368 = vrot.lane.b32.xlu0 %v2364, 6
    %v2369 = vpop.permute.xlu0 %2368
    %2370 = vrot.lane.b32.xlu0 %v2365, 6
    %v2371 = vpop.permute.xlu0 %2370
    %2374 = vst.msk [vmem:[#allocation4 + $0x78] sm:$0xf] %vm58, %v2369
    %2375 = vst.msk [vmem:[#allocation4 + $0x7c] sm:$0xf] %vm58, %v2371
    %v2376 = vld [vmem:[#allocation3] sm:$0xf]
    %v2377 = vld [vmem:[#allocation3 + $0x4] sm:$0xf]
    %v2378 = vld [vmem:[#allocation3 + $0x8] sm:$0xf]
    %v2379 = vld [vmem:[#allocation3 + $0xc] sm:$0xf]
    %v2380 = vld [vmem:[#allocation3 + $0x10] sm:$0xf]
    %v2381 = vld [vmem:[#allocation3 + $0x14] sm:$0xf]
    %2388 = vrot.lane.b32.xlu0 %v2376, 104
    %v2389 = vpop.permute.xlu0 %2388
    %2390 = vrot.lane.b32.xlu0 %v2377, 104
    %v2391 = vpop.permute.xlu0 %2390
    %2392 = vrot.lane.b32.xlu0 %v2378, 104
    %v2393 = vpop.permute.xlu0 %2392
    %2394 = vrot.lane.b32.xlu0 %v2379, 104
    %v2395 = vpop.permute.xlu0 %2394
    %2396 = vrot.lane.b32.xlu0 %v2380, 104
    %v2397 = vpop.permute.xlu0 %2396
    %2398 = vrot.lane.b32.xlu0 %v2381, 104
    %v2399 = vpop.permute.xlu0 %2398
    %2406 = vst.msk [vmem:[#allocation4] sm:$0xf] %vm256, %v2389
    %2407 = vst.msk [vmem:[#allocation4 + $0x4] sm:$0xf] %vm256, %v2391
    %2408 = vst.msk [vmem:[#allocation4 + $0x8] sm:$0xf] %vm256, %v2393
    %2409 = vst.msk [vmem:[#allocation4 + $0xc] sm:$0xf] %vm256, %v2395
    %2410 = vst.msk [vmem:[#allocation4 + $0x10] sm:$0xf] %vm256, %v2397
    %2411 = vst.msk [vmem:[#allocation4 + $0x14] sm:$0xf] %vm256, %v2399
    %v2412 = vld [vmem:[#allocation3] sm:$0xf]
    %v2413 = vld [vmem:[#allocation3 + $0x4] sm:$0xf]
    %v2414 = vld [vmem:[#allocation3 + $0x8] sm:$0xf]
    %v2415 = vld [vmem:[#allocation3 + $0xc] sm:$0xf]
    %v2416 = vld [vmem:[#allocation3 + $0x10] sm:$0xf]
    %v2417 = vld [vmem:[#allocation3 + $0x14] sm:$0xf]
    %2424 = vrot.lane.b32.xlu0 %v2412, 94
    %v2425 = vpop.permute.xlu0 %2424
    %2426 = vrot.lane.b32.xlu0 %v2413, 94
    %v2427 = vpop.permute.xlu0 %2426
    %2428 = vrot.lane.b32.xlu0 %v2414, 94
    %v2429 = vpop.permute.xlu0 %2428
    %2430 = vrot.lane.b32.xlu0 %v2415, 94
    %v2431 = vpop.permute.xlu0 %2430
    %2432 = vrot.lane.b32.xlu0 %v2416, 94
    %v2433 = vpop.permute.xlu0 %2432
    %2434 = vrot.lane.b32.xlu0 %v2417, 94
    %v2435 = vpop.permute.xlu0 %2434
    %2442 = vst.msk [vmem:[#allocation4 + $0x18] sm:$0xf] %vm256, %v2425
    %2443 = vst.msk [vmem:[#allocation4 + $0x1c] sm:$0xf] %vm256, %v2427
    %2444 = vst.msk [vmem:[#allocation4 + $0x20] sm:$0xf] %vm256, %v2429
    %2445 = vst.msk [vmem:[#allocation4 + $0x24] sm:$0xf] %vm256, %v2431
    %2446 = vst.msk [vmem:[#allocation4 + $0x28] sm:$0xf] %vm256, %v2433
    %2447 = vst.msk [vmem:[#allocation4 + $0x2c] sm:$0xf] %vm256, %v2435
    %v2448 = vld [vmem:[#allocation3] sm:$0xf]
    %v2449 = vld [vmem:[#allocation3 + $0x4] sm:$0xf]
    %v2450 = vld [vmem:[#allocation3 + $0x8] sm:$0xf]
    %v2451 = vld [vmem:[#allocation3 + $0xc] sm:$0xf]
    %v2452 = vld [vmem:[#allocation3 + $0x10] sm:$0xf]
    %v2453 = vld [vmem:[#allocation3 + $0x14] sm:$0xf]
    %2460 = vrot.lane.b32.xlu0 %v2448, 103
    %v2461 = vpop.permute.xlu0 %2460
    %2462 = vrot.lane.b32.xlu0 %v2449, 103
    %v2463 = vpop.permute.xlu0 %2462
    %2464 = vrot.lane.b32.xlu0 %v2450, 103
    %v2465 = vpop.permute.xlu0 %2464
    %2466 = vrot.lane.b32.xlu0 %v2451, 103
    %v2467 = vpop.permute.xlu0 %2466
    %2468 = vrot.lane.b32.xlu0 %v2452, 103
    %v2469 = vpop.permute.xlu0 %2468
    %2470 = vrot.lane.b32.xlu0 %v2453, 103
    %v2471 = vpop.permute.xlu0 %2470
    %2478 = vst.msk [vmem:[#allocation4 + $0x30] sm:$0xf] %vm256, %v2461
    %2479 = vst.msk [vmem:[#allocation4 + $0x34] sm:$0xf] %vm256, %v2463
    %2480 = vst.msk [vmem:[#allocation4 + $0x38] sm:$0xf] %vm256, %v2465
    %2481 = vst.msk [vmem:[#allocation4 + $0x3c] sm:$0xf] %vm256, %v2467
    %2482 = vst.msk [vmem:[#allocation4 + $0x40] sm:$0xf] %vm256, %v2469
    %2483 = vst.msk [vmem:[#allocation4 + $0x44] sm:$0xf] %vm256, %v2471
    %v2484 = vld [vmem:[#allocation3] sm:$0xf]
    %v2485 = vld [vmem:[#allocation3 + $0x4] sm:$0xf]
    %v2486 = vld [vmem:[#allocation3 + $0x8] sm:$0xf]
    %v2487 = vld [vmem:[#allocation3 + $0xc] sm:$0xf]
    %v2488 = vld [vmem:[#allocation3 + $0x10] sm:$0xf]
    %v2489 = vld [vmem:[#allocation3 + $0x14] sm:$0xf]
    %2496 = vrot.lane.b32.xlu0 %v2484, 93
    %v2497 = vpop.permute.xlu0 %2496
    %2498 = vrot.lane.b32.xlu0 %v2485, 93
    %v2499 = vpop.permute.xlu0 %2498
    %2500 = vrot.lane.b32.xlu0 %v2486, 93
    %v2501 = vpop.permute.xlu0 %2500
    %2502 = vrot.lane.b32.xlu0 %v2487, 93
    %v2503 = vpop.permute.xlu0 %2502
    %2504 = vrot.lane.b32.xlu0 %v2488, 93
    %v2505 = vpop.permute.xlu0 %2504
    %2506 = vrot.lane.b32.xlu0 %v2489, 93
    %v2507 = vpop.permute.xlu0 %2506
    %2514 = vst.msk [vmem:[#allocation4 + $0x48] sm:$0xf] %vm256, %v2497
    %2515 = vst.msk [vmem:[#allocation4 + $0x4c] sm:$0xf] %vm256, %v2499
    %2516 = vst.msk [vmem:[#allocation4 + $0x50] sm:$0xf] %vm256, %v2501
    %2517 = vst.msk [vmem:[#allocation4 + $0x54] sm:$0xf] %vm256, %v2503
    %2518 = vst.msk [vmem:[#allocation4 + $0x58] sm:$0xf] %vm256, %v2505
    %2519 = vst.msk [vmem:[#allocation4 + $0x5c] sm:$0xf] %vm256, %v2507
    %v2520 = vld [vmem:[#allocation3] sm:$0xf]
    %v2521 = vld [vmem:[#allocation3 + $0x4] sm:$0xf]
    %v2522 = vld [vmem:[#allocation3 + $0x8] sm:$0xf]
    %v2523 = vld [vmem:[#allocation3 + $0xc] sm:$0xf]
    %v2524 = vld [vmem:[#allocation3 + $0x10] sm:$0xf]
    %v2525 = vld [vmem:[#allocation3 + $0x14] sm:$0xf]
    %2532 = vrot.lane.b32.xlu0 %v2520, 102
    %v2533 = vpop.permute.xlu0 %2532
    %2534 = vrot.lane.b32.xlu0 %v2521, 102
    %v2535 = vpop.permute.xlu0 %2534
    %2536 = vrot.lane.b32.xlu0 %v2522, 102
    %v2537 = vpop.permute.xlu0 %2536
    %2538 = vrot.lane.b32.xlu0 %v2523, 102
    %v2539 = vpop.permute.xlu0 %2538
    %2540 = vrot.lane.b32.xlu0 %v2524, 102
    %v2541 = vpop.permute.xlu0 %2540
    %2542 = vrot.lane.b32.xlu0 %v2525, 102
    %v2543 = vpop.permute.xlu0 %2542
    %2550 = vst.msk [vmem:[#allocation4 + $0x60] sm:$0xf] %vm256, %v2533
    %2551 = vst.msk [vmem:[#allocation4 + $0x64] sm:$0xf] %vm256, %v2535
    %2552 = vst.msk [vmem:[#allocation4 + $0x68] sm:$0xf] %vm256, %v2537
    %2553 = vst.msk [vmem:[#allocation4 + $0x6c] sm:$0xf] %vm256, %v2539
    %2554 = vst.msk [vmem:[#allocation4 + $0x70] sm:$0xf] %vm256, %v2541
    %2555 = vst.msk [vmem:[#allocation4 + $0x74] sm:$0xf] %vm256, %v2543
    %v2556 = vld [vmem:[%s465] sm:$0xf]
    %v2557 = vld [vmem:[%s465 + $0x4] sm:$0xf]
    %2560 = vrot.lane.b32.xlu0 %v2556, 14
    %v2561 = vpop.permute.xlu0 %2560
    %2562 = vrot.lane.b32.xlu0 %v2557, 14
    %v2563 = vpop.permute.xlu0 %2562
    %2566 = vst.msk [vmem:[#allocation4 + $0x78] sm:$0xf] %vm256, %v2561
    %2567 = vst.msk [vmem:[#allocation4 + $0x7c] sm:$0xf] %vm256, %v2563
    %v2568 = vld [vmem:[#allocation3] sm:$0xf]
    %v2569 = vld [vmem:[#allocation3 + $0x4] sm:$0xf]
    %v2570 = vld [vmem:[#allocation3 + $0x8] sm:$0xf]
    %v2571 = vld [vmem:[#allocation3 + $0xc] sm:$0xf]
    %v2572 = vld [vmem:[#allocation3 + $0x10] sm:$0xf]
    %v2573 = vld [vmem:[#allocation3 + $0x14] sm:$0xf]
    %2580 = vrot.lane.b32.xlu0 %v2568, 92
    %v2581 = vpop.permute.xlu0 %2580
    %2582 = vrot.lane.b32.xlu0 %v2569, 92
    %v2583 = vpop.permute.xlu0 %2582
    %2584 = vrot.lane.b32.xlu0 %v2570, 92
    %v2585 = vpop.permute.xlu0 %2584
    %2586 = vrot.lane.b32.xlu0 %v2571, 92
    %v2587 = vpop.permute.xlu0 %2586
    %2588 = vrot.lane.b32.xlu0 %v2572, 92
    %v2589 = vpop.permute.xlu0 %2588
    %2590 = vrot.lane.b32.xlu0 %v2573, 92
    %v2591 = vpop.permute.xlu0 %2590
    %2598 = vst.msk [vmem:[#allocation4] sm:$0xf] %vm270, %v2581
    %2599 = vst.msk [vmem:[#allocation4 + $0x4] sm:$0xf] %vm270, %v2583
    %2600 = vst.msk [vmem:[#allocation4 + $0x8] sm:$0xf] %vm270, %v2585
    %2601 = vst.msk [vmem:[#allocation4 + $0xc] sm:$0xf] %vm270, %v2587
    %2602 = vst.msk [vmem:[#allocation4 + $0x10] sm:$0xf] %vm270, %v2589
    %2603 = vst.msk [vmem:[#allocation4 + $0x14] sm:$0xf] %vm270, %v2591
    %v2604 = vld [vmem:[#allocation3] sm:$0xf]
    %v2605 = vld [vmem:[#allocation3 + $0x4] sm:$0xf]
    %v2606 = vld [vmem:[#allocation3 + $0x8] sm:$0xf]
    %v2607 = vld [vmem:[#allocation3 + $0xc] sm:$0xf]
    %v2608 = vld [vmem:[#allocation3 + $0x10] sm:$0xf]
    %v2609 = vld [vmem:[#allocation3 + $0x14] sm:$0xf]
    %2616 = vrot.lane.b32.xlu0 %v2604, 82
    %v2617 = vpop.permute.xlu0 %2616
    %2618 = vrot.lane.b32.xlu0 %v2605, 82
    %v2619 = vpop.permute.xlu0 %2618
    %2620 = vrot.lane.b32.xlu0 %v2606, 82
    %v2621 = vpop.permute.xlu0 %2620
    %2622 = vrot.lane.b32.xlu0 %v2607, 82
    %v2623 = vpop.permute.xlu0 %2622
    %2624 = vrot.lane.b32.xlu0 %v2608, 82
    %v2625 = vpop.permute.xlu0 %2624
    %2626 = vrot.lane.b32.xlu0 %v2609, 82
    %v2627 = vpop.permute.xlu0 %2626
    %2634 = vst.msk [vmem:[#allocation4 + $0x18] sm:$0xf] %vm270, %v2617
    %2635 = vst.msk [vmem:[#allocation4 + $0x1c] sm:$0xf] %vm270, %v2619
    %2636 = vst.msk [vmem:[#allocation4 + $0x20] sm:$0xf] %vm270, %v2621
    %2637 = vst.msk [vmem:[#allocation4 + $0x24] sm:$0xf] %vm270, %v2623
    %2638 = vst.msk [vmem:[#allocation4 + $0x28] sm:$0xf] %vm270, %v2625
    %2639 = vst.msk [vmem:[#allocation4 + $0x2c] sm:$0xf] %vm270, %v2627
    %v2640 = vld [vmem:[#allocation3] sm:$0xf]
    %v2641 = vld [vmem:[#allocation3 + $0x4] sm:$0xf]
    %v2642 = vld [vmem:[#allocation3 + $0x8] sm:$0xf]
    %v2643 = vld [vmem:[#allocation3 + $0xc] sm:$0xf]
    %v2644 = vld [vmem:[#allocation3 + $0x10] sm:$0xf]
    %v2645 = vld [vmem:[#allocation3 + $0x14] sm:$0xf]
    %2652 = vrot.lane.b32.xlu0 %v2640, 91
    %v2653 = vpop.permute.xlu0 %2652
    %2654 = vrot.lane.b32.xlu0 %v2641, 91
    %v2655 = vpop.permute.xlu0 %2654
    %2656 = vrot.lane.b32.xlu0 %v2642, 91
    %v2657 = vpop.permute.xlu0 %2656
    %2658 = vrot.lane.b32.xlu0 %v2643, 91
    %v2659 = vpop.permute.xlu0 %2658
    %2660 = vrot.lane.b32.xlu0 %v2644, 91
    %v2661 = vpop.permute.xlu0 %2660
    %2662 = vrot.lane.b32.xlu0 %v2645, 91
    %v2663 = vpop.permute.xlu0 %2662
    %2670 = vst.msk [vmem:[#allocation4 + $0x30] sm:$0xf] %vm270, %v2653
    %2671 = vst.msk [vmem:[#allocation4 + $0x34] sm:$0xf] %vm270, %v2655
    %2672 = vst.msk [vmem:[#allocation4 + $0x38] sm:$0xf] %vm270, %v2657
    %2673 = vst.msk [vmem:[#allocation4 + $0x3c] sm:$0xf] %vm270, %v2659
    %2674 = vst.msk [vmem:[#allocation4 + $0x40] sm:$0xf] %vm270, %v2661
    %2675 = vst.msk [vmem:[#allocation4 + $0x44] sm:$0xf] %vm270, %v2663
    %v2676 = vld [vmem:[#allocation3] sm:$0xf]
    %v2677 = vld [vmem:[#allocation3 + $0x4] sm:$0xf]
    %v2678 = vld [vmem:[#allocation3 + $0x8] sm:$0xf]
    %v2679 = vld [vmem:[#allocation3 + $0xc] sm:$0xf]
    %v2680 = vld [vmem:[#allocation3 + $0x10] sm:$0xf]
    %v2681 = vld [vmem:[#allocation3 + $0x14] sm:$0xf]
    %2688 = vrot.lane.b32.xlu0 %v2676, 81
    %v2689 = vpop.permute.xlu0 %2688
    %2690 = vrot.lane.b32.xlu0 %v2677, 81
    %v2691 = vpop.permute.xlu0 %2690
    %2692 = vrot.lane.b32.xlu0 %v2678, 81
    %v2693 = vpop.permute.xlu0 %2692
    %2694 = vrot.lane.b32.xlu0 %v2679, 81
    %v2695 = vpop.permute.xlu0 %2694
    %2696 = vrot.lane.b32.xlu0 %v2680, 81
    %v2697 = vpop.permute.xlu0 %2696
    %2698 = vrot.lane.b32.xlu0 %v2681, 81
    %v2699 = vpop.permute.xlu0 %2698
    %2706 = vst.msk [vmem:[#allocation4 + $0x48] sm:$0xf] %vm270, %v2689
    %2707 = vst.msk [vmem:[#allocation4 + $0x4c] sm:$0xf] %vm270, %v2691
    %2708 = vst.msk [vmem:[#allocation4 + $0x50] sm:$0xf] %vm270, %v2693
    %2709 = vst.msk [vmem:[#allocation4 + $0x54] sm:$0xf] %vm270, %v2695
    %2710 = vst.msk [vmem:[#allocation4 + $0x58] sm:$0xf] %vm270, %v2697
    %2711 = vst.msk [vmem:[#allocation4 + $0x5c] sm:$0xf] %vm270, %v2699
    %v2712 = vld [vmem:[#allocation3] sm:$0xf]
    %v2713 = vld [vmem:[#allocation3 + $0x4] sm:$0xf]
    %v2714 = vld [vmem:[#allocation3 + $0x8] sm:$0xf]
    %v2715 = vld [vmem:[#allocation3 + $0xc] sm:$0xf]
    %v2716 = vld [vmem:[#allocation3 + $0x10] sm:$0xf]
    %v2717 = vld [vmem:[#allocation3 + $0x14] sm:$0xf]
    %2724 = vrot.lane.b32.xlu0 %v2712, 90
    %v2725 = vpop.permute.xlu0 %2724
    %2726 = vrot.lane.b32.xlu0 %v2713, 90
    %v2727 = vpop.permute.xlu0 %2726
    %2728 = vrot.lane.b32.xlu0 %v2714, 90
    %v2729 = vpop.permute.xlu0 %2728
    %2730 = vrot.lane.b32.xlu0 %v2715, 90
    %v2731 = vpop.permute.xlu0 %2730
    %2732 = vrot.lane.b32.xlu0 %v2716, 90
    %v2733 = vpop.permute.xlu0 %2732
    %2734 = vrot.lane.b32.xlu0 %v2717, 90
    %v2735 = vpop.permute.xlu0 %2734
    %2742 = vst.msk [vmem:[#allocation4 + $0x60] sm:$0xf] %vm270, %v2725
    %2743 = vst.msk [vmem:[#allocation4 + $0x64] sm:$0xf] %vm270, %v2727
    %2744 = vst.msk [vmem:[#allocation4 + $0x68] sm:$0xf] %vm270, %v2729
    %2745 = vst.msk [vmem:[#allocation4 + $0x6c] sm:$0xf] %vm270, %v2731
    %2746 = vst.msk [vmem:[#allocation4 + $0x70] sm:$0xf] %vm270, %v2733
    %2747 = vst.msk [vmem:[#allocation4 + $0x74] sm:$0xf] %vm270, %v2735
    %v2748 = vld [vmem:[%s685] sm:$0xf]
    %v2749 = vld [vmem:[%s685 + $0x4] sm:$0xf]
    %2752 = vrot.lane.b32.xlu0 %v2748, 22
    %v2753 = vpop.permute.xlu0 %2752
    %2754 = vrot.lane.b32.xlu0 %v2749, 22
    %v2755 = vpop.permute.xlu0 %2754
    %2758 = vst.msk [vmem:[#allocation4 + $0x78] sm:$0xf] %vm270, %v2753
    %2759 = vst.msk [vmem:[#allocation4 + $0x7c] sm:$0xf] %vm270, %v2755
    %v2760 = vld [vmem:[%s8] sm:$0xff]
    %v2761 = vld [vmem:[#allocation4] sm:$0xf]
    %v2762 = vld [vmem:[#allocation4 + $0x4] sm:$0xf]
    %v2763 = vld [vmem:[#allocation4 + $0x8] sm:$0xf]
    %v2764 = vld [vmem:[#allocation4 + $0xc] sm:$0xf]
    %v2765 = vld [vmem:[#allocation4 + $0x10] sm:$0xf]
    %v2766 = vld [vmem:[#allocation4 + $0x14] sm:$0xf]
    %v2767 = vld [vmem:[#allocation4 + $0x18] sm:$0xf]
    %v2768 = vld [vmem:[#allocation4 + $0x1c] sm:$0xf]
    %v2769 = vld [vmem:[#allocation4 + $0x20] sm:$0xf]
    %v2770 = vld [vmem:[#allocation4 + $0x24] sm:$0xf]
    %v2771 = vld [vmem:[#allocation4 + $0x28] sm:$0xf]
    %v2772 = vld [vmem:[#allocation4 + $0x2c] sm:$0xf]
    %v2773 = vld [vmem:[#allocation4 + $0x30] sm:$0xf]
    %v2774 = vld [vmem:[#allocation4 + $0x34] sm:$0xf]
    %v2775 = vld [vmem:[#allocation4 + $0x38] sm:$0xf]
    %v2776 = vld [vmem:[#allocation4 + $0x3c] sm:$0xf]
    %v2777 = vld [vmem:[#allocation4 + $0x40] sm:$0xf]
    %v2778 = vld [vmem:[#allocation4 + $0x44] sm:$0xf]
    %v2779 = vld [vmem:[#allocation4 + $0x48] sm:$0xf]
    %v2780 = vld [vmem:[#allocation4 + $0x4c] sm:$0xf]
    %v2781 = vld [vmem:[#allocation4 + $0x50] sm:$0xf]
    %v2782 = vld [vmem:[#allocation4 + $0x54] sm:$0xf]
    %v2783 = vld [vmem:[#allocation4 + $0x58] sm:$0xf]
    %v2784 = vld [vmem:[#allocation4 + $0x5c] sm:$0xf]
    %v2785 = vld [vmem:[#allocation4 + $0x60] sm:$0xf]
    %v2786 = vld [vmem:[#allocation4 + $0x64] sm:$0xf]
    %v2787 = vld [vmem:[#allocation4 + $0x68] sm:$0xf]
    %v2788 = vld [vmem:[#allocation4 + $0x6c] sm:$0xf]
    %v2789 = vld [vmem:[#allocation4 + $0x70] sm:$0xf]
    %v2790 = vld [vmem:[#allocation4 + $0x74] sm:$0xf]
    %v2791 = vld [vmem:[%s9] sm:$0xff]
    %2793 = vset.pattern.permute.xlu0 0
    %2794 = vperm.xlu0 %2793, %v2791
    %v2795 = vpop.permute.xlu0 %2794
    %v2798 = vunpack.c.l.b16 %v2760
    %v2799 = vunpack.c.h.b16 %v2760
    %v2800 = vpack.c.b16 %v2798, %v2798
    %v2801 = vpack.c.b16 %v2799, %v2799
    %v2833 = vunpack.c.l.b16 %v2761
    %v2834 = vunpack.c.l.b16 %v2762
    %v2835 = vunpack.c.l.b16 %v2763
    %v2836 = vunpack.c.l.b16 %v2764
    %v2837 = vunpack.c.l.b16 %v2765
    %v2838 = vunpack.c.l.b16 %v2766
    %v2839 = vunpack.c.l.b16 %v2767
    %v2840 = vunpack.c.l.b16 %v2768
    %v2841 = vunpack.c.l.b16 %v2769
    %v2842 = vunpack.c.l.b16 %v2770
    %v2843 = vunpack.c.l.b16 %v2771
    %v2844 = vunpack.c.l.b16 %v2772
    %v2845 = vunpack.c.l.b16 %v2773
    %v2846 = vunpack.c.l.b16 %v2774
    %v2847 = vunpack.c.l.b16 %v2775
    %v2848 = vunpack.c.l.b16 %v2776
    %v2849 = vunpack.c.l.b16 %v2777
    %v2850 = vunpack.c.l.b16 %v2778
    %v2851 = vunpack.c.l.b16 %v2779
    %v2852 = vunpack.c.l.b16 %v2780
    %v2853 = vunpack.c.l.b16 %v2781
    %v2854 = vunpack.c.l.b16 %v2782
    %v2855 = vunpack.c.l.b16 %v2783
    %v2856 = vunpack.c.l.b16 %v2784
    %v2857 = vunpack.c.l.b16 %v2785
    %v2858 = vunpack.c.l.b16 %v2786
    %v2859 = vunpack.c.l.b16 %v2787
    %v2860 = vunpack.c.l.b16 %v2788
    %v2861 = vunpack.c.l.b16 %v2789
    %v2862 = vunpack.c.l.b16 %v2790
    %v2863 = vpack.c.b16 %v2834, %v2833
    %v2864 = vpack.c.b16 %v2836, %v2835
    %v2865 = vpack.c.b16 %v2838, %v2837
    %v2866 = vpack.c.b16 %v2840, %v2839
    %v2867 = vpack.c.b16 %v2842, %v2841
    %v2868 = vpack.c.b16 %v2844, %v2843
    %v2869 = vpack.c.b16 %v2846, %v2845
    %v2870 = vpack.c.b16 %v2848, %v2847
    %v2871 = vpack.c.b16 %v2850, %v2849
    %v2872 = vpack.c.b16 %v2852, %v2851
    %v2873 = vpack.c.b16 %v2854, %v2853
    %v2874 = vpack.c.b16 %v2856, %v2855
    %v2875 = vpack.c.b16 %v2858, %v2857
    %v2876 = vpack.c.b16 %v2860, %v2859
    %v2877 = vpack.c.b16 %v2862, %v2861
    %vm2893 = vcmask 916480
    %v2895 = vsel %vm2893, %v2801, 0
    %2897 = vmatpush.bf16.msra.mxu0 %v2870
    %2898 = vmatpush.bf16.msra.mxu0 %v2869
    %2899 = vmatpush.bf16.msra.mxu0 %v2868
    %2900 = vmatpush.bf16.msra.mxu0 %v2867
    %2901 = vmatpush.bf16.msra.mxu0 %v2866
    %2902 = vmatpush.bf16.msra.mxu0 %v2865
    %2903 = vmatpush.bf16.msra.mxu0 %v2864
    %2904 = vmatpush.bf16.msra.mxu0 %v2863
    %2905 = vmatmul.bf16.gmra.mxu0 %v2800
    %v2906 = vpop.f32.mrf.mxu0
    %v2907 = vadd.f32 %v2795, %v2906
    %v2908 = vpop.f32.mrf.mxu0
    %2909 = vdwg.mxu0
    %2910 = vmatpush.bf16.msra.mxu0 0
    %2911 = vmatpush.bf16.msra.mxu0 %v2877
    %2912 = vmatpush.bf16.msra.mxu0 %v2876
    %2913 = vmatpush.bf16.msra.mxu0 %v2875
    %2914 = vmatpush.bf16.msra.mxu0 %v2874
    %2915 = vmatpush.bf16.msra.mxu0 %v2873
    %2916 = vmatpush.bf16.msra.mxu0 %v2872
    %2917 = vmatpush.bf16.msra.mxu0 %v2871
    %2918 = vmatmul.bf16.gmra.mxu0 %v2895
    %v2919 = vpop.f32.mrf.mxu0
    %v2920 = vadd.f32 %v2907, %v2919
    %v2921 = vpop.f32.mrf.mxu0
    %2922 = vdwg.mxu0
    %vm2923 = vcmp.ge.f32.partialorder %v2920, 0.0
    %v2924 = vmul.f32 %v2920, 0.01
    %v2925 = vsel %vm2923, %v2920, %v2924
    %v2926 = vld [vmem:[%s10] sm:$0xf]
    %v2927 = vld [vmem:[#allocation4 + $0x78] sm:$0xf]
    %v2928 = vld [vmem:[#allocation4 + $0x7c] sm:$0xf]
    %v2929 = vld [vmem:[%s11] sm:$0xff]
    %2931 = vset.pattern.permute.xlu0 0
    %2932 = vperm.xlu0 %2931, %v2929
    %v2933 = vpop.permute.xlu0 %2932
    %v2937 = vunpack.c.l.b16 %v2927
    %v2938 = vunpack.c.l.b16 %v2928
    %v2939 = vpack.c.b16 %v2938, %v2937
    %v2942 = vsel %vm1046, %v2926, 0
    %2944 = vmatpush.bf16.msra.mxu0 0
    %2945 = vmatpush.bf16.msra.mxu0 0
    %2946 = vmatpush.bf16.msra.mxu0 0
    %2947 = vmatpush.bf16.msra.mxu0 0
    %2948 = vmatpush.bf16.msra.mxu0 0
    %2949 = vmatpush.bf16.msra.mxu0 0
    %2950 = vmatpush.bf16.msra.mxu0 0
    %2951 = vmatpush.bf16.msra.mxu0 %v2939
    %2952 = vmatmul.bf16.gmra.mxu0 %v2942
    %v2953 = vpop.f32.mrf.mxu0
    %v2954 = vadd.f32 %v2933, %v2953
    %v2955 = vpop.f32.mrf.mxu0
    %2956 = vdwg.mxu0
    %v2957 = vmax.f32 %v2954, 0.0
    %v2958 = vadd.f32 %v2925, %v2957
    %vm2959 = vcmask 64512
    %2960 = vst.msk [vmem:[#allocation5] sm:$0xff] %vm2959, %v2958
    %2962 = vrot.lane.b32.xlu0 %v2958, 120
    %v2963 = vpop.permute.xlu0 %2962
    %s2965 = scalar_lea.vmem [#allocation5], 8
    %2966 = vst.msk [vmem:[%s2965] sm:$0xff] %vm2959, %v2963
    %2967 = vrot.lane.b32.xlu0 %v2958, 112
    %v2968 = vpop.permute.xlu0 %2967
    %s2970 = scalar_lea.vmem [#allocation5], 16
    %2971 = vst.msk [vmem:[%s2970] sm:$0xff] %vm2959, %v2968
    %2972 = vrot.lane.b32.xlu0 %v2958, 104
    %v2973 = vpop.permute.xlu0 %2972
    %s2975 = scalar_lea.vmem [#allocation5], 24
    %2976 = vst.msk [vmem:[%s2975] sm:$0xff] %vm2959, %v2973
    // Predicated region
    $region50: #{bottleneck_forward.1} parent=1 // pred_check
      _
    $region51: #{bottleneck_forward.1} parent=1 // pred_check_branch
      %2978 = sbr.rel (0) target = $region53
    $region52: #{bottleneck_forward.1} parent=1 // pred_region
      %2980 = vsyncadd [#allocation6], 0
      %s2981 = sshll.u32 [#allocation5], 4
      %s2982 = int_to_ptr.vmem [resolvable:$true] %s2981
      %s2983 = sshll.u32 %s12, 4
      %s2984 = int_to_ptr.hbm [resolvable:$true] %s2983
      %2989 = dma.vmem_to_hbm [thread:$0]  %s2982, 512, %s2984, [#allocation6], 128, 128, 8
    $region53: #{bottleneck_forward.1} parent=1 // pred_fallthru
      _
    // Predicated region
    $region54: #{bottleneck_forward.1} parent=1 // pred_check
      _
    $region55: #{bottleneck_forward.1} parent=1 // pred_check_branch
      %2991 = sbr.rel (0) target = $region57
    $region56: #{bottleneck_forward.1} parent=1 // pred_region
      %2993 = dma.done [#allocation6], 512
    $region57: #{bottleneck_forward.1} parent=1 // pred_fallthru
      _
    %2994 = vsyncpa [#allocation6], 1

</llo_original>
